<compile_context>
chip_gen: v6e
topology: v6e:2x2x1
jax: 0.10.0
libtpu: 0.0.40
codegen_flags: <defaults>
</compile_context>

<pallas_src>
import functools
import math

import jax
import jax.numpy as jnp
from jax import lax
from jax.experimental import pallas as pl
from jax.experimental.pallas import tpu as pltpu


# ------------------------- generation-aware VMEM budget -------------------------
# v5e/v6e: 128 MiB physical (16 / 32 MiB default scoped); v7x: 64 MiB physical (32 MiB scoped).
try:
    _VMEM_CAP = int(pltpu.get_tpu_info().vmem_capacity_bytes)
except Exception:  # attribute/runtime differences — fall back to the universally safe value
    _VMEM_CAP = 64 * 1024 * 1024
VMEM_LIMIT = max(32 * 1024 * 1024, min(64 * 1024 * 1024, _VMEM_CAP // 2))


# ------------------------------- tiling helpers -------------------------------


def _round_up(x, m):
    return (x + m - 1) // m * m


def _tile(dim, target, align):
    """Largest tile <= target that divides `dim` and is a multiple of `align`; else the full dim.

    A full-dim block is always legal (exempt from the (8,128) divisibility rule)."""
    if dim <= target:
        return dim
    t = (target // align) * align
    while t >= align:
        if dim % t == 0:
            return t
        t -= align
    return dim


# ------------------------- matmul + bias (+ activation) -------------------------


def _mm_bias_act_kernel(x_ref, w_ref, b_ref, o_ref, *, activation):
    y = jnp.dot(x_ref[...], w_ref[...], preferred_element_type=jnp.float32)
    y = y + b_ref[...].astype(jnp.float32)
    if activation == "gelu":
        # TODO(synk): PyTorch BERT uses exact erf GELU; tanh approximation (EUP tanh) is used
        # here and differs only within ~bf16 noise.
        y = 0.5 * y * (1.0 + jnp.tanh(0.7978845608028654 * (y + 0.044715 * y * y * y)))
    elif activation == "tanh":
        y = jnp.tanh(y)
    o_ref[...] = y.astype(o_ref.dtype)


def matmul_bias_act(x, w, b, activation="none"):
    """y = act(x @ w + b).

    Full-K single-pass matmul (K <= 3072 for BERT, weight tile <= 4.5 MB bf16), so there is no
    accumulator scratch and no revisit phases.  Grid is (N-tiles, M-tiles) with M innermost so
    the weight/bias tile stays VMEM-resident while the activations stream."""
    M, K = x.shape
    _, N = w.shape
    tm = _tile(M, 512, 8)
    tn = _tile(N, 1536, 128)
    nm, nn = M // tm, N // tn
    cost = pl.CostEstimate(
        flops=2 * M * N * K,
        transcendentals=M * N if activation != "none" else 0,
        bytes_accessed=2 * (nn * M * K + K * N + M * N) + 4 * N,
    )
    return pl.pallas_call(
        functools.partial(_mm_bias_act_kernel, activation=activation),
        out_shape=jax.ShapeDtypeStruct((M, N), x.dtype),
        grid_spec=pltpu.PrefetchScalarGridSpec(
            num_scalar_prefetch=0,
            grid=(nn, nm),  # M innermost: w/b resident across the sweep, x streams once per j
            in_specs=[
                pl.BlockSpec((tm, K), lambda j, i: (i, 0)),
                pl.BlockSpec((K, tn), lambda j, i: (0, j)),
                pl.BlockSpec((1, tn), lambda j, i: (0, j)),
            ],
            out_specs=pl.BlockSpec((tm, tn), lambda j, i: (i, j)),
        ),
        compiler_params=pltpu.CompilerParams(
            dimension_semantics=("parallel", "parallel"),
            vmem_limit_bytes=VMEM_LIMIT,
        ),
        cost_estimate=cost,
    )(x, w, b.reshape(1, N))


# ------------------ matmul + bias + residual + LayerNorm epilogue ------------------


def _mm_bias_res_ln_kernel(x_ref, w_ref, b_ref, r_ref, g_ref, beta_ref, o_ref, *, eps):
    y = jnp.dot(x_ref[...], w_ref[...], preferred_element_type=jnp.float32)
    y = y + b_ref[...].astype(jnp.float32) + r_ref[...].astype(jnp.float32)
    mu = jnp.mean(y, axis=-1, keepdims=True)
    var = jnp.mean(jnp.square(y - mu), axis=-1, keepdims=True)
    y = (y - mu) * lax.rsqrt(var + eps)
    y = y * g_ref[...].astype(jnp.float32) + beta_ref[...].astype(jnp.float32)
    o_ref[...] = y.astype(o_ref.dtype)


def matmul_bias_res_ln(x, w, b, residual, gamma, beta, eps=1e-12):
    """LayerNorm(x @ w + b + residual).

    N (= hidden) is kept whole so the LN row statistics are in-tile; K is kept whole so the
    weight is fetched once (constant index map) and there is no accumulator / revisit phase.
    tm=256 keeps the K=3072 FFN-output footprint within the v7x VMEM budget."""
    M, K = x.shape
    _, N = w.shape
    tm = _tile(M, 256, 8)
    nm = M // tm
    cost = pl.CostEstimate(
        flops=2 * M * N * K + 10 * M * N,
        transcendentals=0,
        bytes_accessed=2 * (M * K + K * N + 2 * M * N) + 12 * N,
    )
    return pl.pallas_call(
        functools.partial(_mm_bias_res_ln_kernel, eps=eps),
        out_shape=jax.ShapeDtypeStruct((M, N), x.dtype),
        grid_spec=pltpu.PrefetchScalarGridSpec(
            num_scalar_prefetch=0,
            grid=(nm,),
            in_specs=[
                pl.BlockSpec((tm, K), lambda i: (i, 0)),
                pl.BlockSpec((K, N), lambda i: (0, 0)),   # weight resident across the whole grid
                pl.BlockSpec((1, N), lambda i: (0, 0)),
                pl.BlockSpec((tm, N), lambda i: (i, 0)),  # residual
                pl.BlockSpec((1, N), lambda i: (0, 0)),
                pl.BlockSpec((1, N), lambda i: (0, 0)),
            ],
            out_specs=pl.BlockSpec((tm, N), lambda i: (i, 0)),
        ),
        compiler_params=pltpu.CompilerParams(
            dimension_semantics=("parallel",),
            vmem_limit_bytes=VMEM_LIMIT,
        ),
        cost_estimate=cost,
    )(x, w, b.reshape(1, N), residual, gamma.reshape(1, N), beta.reshape(1, N))


# ------------------------------ standalone LayerNorm ------------------------------


def _ln_kernel(x_ref, g_ref, b_ref, o_ref, *, eps):
    x = x_ref[...].astype(jnp.float32)
    mu = jnp.mean(x, axis=-1, keepdims=True)
    var = jnp.mean(jnp.square(x - mu), axis=-1, keepdims=True)
    y = (x - mu) * lax.rsqrt(var + eps)
    o_ref[...] = (y * g_ref[...].astype(jnp.float32) + b_ref[...].astype(jnp.float32)).astype(
        o_ref.dtype
    )


def layer_norm(x, gamma, beta, eps=1e-12):
    M, H = x.shape
    tm = _tile(M, 512, 8)
    return pl.pallas_call(
        functools.partial(_ln_kernel, eps=eps),
        out_shape=jax.ShapeDtypeStruct((M, H), x.dtype),
        grid_spec=pltpu.PrefetchScalarGridSpec(
            num_scalar_prefetch=0,
            grid=(M // tm,),
            in_specs=[
                pl.BlockSpec((tm, H), lambda i: (i, 0)),
                pl.BlockSpec((1, H), lambda i: (0, 0)),
                pl.BlockSpec((1, H), lambda i: (0, 0)),
            ],
            out_specs=pl.BlockSpec((tm, H), lambda i: (i, 0)),
        ),
        compiler_params=pltpu.CompilerParams(
            dimension_semantics=("parallel",),
            vmem_limit_bytes=VMEM_LIMIT,
        ),
    )(x, gamma.reshape(1, H), beta.reshape(1, H))


# ------------------------------ multi-head attention ------------------------------


def _attn_kernel(q_ref, k_ref, v_ref, mask_ref, o_ref, *, n_heads, dh):
    q = q_ref[0]                               # (tq, H) bf16 — Q already scaled by 1/sqrt(dh)
    k = k_ref[0]                               # (S,  H) bf16 — full sequence, VMEM-resident
    v = v_ref[0]                               # (S,  H) bf16
    mask = mask_ref[0].astype(jnp.float32)     # (1,  S) additive mask

    ctx = []
    for h in range(n_heads):                   # static loop; all heads share the resident K/V
        sl = slice(h * dh, (h + 1) * dh)
        qh, kh, vh = q[:, sl], k[:, sl], v[:, sl]
        # scores: contract the head dim of both operands (q @ k^T)
        s = lax.dot_general(qh, kh, (((1,), (1,)), ((), ())),
                            preferred_element_type=jnp.float32)           # (tq, S)
        s = s + mask
        # single-pass softmax: the whole key axis is in VMEM, no online rescale needed
        m = jnp.max(s, axis=-1, keepdims=True)
        p = jnp.exp(s - m)
        l = jnp.sum(p, axis=-1, keepdims=True)
        o = jnp.dot(p.astype(vh.dtype), vh, preferred_element_type=jnp.float32)
        ctx.append(o * pl.reciprocal(l, approx=True))
    # one lane-dense (tq, H) store, already in (B, S, H) layout — no merge transpose outside
    o_ref[0] = jnp.concatenate(ctx, axis=-1).astype(o_ref.dtype)


def mha_attention(qkv, ext_mask, n_heads):
    """qkv: (B, S, 3H) fused QKV projection output (Q columns pre-scaled by 1/sqrt(dh)).
    ext_mask: (B, 1, S) additive mask.  Returns (B, S, H) attention context.

    Head split/merge lives entirely in the BlockSpecs: the q/k/v in_specs pick column block
    0 / 1 / 2 of the 3H axis of the same array, K/V are full-sequence (resident across the
    q-tile sweep), and the output tile is (tq, H) written directly in (B, S, H) layout."""
    B, S, H3 = qkv.shape
    H = H3 // 3
    assert H % 128 == 0, "hidden_size must be a multiple of 128 for the fused-QKV BlockSpecs"
    dh = H // n_heads
    tq = _tile(S, 512, 8)
    nq = S // tq
    cost = pl.CostEstimate(
        flops=4 * B * n_heads * S * S * dh,
        transcendentals=B * n_heads * S * S,
        bytes_accessed=2 * B * S * 3 * H + 2 * B * S * H + 4 * B * S,
    )
    return pl.pallas_call(
        functools.partial(_attn_kernel, n_heads=n_heads, dh=dh),
        out_shape=jax.ShapeDtypeStruct((B, S, H), qkv.dtype),
        grid_spec=pltpu.PrefetchScalarGridSpec(
            num_scalar_prefetch=0,
            grid=(B, nq),
            in_specs=[
                pl.BlockSpec((1, tq, H), lambda b, qi: (b, qi, 0)),   # Q tile
                pl.BlockSpec((1, S, H), lambda b, qi: (b, 0, 1)),     # K full seq (resident in qi)
                pl.BlockSpec((1, S, H), lambda b, qi: (b, 0, 2)),     # V full seq (resident in qi)
                pl.BlockSpec((1, 1, S), lambda b, qi: (b, 0, 0)),     # (B,1,S) mask, per batch
            ],
            out_specs=pl.BlockSpec((1, tq, H), lambda b, qi: (b, qi, 0)),
        ),
        compiler_params=pltpu.CompilerParams(
            dimension_semantics=("parallel", "parallel"),
            vmem_limit_bytes=VMEM_LIMIT,
        ),
        cost_estimate=cost,
    )(qkv, qkv, qkv, ext_mask)


# --------------------------- fused pooler + classifier ---------------------------


def _pool_cls_kernel(x_ref, pw_ref, pb_ref, cw_ref, cb_ref, o_ref):
    pooled = jnp.tanh(
        jnp.dot(x_ref[...], pw_ref[...], preferred_element_type=jnp.float32)
        + pb_ref[...].astype(jnp.float32)
    )
    logits = (
        jnp.dot(pooled.astype(cw_ref.dtype), cw_ref[...], preferred_element_type=jnp.float32)
        + cb_ref[...].astype(jnp.float32)
    )
    o_ref[...] = logits


def pooler_classifier(first_tok, pw, pb, cw_pad, cb_pad, num_labels):
    """first_tok: (B, H).  cw_pad/cb_pad are padded to a 128-lane label multiple at init."""
    B, H = first_tok.shape
    Lp = cw_pad.shape[1]
    vmem = pl.BlockSpec(memory_space=pltpu.MemorySpace.VMEM)
    logits = pl.pallas_call(
        _pool_cls_kernel,
        out_shape=jax.ShapeDtypeStruct((B, Lp), jnp.float32),
        in_specs=[vmem, vmem, vmem, vmem, vmem],
        out_specs=vmem,
    )(first_tok, pw, pb.reshape(1, H), cw_pad, cb_pad)
    return logits[:, :num_labels]


# ------------------------------ parameter init ------------------------------


def init_params(key, cfg):
    std = cfg["initializer_range"]
    H, I = cfg["hidden_size"], cfg["intermediate_size"]
    L = cfg["num_labels"]
    Lp = _round_up(L, 128)
    attn_scale = 1.0 / math.sqrt(H // cfg["num_attention_heads"])

    def nrm(k, shape):
        return jax.random.normal(k, shape, jnp.float32) * std

    keys = iter(jax.random.split(key, 5 + 6 * cfg["num_hidden_layers"]))
    params = {
        "word_emb": nrm(next(keys), (cfg["vocab_size"], H)).astype(jnp.bfloat16),
        "pos_emb": nrm(next(keys), (cfg["max_position_embeddings"], H)).astype(jnp.bfloat16),
        "type_emb": nrm(next(keys), (cfg["type_vocab_size"], H)).astype(jnp.bfloat16),
        "emb_ln_g": jnp.ones((H,), jnp.float32),
        "emb_ln_b": jnp.zeros((H,), jnp.float32),
        "pooler_w": nrm(next(keys), (H, H)).astype(jnp.bfloat16),
        "pooler_b": jnp.zeros((H,), jnp.float32),
        # classifier weight/bias padded once (at init) to a 128-lane label multiple
        "cls_w": jnp.zeros((H, Lp), jnp.float32).at[:, :L].set(nrm(next(keys), (H, L))).astype(
            jnp.bfloat16
        ),
        "cls_b": jnp.zeros((1, Lp), jnp.float32),
        "layers": [],
    }
    for _ in range(cfg["num_hidden_layers"]):
        # 1/sqrt(dh) softmax scale folded into the Q projection: x @ (s*Wq) + s*bq == s*(x@Wq + bq)
        qw = nrm(next(keys), (H, H)) * attn_scale
        kw = nrm(next(keys), (H, H))
        vw = nrm(next(keys), (H, H))
        params["layers"].append(
            {
                # fused QKV projection: columns are [q | k | v]
                "qkv_w": jnp.concatenate([qw, kw, vw], axis=1).astype(jnp.bfloat16),
                "qkv_b": jnp.zeros((3 * H,), jnp.float32),
                "ao_w": nrm(next(keys), (H, H)).astype(jnp.bfloat16),
                "ao_b": jnp.zeros((H,), jnp.float32),
                "attn_ln_g": jnp.ones((H,), jnp.float32),
                "attn_ln_b": jnp.zeros((H,), jnp.float32),
                "i_w": nrm(next(keys), (H, I)).astype(jnp.bfloat16),
                "i_b": jnp.zeros((I,), jnp.float32),
                "o_w": nrm(next(keys), (I, H)).astype(jnp.bfloat16),
                "o_b": jnp.zeros((H,), jnp.float32),
                "out_ln_g": jnp.ones((H,), jnp.float32),
                "out_ln_b": jnp.zeros((H,), jnp.float32),
            }
        )
    return params


# --------------------------------- forward ----------------------------------


def bert_forward(params, cfg, input_ids, token_type_ids=None, attention_mask=None):
    B, S = input_ids.shape
    H = cfg["hidden_size"]
    nH = cfg["num_attention_heads"]

    if attention_mask is None:
        attention_mask = jnp.ones_like(input_ids)
    if token_type_ids is None:
        token_type_ids = jnp.zeros_like(input_ids)

    # extended attention mask kept compact: (B, 1, S); per-batch view comes from the BlockSpec
    ext_mask = ((1.0 - attention_mask.astype(jnp.float32)) * -10000.0)[:, None, :]

    # ----- embeddings (gathers are glue; LayerNorm is a Pallas kernel) -----
    pos_ids = jnp.arange(S, dtype=jnp.int32)
    emb = (
        params["word_emb"][input_ids]
        + params["pos_emb"][pos_ids][None, :, :]
        + params["type_emb"][token_type_ids]
    ).astype(jnp.bfloat16)
    x2d = layer_norm(emb.reshape(B * S, H), params["emb_ln_g"], params["emb_ln_b"])
    # Dropout layers are identity at inference and are skipped.

    for lp in params["layers"]:
        # fused QKV projection: one full-K matmul against [H, 3H]  ->  (B*S, 3H)
        qkv = matmul_bias_act(x2d, lp["qkv_w"], lp["qkv_b"])
        # head split/merge lives inside the attention BlockSpecs; this reshape is free
        ctx = mha_attention(qkv.reshape(B, S, 3 * H), ext_mask, nH)            # (B, S, H)
        # attention output projection + residual + LayerNorm fused into one kernel
        x2d = matmul_bias_res_ln(ctx.reshape(B * S, H), lp["ao_w"], lp["ao_b"], x2d,
                                 lp["attn_ln_g"], lp["attn_ln_b"])
        # FFN: H->I with fused GELU, then I->H with fused residual + LayerNorm
        inter = matmul_bias_act(x2d, lp["i_w"], lp["i_b"], activation="gelu")
        x2d = matmul_bias_res_ln(inter, lp["o_w"], lp["o_b"], x2d,
                                 lp["out_ln_g"], lp["out_ln_b"])

    # pooler (first token -> Linear -> tanh) + classifier, fused in one small kernel
    first_tok = x2d.reshape(B, S, H)[:, 0, :]
    logits = pooler_classifier(first_tok, params["pooler_w"], params["pooler_b"],
                               params["cls_w"], params["cls_b"], cfg["num_labels"])
    return {"output": logits}


# ----------------------------------- main ------------------------------------


if __name__ == "__main__":
    cfg = dict(
        vocab_size=128,
        hidden_size=128,          # multiple of 128 (lane width) required by the fused-QKV specs
        num_hidden_layers=2,
        num_attention_heads=4,
        intermediate_size=256,
        max_position_embeddings=64,
        type_vocab_size=2,
        num_labels=8,
        initializer_range=0.02,
    )

    key = jax.random.PRNGKey(0)
    k_param, k_ids = jax.random.split(key)

    B, S = 2, 16
    params = init_params(k_param, cfg)
    input_ids = jax.random.randint(k_ids, (B, S), 0, cfg["vocab_size"], dtype=jnp.int32)
    token_type_ids = jnp.zeros((B, S), jnp.int32)
    attention_mask = jnp.ones((B, S), jnp.int32)

    fwd = jax.jit(lambda p, ids, tt, am: bert_forward(p, cfg, ids, tt, am))
    out = fwd(params, input_ids, token_type_ids, attention_mask)
    logits = jax.block_until_ready(out["output"])
    assert logits.shape == (B, cfg["num_labels"]), logits.shape
    assert bool(jnp.all(jnp.isfinite(logits)))
    print("KERNEL_OK")
</pallas_src>

<mosaic_0001>
module attributes {stable_mosaic.version = 11 : i64} {
  func.func @_ln_kernel(%arg0: i32, %arg1: memref<32x128xbf16, #tpu.memory_space<vmem>>, %arg2: memref<1x128xf32, #tpu.memory_space<vmem>>, %arg3: memref<1x128xf32, #tpu.memory_space<vmem>>, %arg4: memref<32x128xbf16, #tpu.memory_space<vmem>>) attributes {dimension_semantics = [#tpu.dimension_semantics<parallel>], iteration_bounds = array<i64: 1>, scalar_prefetch = 0 : i64, scratch_operands = 0 : i64, tpu.core_type = #tpu.core_type<tc>, window_params = [{transform_indices = @transform_0, window_bounds = array<i64: 32, 128>}, {pipeline_mode = #tpu.pipeline_mode<synchronous>, transform_indices = @transform_1, window_bounds = array<i64: 1, 128>}, {pipeline_mode = #tpu.pipeline_mode<synchronous>, transform_indices = @transform_2, window_bounds = array<i64: 1, 128>}, {transform_indices = @transform_3, window_bounds = array<i64: 32, 128>}]} {
    %c0 = arith.constant 0 : index
    %c0_0 = arith.constant 0 : index
    %0 = vector.load %arg1[%c0, %c0_0] : memref<32x128xbf16, #tpu.memory_space<vmem>>, vector<32x128xbf16>
    %1 = arith.extf %0 : vector<32x128xbf16> to vector<32x128xf32>
    %cst = arith.constant dense<0.000000e+00> : vector<32xf32>
    %2 = vector.multi_reduction <add>, %1, %cst [1] : vector<32x128xf32> to vector<32xf32>
    %3 = vector.shape_cast %2 : vector<32xf32> to vector<32x1xf32>
    %cst_1 = arith.constant 1.280000e+02 : f32
    %4 = vector.broadcast %cst_1 : f32 to vector<32x1xf32>
    %5 = arith.divf %3, %4 : vector<32x1xf32>
    %6 = vector.broadcast %5 : vector<32x1xf32> to vector<32x128xf32>
    %7 = arith.subf %1, %6 : vector<32x128xf32>
    %8 = arith.mulf %7, %7 : vector<32x128xf32>
    %cst_2 = arith.constant dense<0.000000e+00> : vector<32xf32>
    %9 = vector.multi_reduction <add>, %8, %cst_2 [1] : vector<32x128xf32> to vector<32xf32>
    %10 = vector.shape_cast %9 : vector<32xf32> to vector<32x1xf32>
    %cst_3 = arith.constant 1.280000e+02 : f32
    %11 = vector.broadcast %cst_3 : f32 to vector<32x1xf32>
    %12 = arith.divf %10, %11 : vector<32x1xf32>
    %13 = vector.broadcast %5 : vector<32x1xf32> to vector<32x128xf32>
    %14 = arith.subf %1, %13 : vector<32x128xf32>
    %cst_4 = arith.constant 9.99999996E-13 : f32
    %15 = vector.broadcast %cst_4 : f32 to vector<32x1xf32>
    %16 = arith.addf %12, %15 : vector<32x1xf32>
    %17 = math.rsqrt %16 : vector<32x1xf32>
    %18 = vector.broadcast %17 : vector<32x1xf32> to vector<32x128xf32>
    %19 = arith.mulf %14, %18 : vector<32x128xf32>
    %c0_5 = arith.constant 0 : index
    %c0_6 = arith.constant 0 : index
    %20 = vector.load %arg2[%c0_5, %c0_6] : memref<1x128xf32, #tpu.memory_space<vmem>>, vector<1x128xf32>
    %21 = vector.broadcast %20 : vector<1x128xf32> to vector<32x128xf32>
    %22 = arith.mulf %19, %21 : vector<32x128xf32>
    %c0_7 = arith.constant 0 : index
    %c0_8 = arith.constant 0 : index
    %23 = vector.load %arg3[%c0_7, %c0_8] : memref<1x128xf32, #tpu.memory_space<vmem>>, vector<1x128xf32>
    %24 = vector.broadcast %23 : vector<1x128xf32> to vector<32x128xf32>
    %25 = arith.addf %22, %24 : vector<32x128xf32>
    %26 = arith.truncf %25 : vector<32x128xf32> to vector<32x128xbf16>
    %c0_9 = arith.constant 0 : index
    %c0_10 = arith.constant 0 : index
    %27 = vector.load %arg4[%c0_9, %c0_10] : memref<32x128xbf16, #tpu.memory_space<vmem>>, vector<32x128xbf16>
    tpu.vector_store %arg4[%c0_9, %c0_10], %26 {strides = array<i32>} : memref<32x128xbf16, #tpu.memory_space<vmem>>, vector<32x128xbf16>,
    return
  }
  func.func @transform_0(%arg0: i32) -> (i32, i32) {
    %c0_i32 = arith.constant 0 : i32
    %c0_i32_0 = arith.constant 0 : i32
    return %arg0, %c0_i32 : i32, i32
  }
  func.func @transform_1(%arg0: i32) -> (i32, i32) {
    %c0_i32 = arith.constant 0 : i32
    %c0_i32_0 = arith.constant 0 : i32
    %c0_i32_1 = arith.constant 0 : i32
    return %c0_i32, %c0_i32_0 : i32, i32
  }
  func.func @transform_2(%arg0: i32) -> (i32, i32) {
    %c0_i32 = arith.constant 0 : i32
    %c0_i32_0 = arith.constant 0 : i32
    %c0_i32_1 = arith.constant 0 : i32
    return %c0_i32, %c0_i32_0 : i32, i32
  }
  func.func @transform_3(%arg0: i32) -> (i32, i32) {
    %c0_i32 = arith.constant 0 : i32
    %c0_i32_0 = arith.constant 0 : i32
    return %arg0, %c0_i32 : i32, i32
  }
}

module attributes {stable_mosaic.version = 11 : i64} {
  func.func @_mm_bias_act_kernel(%arg0: i32, %arg1: i32, %arg2: memref<32x128xbf16, #tpu.memory_space<vmem>>, %arg3: memref<128x384xbf16, #tpu.memory_space<vmem>>, %arg4: memref<1x384xf32, #tpu.memory_space<vmem>>, %arg5: memref<32x384xbf16, #tpu.memory_space<vmem>>) attributes {dimension_semantics = [#tpu.dimension_semantics<parallel>, #tpu.dimension_semantics<parallel>], iteration_bounds = array<i64: 1, 1>, scalar_prefetch = 0 : i64, scratch_operands = 0 : i64, tpu.core_type = #tpu.core_type<tc>, window_params = [{transform_indices = @transform_0, window_bounds = array<i64: 32, 128>}, {transform_indices = @transform_1, window_bounds = array<i64: 128, 384>}, {transform_indices = @transform_2, window_bounds = array<i64: 1, 384>}, {transform_indices = @transform_3, window_bounds = array<i64: 32, 384>}]} {
    %c0 = arith.constant 0 : index
    %c0_0 = arith.constant 0 : index
    %0 = vector.load %arg2[%c0, %c0_0] : memref<32x128xbf16, #tpu.memory_space<vmem>>, vector<32x128xbf16>
    %c0_1 = arith.constant 0 : index
    %c0_2 = arith.constant 0 : index
    %1 = vector.load %arg3[%c0_1, %c0_2] : memref<128x384xbf16, #tpu.memory_space<vmem>>, vector<128x384xbf16>
    %cst = arith.constant dense<0.000000e+00> : vector<32x384xf32>
    %2 = tpu.matmul %0, %1, %cst {dimension_numbers = #tpu.dot_dimension_numbers<[1], [0], [0], [1], [0, 0, 1, 1], [], []>} : vector<32x128xbf16>, vector<128x384xbf16>, vector<32x384xf32> -> vector<32x384xf32>
    %c0_3 = arith.constant 0 : index
    %c0_4 = arith.constant 0 : index
    %3 = vector.load %arg4[%c0_3, %c0_4] : memref<1x384xf32, #tpu.memory_space<vmem>>, vector<1x384xf32>
    %4 = vector.broadcast %3 : vector<1x384xf32> to vector<32x384xf32>
    %5 = arith.addf %2, %4 : vector<32x384xf32>
    %6 = arith.truncf %5 : vector<32x384xf32> to vector<32x384xbf16>
    %c0_5 = arith.constant 0 : index
    %c0_6 = arith.constant 0 : index
    %7 = vector.load %arg5[%c0_5, %c0_6] : memref<32x384xbf16, #tpu.memory_space<vmem>>, vector<32x384xbf16>
    tpu.vector_store %arg5[%c0_5, %c0_6], %6 {strides = array<i32>} : memref<32x384xbf16, #tpu.memory_space<vmem>>, vector<32x384xbf16>,
    return
  }
  func.func @transform_0(%arg0: i32, %arg1: i32) -> (i32, i32) {
    %c0_i32 = arith.constant 0 : i32
    %c0_i32_0 = arith.constant 0 : i32
    return %arg1, %c0_i32 : i32, i32
  }
  func.func @transform_1(%arg0: i32, %arg1: i32) -> (i32, i32) {
    %c0_i32 = arith.constant 0 : i32
    %c0_i32_0 = arith.constant 0 : i32
    return %c0_i32, %arg0 : i32, i32
  }
  func.func @transform_2(%arg0: i32, %arg1: i32) -> (i32, i32) {
    %c0_i32 = arith.constant 0 : i32
    %c0_i32_0 = arith.constant 0 : i32
    return %c0_i32, %arg0 : i32, i32
  }
  func.func @transform_3(%arg0: i32, %arg1: i32) -> (i32, i32) {
    %c0_i32 = arith.constant 0 : i32
    return %arg1, %arg0 : i32, i32
  }
}

module attributes {stable_mosaic.version = 11 : i64} {
  func.func @_attn_kernel(%arg0: i32, %arg1: i32, %arg2: memref<1x16x128xbf16, #tpu.memory_space<vmem>>, %arg3: memref<1x16x128xbf16, #tpu.memory_space<vmem>>, %arg4: memref<1x16x128xbf16, #tpu.memory_space<vmem>>, %arg5: memref<1x1x16xf32, #tpu.memory_space<vmem>>, %arg6: memref<1x16x128xbf16, #tpu.memory_space<vmem>>) attributes {dimension_semantics = [#tpu.dimension_semantics<parallel>, #tpu.dimension_semantics<parallel>], iteration_bounds = array<i64: 2, 1>, scalar_prefetch = 0 : i64, scratch_operands = 0 : i64, tpu.core_type = #tpu.core_type<tc>, window_params = [{transform_indices = @transform_0, window_bounds = array<i64: 1, 16, 128>}, {transform_indices = @transform_1, window_bounds = array<i64: 1, 16, 128>}, {transform_indices = @transform_2, window_bounds = array<i64: 1, 16, 128>}, {transform_indices = @transform_3, window_bounds = array<i64: 1, 1, 16>}, {transform_indices = @transform_4, window_bounds = array<i64: 1, 16, 128>}]} {
    %c0 = arith.constant 0 : index
    %c0_0 = arith.constant 0 : index
    %c0_1 = arith.constant 0 : index
    %0 = vector.load %arg2[%c0, %c0_0, %c0_1] : memref<1x16x128xbf16, #tpu.memory_space<vmem>>, vector<1x16x128xbf16>
    %1 = vector.shape_cast %0 : vector<1x16x128xbf16> to vector<16x128xbf16>
    %c0_2 = arith.constant 0 : index
    %c0_3 = arith.constant 0 : index
    %c0_4 = arith.constant 0 : index
    %2 = vector.load %arg3[%c0_2, %c0_3, %c0_4] : memref<1x16x128xbf16, #tpu.memory_space<vmem>>, vector<1x16x128xbf16>
    %3 = vector.shape_cast %2 : vector<1x16x128xbf16> to vector<16x128xbf16>
    %c0_5 = arith.constant 0 : index
    %c0_6 = arith.constant 0 : index
    %c0_7 = arith.constant 0 : index
    %4 = vector.load %arg4[%c0_5, %c0_6, %c0_7] : memref<1x16x128xbf16, #tpu.memory_space<vmem>>, vector<1x16x128xbf16>
    %5 = vector.shape_cast %4 : vector<1x16x128xbf16> to vector<16x128xbf16>
    %c0_8 = arith.constant 0 : index
    %c0_9 = arith.constant 0 : index
    %c0_10 = arith.constant 0 : index
    %6 = vector.load %arg5[%c0_8, %c0_9, %c0_10] : memref<1x1x16xf32, #tpu.memory_space<vmem>>, vector<1x1x16xf32>
    %7 = vector.shape_cast %6 : vector<1x1x16xf32> to vector<1x16xf32>
    %8 = vector.extract_strided_slice %1 {offsets = [0, 0], sizes = [16, 32], strides = [1, 1]} : vector<16x128xbf16> to vector<16x32xbf16>
    %9 = vector.extract_strided_slice %3 {offsets = [0, 0], sizes = [16, 32], strides = [1, 1]} : vector<16x128xbf16> to vector<16x32xbf16>
    %10 = vector.extract_strided_slice %5 {offsets = [0, 0], sizes = [16, 32], strides = [1, 1]} : vector<16x128xbf16> to vector<16x32xbf16>
    %cst = arith.constant dense<0.000000e+00> : vector<16x16xf32>
    %11 = tpu.matmul %8, %9, %cst {dimension_numbers = #tpu.dot_dimension_numbers<[1], [1], [0], [0], [0, 0, 1, 0], [], []>} : vector<16x32xbf16>, vector<16x32xbf16>, vector<16x16xf32> -> vector<16x16xf32>
    %12 = vector.broadcast %7 : vector<1x16xf32> to vector<16x16xf32>
    %13 = arith.addf %11, %12 : vector<16x16xf32>
    %cst_11 = arith.constant dense<0xFF800000> : vector<16xf32>
    %14 = vector.multi_reduction <maximumf>, %13, %cst_11 [1] : vector<16x16xf32> to vector<16xf32>
    %15 = vector.shape_cast %14 : vector<16xf32> to vector<16x1xf32>
    %16 = vector.broadcast %15 : vector<16x1xf32> to vector<16x16xf32>
    %17 = arith.subf %13, %16 : vector<16x16xf32>
    %18 = math.exp %17 : vector<16x16xf32>
    %cst_12 = arith.constant dense<0.000000e+00> : vector<16xf32>
    %19 = vector.multi_reduction <add>, %18, %cst_12 [1] : vector<16x16xf32> to vector<16xf32>
    %20 = vector.shape_cast %19 : vector<16xf32> to vector<16x1xf32>
    %21 = arith.truncf %18 : vector<16x16xf32> to vector<16x16xbf16>
    %cst_13 = arith.constant dense<0.000000e+00> : vector<16x32xf32>
    %22 = tpu.matmul %21, %10, %cst_13 {dimension_numbers = #tpu.dot_dimension_numbers<[1], [0], [0], [1], [0, 0, 1, 1], [], []>} : vector<16x16xbf16>, vector<16x32xbf16>, vector<16x32xf32> -> vector<16x32xf32>
    %23 = tpu.reciprocal %20 {approx = true} : vector<16x1xf32> -> vector<16x1xf32>
    %24 = vector.broadcast %23 : vector<16x1xf32> to vector<16x32xf32>
    %25 = arith.mulf %22, %24 : vector<16x32xf32>
    %26 = vector.extract_strided_slice %1 {offsets = [0, 32], sizes = [16, 32], strides = [1, 1]} : vector<16x128xbf16> to vector<16x32xbf16>
    %27 = vector.extract_strided_slice %3 {offsets = [0, 32], sizes = [16, 32], strides = [1, 1]} : vector<16x128xbf16> to vector<16x32xbf16>
    %28 = vector.extract_strided_slice %5 {offsets = [0, 32], sizes = [16, 32], strides = [1, 1]} : vector<16x128xbf16> to vector<16x32xbf16>
    %cst_14 = arith.constant dense<0.000000e+00> : vector<16x16xf32>
    %29 = tpu.matmul %26, %27, %cst_14 {dimension_numbers = #tpu.dot_dimension_numbers<[1], [1], [0], [0], [0, 0, 1, 0], [], []>} : vector<16x32xbf16>, vector<16x32xbf16>, vector<16x16xf32> -> vector<16x16xf32>
    %30 = vector.broadcast %7 : vector<1x16xf32> to vector<16x16xf32>
    %31 = arith.addf %29, %30 : vector<16x16xf32>
    %cst_15 = arith.constant dense<0xFF800000> : vector<16xf32>
    %32 = vector.multi_reduction <maximumf>, %31, %cst_15 [1] : vector<16x16xf32> to vector<16xf32>
    %33 = vector.shape_cast %32 : vector<16xf32> to vector<16x1xf32>
    %34 = vector.broadcast %33 : vector<16x1xf32> to vector<16x16xf32>
    %35 = arith.subf %31, %34 : vector<16x16xf32>
    %36 = math.exp %35 : vector<16x16xf32>
    %cst_16 = arith.constant dense<0.000000e+00> : vector<16xf32>
    %37 = vector.multi_reduction <add>, %36, %cst_16 [1] : vector<16x16xf32> to vector<16xf32>
    %38 = vector.shape_cast %37 : vector<16xf32> to vector<16x1xf32>
    %39 = arith.truncf %36 : vector<16x16xf32> to vector<16x16xbf16>
    %cst_17 = arith.constant dense<0.000000e+00> : vector<16x32xf32>
    %40 = tpu.matmul %39, %28, %cst_17 {dimension_numbers = #tpu.dot_dimension_numbers<[1], [0], [0], [1], [0, 0, 1, 1], [], []>} : vector<16x16xbf16>, vector<16x32xbf16>, vector<16x32xf32> -> vector<16x32xf32>
    %41 = tpu.reciprocal %38 {approx = true} : vector<16x1xf32> -> vector<16x1xf32>
    %42 = vector.broadcast %41 : vector<16x1xf32> to vector<16x32xf32>
    %43 = arith.mulf %40, %42 : vector<16x32xf32>
    %44 = vector.extract_strided_slice %1 {offsets = [0, 64], sizes = [16, 32], strides = [1, 1]} : vector<16x128xbf16> to vector<16x32xbf16>
    %45 = vector.extract_strided_slice %3 {offsets = [0, 64], sizes = [16, 32], strides = [1, 1]} : vector<16x128xbf16> to vector<16x32xbf16>
    %46 = vector.extract_strided_slice %5 {offsets = [0, 64], sizes = [16, 32], strides = [1, 1]} : vector<16x128xbf16> to vector<16x32xbf16>
    %cst_18 = arith.constant dense<0.000000e+00> : vector<16x16xf32>
    %47 = tpu.matmul %44, %45, %cst_18 {dimension_numbers = #tpu.dot_dimension_numbers<[1], [1], [0], [0], [0, 0, 1, 0], [], []>} : vector<16x32xbf16>, vector<16x32xbf16>, vector<16x16xf32> -> vector<16x16xf32>
    %48 = vector.broadcast %7 : vector<1x16xf32> to vector<16x16xf32>
    %49 = arith.addf %47, %48 : vector<16x16xf32>
    %cst_19 = arith.constant dense<0xFF800000> : vector<16xf32>
    %50 = vector.multi_reduction <maximumf>, %49, %cst_19 [1] : vector<16x16xf32> to vector<16xf32>
    %51 = vector.shape_cast %50 : vector<16xf32> to vector<16x1xf32>
    %52 = vector.broadcast %51 : vector<16x1xf32> to vector<16x16xf32>
    %53 = arith.subf %49, %52 : vector<16x16xf32>
    %54 = math.exp %53 : vector<16x16xf32>
    %cst_20 = arith.constant dense<0.000000e+00> : vector<16xf32>
    %55 = vector.multi_reduction <add>, %54, %cst_20 [1] : vector<16x16xf32> to vector<16xf32>
    %56 = vector.shape_cast %55 : vector<16xf32> to vector<16x1xf32>
    %57 = arith.truncf %54 : vector<16x16xf32> to vector<16x16xbf16>
    %cst_21 = arith.constant dense<0.000000e+00> : vector<16x32xf32>
    %58 = tpu.matmul %57, %46, %cst_21 {dimension_numbers = #tpu.dot_dimension_numbers<[1], [0], [0], [1], [0, 0, 1, 1], [], []>} : vector<16x16xbf16>, vector<16x32xbf16>, vector<16x32xf32> -> vector<16x32xf32>
    %59 = tpu.reciprocal %56 {approx = true} : vector<16x1xf32> -> vector<16x1xf32>
    %60 = vector.broadcast %59 : vector<16x1xf32> to vector<16x32xf32>
    %61 = arith.mulf %58, %60 : vector<16x32xf32>
    %62 = vector.extract_strided_slice %1 {offsets = [0, 96], sizes = [16, 32], strides = [1, 1]} : vector<16x128xbf16> to vector<16x32xbf16>
    %63 = vector.extract_strided_slice %3 {offsets = [0, 96], sizes = [16, 32], strides = [1, 1]} : vector<16x128xbf16> to vector<16x32xbf16>
    %64 = vector.extract_strided_slice %5 {offsets = [0, 96], sizes = [16, 32], strides = [1, 1]} : vector<16x128xbf16> to vector<16x32xbf16>
    %cst_22 = arith.constant dense<0.000000e+00> : vector<16x16xf32>
    %65 = tpu.matmul %62, %63, %cst_22 {dimension_numbers = #tpu.dot_dimension_numbers<[1], [1], [0], [0], [0, 0, 1, 0], [], []>} : vector<16x32xbf16>, vector<16x32xbf16>, vector<16x16xf32> -> vector<16x16xf32>
    %66 = vector.broadcast %7 : vector<1x16xf32> to vector<16x16xf32>
    %67 = arith.addf %65, %66 : vector<16x16xf32>
    %cst_23 = arith.constant dense<0xFF800000> : vector<16xf32>
    %68 = vector.multi_reduction <maximumf>, %67, %cst_23 [1] : vector<16x16xf32> to vector<16xf32>
    %69 = vector.shape_cast %68 : vector<16xf32> to vector<16x1xf32>
    %70 = vector.broadcast %69 : vector<16x1xf32> to vector<16x16xf32>
    %71 = arith.subf %67, %70 : vector<16x16xf32>
    %72 = math.exp %71 : vector<16x16xf32>
    %cst_24 = arith.constant dense<0.000000e+00> : vector<16xf32>
    %73 = vector.multi_reduction <add>, %72, %cst_24 [1] : vector<16x16xf32> to vector<16xf32>
    %74 = vector.shape_cast %73 : vector<16xf32> to vector<16x1xf32>
    %75 = arith.truncf %72 : vector<16x16xf32> to vector<16x16xbf16>
    %cst_25 = arith.constant dense<0.000000e+00> : vector<16x32xf32>
    %76 = tpu.matmul %75, %64, %cst_25 {dimension_numbers = #tpu.dot_dimension_numbers<[1], [0], [0], [1], [0, 0, 1, 1], [], []>} : vector<16x16xbf16>, vector<16x32xbf16>, vector<16x32xf32> -> vector<16x32xf32>
    %77 = tpu.reciprocal %74 {approx = true} : vector<16x1xf32> -> vector<16x1xf32>
    %78 = vector.broadcast %77 : vector<16x1xf32> to vector<16x32xf32>
    %79 = arith.mulf %76, %78 : vector<16x32xf32>
    %80 = tpu.concatenate %25, %43, %61, %79 in 1 : vector<16x32xf32>, vector<16x32xf32>, vector<16x32xf32>, vector<16x32xf32> -> vector<16x128xf32>
    %81 = arith.truncf %80 : vector<16x128xf32> to vector<16x128xbf16>
    %c0_26 = arith.constant 0 : index
    %c0_27 = arith.constant 0 : index
    %c0_28 = arith.constant 0 : index
    %82 = vector.load %arg6[%c0_26, %c0_27, %c0_28] : memref<1x16x128xbf16, #tpu.memory_space<vmem>>, vector<1x16x128xbf16>
    %83 = vector.shape_cast %82 : vector<1x16x128xbf16> to vector<16x128xbf16>
    %84 = vector.shape_cast %81 : vector<16x128xbf16> to vector<1x16x128xbf16>
    tpu.vector_store %arg6[%c0_26, %c0_27, %c0_28], %84 {strides = array<i32>} : memref<1x16x128xbf16, #tpu.memory_space<vmem>>, vector<1x16x128xbf16>,
    return
  }
  func.func @transform_0(%arg0: i32, %arg1: i32) -> (i32, i32, i32) {
    %c0_i32 = arith.constant 0 : i32
    %c0_i32_0 = arith.constant 0 : i32
    return %arg0, %arg1, %c0_i32 : i32, i32, i32
  }
  func.func @transform_1(%arg0: i32, %arg1: i32) -> (i32, i32, i32) {
    %c0_i32 = arith.constant 0 : i32
    %c1_i32 = arith.constant 1 : i32
    %c0_i32_0 = arith.constant 0 : i32
    return %arg0, %c0_i32, %c1_i32 : i32, i32, i32
  }
  func.func @transform_2(%arg0: i32, %arg1: i32) -> (i32, i32, i32) {
    %c0_i32 = arith.constant 0 : i32
    %c2_i32 = arith.constant 2 : i32
    %c0_i32_0 = arith.constant 0 : i32
    return %arg0, %c0_i32, %c2_i32 : i32, i32, i32
  }
  func.func @transform_3(%arg0: i32, %arg1: i32) -> (i32, i32, i32) {
    %c0_i32 = arith.constant 0 : i32
    %c0_i32_0 = arith.constant 0 : i32
    %c0_i32_1 = arith.constant 0 : i32
    return %arg0, %c0_i32, %c0_i32_0 : i32, i32, i32
  }
  func.func @transform_4(%arg0: i32, %arg1: i32) -> (i32, i32, i32) {
    %c0_i32 = arith.constant 0 : i32
    %c0_i32_0 = arith.constant 0 : i32
    return %arg0, %arg1, %c0_i32 : i32, i32, i32
  }
}

module attributes {stable_mosaic.version = 11 : i64} {
  func.func @_mm_bias_res_ln_kernel(%arg0: i32, %arg1: memref<32x128xbf16, #tpu.memory_space<vmem>>, %arg2: memref<128x128xbf16, #tpu.memory_space<vmem>>, %arg3: memref<1x128xf32, #tpu.memory_space<vmem>>, %arg4: memref<32x128xbf16, #tpu.memory_space<vmem>>, %arg5: memref<1x128xf32, #tpu.memory_space<vmem>>, %arg6: memref<1x128xf32, #tpu.memory_space<vmem>>, %arg7: memref<32x128xbf16, #tpu.memory_space<vmem>>) attributes {dimension_semantics = [#tpu.dimension_semantics<parallel>], iteration_bounds = array<i64: 1>, scalar_prefetch = 0 : i64, scratch_operands = 0 : i64, tpu.core_type = #tpu.core_type<tc>, window_params = [{transform_indices = @transform_0, window_bounds = array<i64: 32, 128>}, {pipeline_mode = #tpu.pipeline_mode<synchronous>, transform_indices = @transform_1, window_bounds = array<i64: 128, 128>}, {pipeline_mode = #tpu.pipeline_mode<synchronous>, transform_indices = @transform_2, window_bounds = array<i64: 1, 128>}, {transform_indices = @transform_3, window_bounds = array<i64: 32, 128>}, {pipeline_mode = #tpu.pipeline_mode<synchronous>, transform_indices = @transform_4, window_bounds = array<i64: 1, 128>}, {pipeline_mode = #tpu.pipeline_mode<synchronous>, transform_indices = @transform_5, window_bounds = array<i64: 1, 128>}, {transform_indices = @transform_6, window_bounds = array<i64: 32, 128>}]} {
    %c0 = arith.constant 0 : index
    %c0_0 = arith.constant 0 : index
    %0 = vector.load %arg1[%c0, %c0_0] : memref<32x128xbf16, #tpu.memory_space<vmem>>, vector<32x128xbf16>
    %c0_1 = arith.constant 0 : index
    %c0_2 = arith.constant 0 : index
    %1 = vector.load %arg2[%c0_1, %c0_2] : memref<128x128xbf16, #tpu.memory_space<vmem>>, vector<128x128xbf16>
    %cst = arith.constant dense<0.000000e+00> : vector<32x128xf32>
    %2 = tpu.matmul %0, %1, %cst {dimension_numbers = #tpu.dot_dimension_numbers<[1], [0], [0], [1], [0, 0, 1, 1], [], []>} : vector<32x128xbf16>, vector<128x128xbf16>, vector<32x128xf32> -> vector<32x128xf32>
    %c0_3 = arith.constant 0 : index
    %c0_4 = arith.constant 0 : index
    %3 = vector.load %arg3[%c0_3, %c0_4] : memref<1x128xf32, #tpu.memory_space<vmem>>, vector<1x128xf32>
    %4 = vector.broadcast %3 : vector<1x128xf32> to vector<32x128xf32>
    %5 = arith.addf %2, %4 : vector<32x128xf32>
    %c0_5 = arith.constant 0 : index
    %c0_6 = arith.constant 0 : index
    %6 = vector.load %arg4[%c0_5, %c0_6] : memref<32x128xbf16, #tpu.memory_space<vmem>>, vector<32x128xbf16>
    %7 = arith.extf %6 : vector<32x128xbf16> to vector<32x128xf32>
    %8 = arith.addf %5, %7 : vector<32x128xf32>
    %cst_7 = arith.constant dense<0.000000e+00> : vector<32xf32>
    %9 = vector.multi_reduction <add>, %8, %cst_7 [1] : vector<32x128xf32> to vector<32xf32>
    %10 = vector.shape_cast %9 : vector<32xf32> to vector<32x1xf32>
    %cst_8 = arith.constant 1.280000e+02 : f32
    %11 = vector.broadcast %cst_8 : f32 to vector<32x1xf32>
    %12 = arith.divf %10, %11 : vector<32x1xf32>
    %13 = vector.broadcast %12 : vector<32x1xf32> to vector<32x128xf32>
    %14 = arith.subf %8, %13 : vector<32x128xf32>
    %15 = arith.mulf %14, %14 : vector<32x128xf32>
    %cst_9 = arith.constant dense<0.000000e+00> : vector<32xf32>
    %16 = vector.multi_reduction <add>, %15, %cst_9 [1] : vector<32x128xf32> to vector<32xf32>
    %17 = vector.shape_cast %16 : vector<32xf32> to vector<32x1xf32>
    %cst_10 = arith.constant 1.280000e+02 : f32
    %18 = vector.broadcast %cst_10 : f32 to vector<32x1xf32>
    %19 = arith.divf %17, %18 : vector<32x1xf32>
    %20 = vector.broadcast %12 : vector<32x1xf32> to vector<32x128xf32>
    %21 = arith.subf %8, %20 : vector<32x128xf32>
    %cst_11 = arith.constant 9.99999996E-13 : f32
    %22 = vector.broadcast %cst_11 : f32 to vector<32x1xf32>
    %23 = arith.addf %19, %22 : vector<32x1xf32>
    %24 = math.rsqrt %23 : vector<32x1xf32>
    %25 = vector.broadcast %24 : vector<32x1xf32> to vector<32x128xf32>
    %26 = arith.mulf %21, %25 : vector<32x128xf32>
    %c0_12 = arith.constant 0 : index
    %c0_13 = arith.constant 0 : index
    %27 = vector.load %arg5[%c0_12, %c0_13] : memref<1x128xf32, #tpu.memory_space<vmem>>, vector<1x128xf32>
    %28 = vector.broadcast %27 : vector<1x128xf32> to vector<32x128xf32>
    %29 = arith.mulf %26, %28 : vector<32x128xf32>
    %c0_14 = arith.constant 0 : index
    %c0_15 = arith.constant 0 : index
    %30 = vector.load %arg6[%c0_14, %c0_15] : memref<1x128xf32, #tpu.memory_space<vmem>>, vector<1x128xf32>
    %31 = vector.broadcast %30 : vector<1x128xf32> to vector<32x128xf32>
    %32 = arith.addf %29, %31 : vector<32x128xf32>
    %33 = arith.truncf %32 : vector<32x128xf32> to vector<32x128xbf16>
    %c0_16 = arith.constant 0 : index
    %c0_17 = arith.constant 0 : index
    %34 = vector.load %arg7[%c0_16, %c0_17] : memref<32x128xbf16, #tpu.memory_space<vmem>>, vector<32x128xbf16>
    tpu.vector_store %arg7[%c0_16, %c0_17], %33 {strides = array<i32>} : memref<32x128xbf16, #tpu.memory_space<vmem>>, vector<32x128xbf16>,
    return
  }
  func.func @transform_0(%arg0: i32) -> (i32, i32) {
    %c0_i32 = arith.constant 0 : i32
    %c0_i32_0 = arith.constant 0 : i32
    return %arg0, %c0_i32 : i32, i32
  }
  func.func @transform_1(%arg0: i32) -> (i32, i32) {
    %c0_i32 = arith.constant 0 : i32
    %c0_i32_0 = arith.constant 0 : i32
    %c0_i32_1 = arith.constant 0 : i32
    return %c0_i32, %c0_i32_0 : i32, i32
  }
  func.func @transform_2(%arg0: i32) -> (i32, i32) {
    %c0_i32 = arith.constant 0 : i32
    %c0_i32_0 = arith.constant 0 : i32
    %c0_i32_1 = arith.constant 0 : i32
    return %c0_i32, %c0_i32_0 : i32, i32
  }
  func.func @transform_3(%arg0: i32) -> (i32, i32) {
    %c0_i32 = arith.constant 0 : i32
    %c0_i32_0 = arith.constant 0 : i32
    return %arg0, %c0_i32 : i32, i32
  }
  func.func @transform_4(%arg0: i32) -> (i32, i32) {
    %c0_i32 = arith.constant 0 : i32
    %c0_i32_0 = arith.constant 0 : i32
    %c0_i32_1 = arith.constant 0 : i32
    return %c0_i32, %c0_i32_0 : i32, i32
  }
  func.func @transform_5(%arg0: i32) -> (i32, i32) {
    %c0_i32 = arith.constant 0 : i32
    %c0_i32_0 = arith.constant 0 : i32
    %c0_i32_1 = arith.constant 0 : i32
    return %c0_i32, %c0_i32_0 : i32, i32
  }
  func.func @transform_6(%arg0: i32) -> (i32, i32) {
    %c0_i32 = arith.constant 0 : i32
    %c0_i32_0 = arith.constant 0 : i32
    return %arg0, %c0_i32 : i32, i32
  }
}

module attributes {stable_mosaic.version = 11 : i64} {
  func.func @_mm_bias_act_kernel(%arg0: i32, %arg1: i32, %arg2: memref<32x128xbf16, #tpu.memory_space<vmem>>, %arg3: memref<128x256xbf16, #tpu.memory_space<vmem>>, %arg4: memref<1x256xf32, #tpu.memory_space<vmem>>, %arg5: memref<32x256xbf16, #tpu.memory_space<vmem>>) attributes {dimension_semantics = [#tpu.dimension_semantics<parallel>, #tpu.dimension_semantics<parallel>], iteration_bounds = array<i64: 1, 1>, scalar_prefetch = 0 : i64, scratch_operands = 0 : i64, tpu.core_type = #tpu.core_type<tc>, window_params = [{transform_indices = @transform_0, window_bounds = array<i64: 32, 128>}, {transform_indices = @transform_1, window_bounds = array<i64: 128, 256>}, {transform_indices = @transform_2, window_bounds = array<i64: 1, 256>}, {transform_indices = @transform_3, window_bounds = array<i64: 32, 256>}]} {
    %c0 = arith.constant 0 : index
    %c0_0 = arith.constant 0 : index
    %0 = vector.load %arg2[%c0, %c0_0] : memref<32x128xbf16, #tpu.memory_space<vmem>>, vector<32x128xbf16>
    %c0_1 = arith.constant 0 : index
    %c0_2 = arith.constant 0 : index
    %1 = vector.load %arg3[%c0_1, %c0_2] : memref<128x256xbf16, #tpu.memory_space<vmem>>, vector<128x256xbf16>
    %cst = arith.constant dense<0.000000e+00> : vector<32x256xf32>
    %2 = tpu.matmul %0, %1, %cst {dimension_numbers = #tpu.dot_dimension_numbers<[1], [0], [0], [1], [0, 0, 1, 1], [], []>} : vector<32x128xbf16>, vector<128x256xbf16>, vector<32x256xf32> -> vector<32x256xf32>
    %c0_3 = arith.constant 0 : index
    %c0_4 = arith.constant 0 : index
    %3 = vector.load %arg4[%c0_3, %c0_4] : memref<1x256xf32, #tpu.memory_space<vmem>>, vector<1x256xf32>
    %4 = vector.broadcast %3 : vector<1x256xf32> to vector<32x256xf32>
    %5 = arith.addf %2, %4 : vector<32x256xf32>
    %cst_5 = arith.constant 5.000000e-01 : f32
    %6 = vector.broadcast %cst_5 : f32 to vector<32x256xf32>
    %7 = arith.mulf %6, %5 : vector<32x256xf32>
    %cst_6 = arith.constant 4.471500e-02 : f32
    %8 = vector.broadcast %cst_6 : f32 to vector<32x256xf32>
    %9 = arith.mulf %8, %5 : vector<32x256xf32>
    %10 = arith.mulf %9, %5 : vector<32x256xf32>
    %11 = arith.mulf %10, %5 : vector<32x256xf32>
    %12 = arith.addf %5, %11 : vector<32x256xf32>
    %cst_7 = arith.constant 0.797884583 : f32
    %13 = vector.broadcast %cst_7 : f32 to vector<32x256xf32>
    %14 = arith.mulf %13, %12 : vector<32x256xf32>
    %15 = math.tanh %14 : vector<32x256xf32>
    %cst_8 = arith.constant 1.000000e+00 : f32
    %16 = vector.broadcast %cst_8 : f32 to vector<32x256xf32>
    %17 = arith.addf %16, %15 : vector<32x256xf32>
    %18 = arith.mulf %7, %17 : vector<32x256xf32>
    %19 = arith.truncf %18 : vector<32x256xf32> to vector<32x256xbf16>
    %c0_9 = arith.constant 0 : index
    %c0_10 = arith.constant 0 : index
    %20 = vector.load %arg5[%c0_9, %c0_10] : memref<32x256xbf16, #tpu.memory_space<vmem>>, vector<32x256xbf16>
    tpu.vector_store %arg5[%c0_9, %c0_10], %19 {strides = array<i32>} : memref<32x256xbf16, #tpu.memory_space<vmem>>, vector<32x256xbf16>,
    return
  }
  func.func @transform_0(%arg0: i32, %arg1: i32) -> (i32, i32) {
    %c0_i32 = arith.constant 0 : i32
    %c0_i32_0 = arith.constant 0 : i32
    return %arg1, %c0_i32 : i32, i32
  }
  func.func @transform_1(%arg0: i32, %arg1: i32) -> (i32, i32) {
    %c0_i32 = arith.constant 0 : i32
    %c0_i32_0 = arith.constant 0 : i32
    return %c0_i32, %arg0 : i32, i32
  }
  func.func @transform_2(%arg0: i32, %arg1: i32) -> (i32, i32) {
    %c0_i32 = arith.constant 0 : i32
    %c0_i32_0 = arith.constant 0 : i32
    return %c0_i32, %arg0 : i32, i32
  }
  func.func @transform_3(%arg0: i32, %arg1: i32) -> (i32, i32) {
    %c0_i32 = arith.constant 0 : i32
    return %arg1, %arg0 : i32, i32
  }
}

module attributes {stable_mosaic.version = 11 : i64} {
  func.func @_mm_bias_res_ln_kernel(%arg0: i32, %arg1: memref<32x256xbf16, #tpu.memory_space<vmem>>, %arg2: memref<256x128xbf16, #tpu.memory_space<vmem>>, %arg3: memref<1x128xf32, #tpu.memory_space<vmem>>, %arg4: memref<32x128xbf16, #tpu.memory_space<vmem>>, %arg5: memref<1x128xf32, #tpu.memory_space<vmem>>, %arg6: memref<1x128xf32, #tpu.memory_space<vmem>>, %arg7: memref<32x128xbf16, #tpu.memory_space<vmem>>) attributes {dimension_semantics = [#tpu.dimension_semantics<parallel>], iteration_bounds = array<i64: 1>, scalar_prefetch = 0 : i64, scratch_operands = 0 : i64, tpu.core_type = #tpu.core_type<tc>, window_params = [{transform_indices = @transform_0, window_bounds = array<i64: 32, 256>}, {pipeline_mode = #tpu.pipeline_mode<synchronous>, transform_indices = @transform_1, window_bounds = array<i64: 256, 128>}, {pipeline_mode = #tpu.pipeline_mode<synchronous>, transform_indices = @transform_2, window_bounds = array<i64: 1, 128>}, {transform_indices = @transform_3, window_bounds = array<i64: 32, 128>}, {pipeline_mode = #tpu.pipeline_mode<synchronous>, transform_indices = @transform_4, window_bounds = array<i64: 1, 128>}, {pipeline_mode = #tpu.pipeline_mode<synchronous>, transform_indices = @transform_5, window_bounds = array<i64: 1, 128>}, {transform_indices = @transform_6, window_bounds = array<i64: 32, 128>}]} {
    %c0 = arith.constant 0 : index
    %c0_0 = arith.constant 0 : index
    %0 = vector.load %arg1[%c0, %c0_0] : memref<32x256xbf16, #tpu.memory_space<vmem>>, vector<32x256xbf16>
    %c0_1 = arith.constant 0 : index
    %c0_2 = arith.constant 0 : index
    %1 = vector.load %arg2[%c0_1, %c0_2] : memref<256x128xbf16, #tpu.memory_space<vmem>>, vector<256x128xbf16>
    %cst = arith.constant dense<0.000000e+00> : vector<32x128xf32>
    %2 = tpu.matmul %0, %1, %cst {dimension_numbers = #tpu.dot_dimension_numbers<[1], [0], [0], [1], [0, 0, 1, 1], [], []>} : vector<32x256xbf16>, vector<256x128xbf16>, vector<32x128xf32> -> vector<32x128xf32>
    %c0_3 = arith.constant 0 : index
    %c0_4 = arith.constant 0 : index
    %3 = vector.load %arg3[%c0_3, %c0_4] : memref<1x128xf32, #tpu.memory_space<vmem>>, vector<1x128xf32>
    %4 = vector.broadcast %3 : vector<1x128xf32> to vector<32x128xf32>
    %5 = arith.addf %2, %4 : vector<32x128xf32>
    %c0_5 = arith.constant 0 : index
    %c0_6 = arith.constant 0 : index
    %6 = vector.load %arg4[%c0_5, %c0_6] : memref<32x128xbf16, #tpu.memory_space<vmem>>, vector<32x128xbf16>
    %7 = arith.extf %6 : vector<32x128xbf16> to vector<32x128xf32>
    %8 = arith.addf %5, %7 : vector<32x128xf32>
    %cst_7 = arith.constant dense<0.000000e+00> : vector<32xf32>
    %9 = vector.multi_reduction <add>, %8, %cst_7 [1] : vector<32x128xf32> to vector<32xf32>
    %10 = vector.shape_cast %9 : vector<32xf32> to vector<32x1xf32>
    %cst_8 = arith.constant 1.280000e+02 : f32
    %11 = vector.broadcast %cst_8 : f32 to vector<32x1xf32>
    %12 = arith.divf %10, %11 : vector<32x1xf32>
    %13 = vector.broadcast %12 : vector<32x1xf32> to vector<32x128xf32>
    %14 = arith.subf %8, %13 : vector<32x128xf32>
    %15 = arith.mulf %14, %14 : vector<32x128xf32>
    %cst_9 = arith.constant dense<0.000000e+00> : vector<32xf32>
    %16 = vector.multi_reduction <add>, %15, %cst_9 [1] : vector<32x128xf32> to vector<32xf32>
    %17 = vector.shape_cast %16 : vector<32xf32> to vector<32x1xf32>
    %cst_10 = arith.constant 1.280000e+02 : f32
    %18 = vector.broadcast %cst_10 : f32 to vector<32x1xf32>
    %19 = arith.divf %17, %18 : vector<32x1xf32>
    %20 = vector.broadcast %12 : vector<32x1xf32> to vector<32x128xf32>
    %21 = arith.subf %8, %20 : vector<32x128xf32>
    %cst_11 = arith.constant 9.99999996E-13 : f32
    %22 = vector.broadcast %cst_11 : f32 to vector<32x1xf32>
    %23 = arith.addf %19, %22 : vector<32x1xf32>
    %24 = math.rsqrt %23 : vector<32x1xf32>
    %25 = vector.broadcast %24 : vector<32x1xf32> to vector<32x128xf32>
    %26 = arith.mulf %21, %25 : vector<32x128xf32>
    %c0_12 = arith.constant 0 : index
    %c0_13 = arith.constant 0 : index
    %27 = vector.load %arg5[%c0_12, %c0_13] : memref<1x128xf32, #tpu.memory_space<vmem>>, vector<1x128xf32>
    %28 = vector.broadcast %27 : vector<1x128xf32> to vector<32x128xf32>
    %29 = arith.mulf %26, %28 : vector<32x128xf32>
    %c0_14 = arith.constant 0 : index
    %c0_15 = arith.constant 0 : index
    %30 = vector.load %arg6[%c0_14, %c0_15] : memref<1x128xf32, #tpu.memory_space<vmem>>, vector<1x128xf32>
    %31 = vector.broadcast %30 : vector<1x128xf32> to vector<32x128xf32>
    %32 = arith.addf %29, %31 : vector<32x128xf32>
    %33 = arith.truncf %32 : vector<32x128xf32> to vector<32x128xbf16>
    %c0_16 = arith.constant 0 : index
    %c0_17 = arith.constant 0 : index
    %34 = vector.load %arg7[%c0_16, %c0_17] : memref<32x128xbf16, #tpu.memory_space<vmem>>, vector<32x128xbf16>
    tpu.vector_store %arg7[%c0_16, %c0_17], %33 {strides = array<i32>} : memref<32x128xbf16, #tpu.memory_space<vmem>>, vector<32x128xbf16>,
    return
  }
  func.func @transform_0(%arg0: i32) -> (i32, i32) {
    %c0_i32 = arith.constant 0 : i32
    %c0_i32_0 = arith.constant 0 : i32
    return %arg0, %c0_i32 : i32, i32
  }
  func.func @transform_1(%arg0: i32) -> (i32, i32) {
    %c0_i32 = arith.constant 0 : i32
    %c0_i32_0 = arith.constant 0 : i32
    %c0_i32_1 = arith.constant 0 : i32
    return %c0_i32, %c0_i32_0 : i32, i32
  }
  func.func @transform_2(%arg0: i32) -> (i32, i32) {
    %c0_i32 = arith.constant 0 : i32
    %c0_i32_0 = arith.constant 0 : i32
    %c0_i32_1 = arith.constant 0 : i32
    return %c0_i32, %c0_i32_0 : i32, i32
  }
  func.func @transform_3(%arg0: i32) -> (i32, i32) {
    %c0_i32 = arith.constant 0 : i32
    %c0_i32_0 = arith.constant 0 : i32
    return %arg0, %c0_i32 : i32, i32
  }
  func.func @transform_4(%arg0: i32) -> (i32, i32) {
    %c0_i32 = arith.constant 0 : i32
    %c0_i32_0 = arith.constant 0 : i32
    %c0_i32_1 = arith.constant 0 : i32
    return %c0_i32, %c0_i32_0 : i32, i32
  }
  func.func @transform_5(%arg0: i32) -> (i32, i32) {
    %c0_i32 = arith.constant 0 : i32
    %c0_i32_0 = arith.constant 0 : i32
    %c0_i32_1 = arith.constant 0 : i32
    return %c0_i32, %c0_i32_0 : i32, i32
  }
  func.func @transform_6(%arg0: i32) -> (i32, i32) {
    %c0_i32 = arith.constant 0 : i32
    %c0_i32_0 = arith.constant 0 : i32
    return %arg0, %c0_i32 : i32, i32
  }
}

module attributes {stable_mosaic.version = 11 : i64} {
  func.func @_pool_cls_kernel(%arg0: memref<2x128xbf16, #tpu.memory_space<vmem>>, %arg1: memref<128x128xbf16, #tpu.memory_space<vmem>>, %arg2: memref<1x128xf32, #tpu.memory_space<vmem>>, %arg3: memref<128x128xbf16, #tpu.memory_space<vmem>>, %arg4: memref<1x128xf32, #tpu.memory_space<vmem>>, %arg5: memref<2x128xf32, #tpu.memory_space<vmem>>) attributes {dimension_semantics = [], scalar_prefetch = 0 : i64, scratch_operands = 0 : i64, tpu.core_type = #tpu.core_type<tc>} {
    %c0 = arith.constant 0 : index
    %c0_0 = arith.constant 0 : index
    %0 = vector.load %arg0[%c0, %c0_0] : memref<2x128xbf16, #tpu.memory_space<vmem>>, vector<2x128xbf16>
    %c0_1 = arith.constant 0 : index
    %c0_2 = arith.constant 0 : index
    %1 = vector.load %arg1[%c0_1, %c0_2] : memref<128x128xbf16, #tpu.memory_space<vmem>>, vector<128x128xbf16>
    %cst = arith.constant dense<0.000000e+00> : vector<2x128xf32>
    %2 = tpu.matmul %0, %1, %cst {dimension_numbers = #tpu.dot_dimension_numbers<[1], [0], [0], [1], [0, 0, 1, 1], [], []>} : vector<2x128xbf16>, vector<128x128xbf16>, vector<2x128xf32> -> vector<2x128xf32>
    %c0_3 = arith.constant 0 : index
    %c0_4 = arith.constant 0 : index
    %3 = vector.load %arg2[%c0_3, %c0_4] : memref<1x128xf32, #tpu.memory_space<vmem>>, vector<1x128xf32>
    %4 = vector.broadcast %3 : vector<1x128xf32> to vector<2x128xf32>
    %5 = arith.addf %2, %4 : vector<2x128xf32>
    %6 = math.tanh %5 : vector<2x128xf32>
    %7 = arith.truncf %6 : vector<2x128xf32> to vector<2x128xbf16>
    %c0_5 = arith.constant 0 : index
    %c0_6 = arith.constant 0 : index
    %8 = vector.load %arg3[%c0_5, %c0_6] : memref<128x128xbf16, #tpu.memory_space<vmem>>, vector<128x128xbf16>
    %cst_7 = arith.constant dense<0.000000e+00> : vector<2x128xf32>
    %9 = tpu.matmul %7, %8, %cst_7 {dimension_numbers = #tpu.dot_dimension_numbers<[1], [0], [0], [1], [0, 0, 1, 1], [], []>} : vector<2x128xbf16>, vector<128x128xbf16>, vector<2x128xf32> -> vector<2x128xf32>
    %c0_8 = arith.constant 0 : index
    %c0_9 = arith.constant 0 : index
    %10 = vector.load %arg4[%c0_8, %c0_9] : memref<1x128xf32, #tpu.memory_space<vmem>>, vector<1x128xf32>
    %11 = vector.broadcast %10 : vector<1x128xf32> to vector<2x128xf32>
    %12 = arith.addf %9, %11 : vector<2x128xf32>
    %c0_10 = arith.constant 0 : index
    %c0_11 = arith.constant 0 : index
    %13 = vector.load %arg5[%c0_10, %c0_11] : memref<2x128xf32, #tpu.memory_space<vmem>>, vector<2x128xf32>
    tpu.vector_store %arg5[%c0_10, %c0_11], %12 {strides = array<i32>} : memref<2x128xf32, #tpu.memory_space<vmem>>, vector<2x128xf32>,
    return
  }
}

</mosaic_0001>

<llo_original>
// kernel: _lambda_.12
$region0: #{_lambda_.12}
  #allocation0 [shape = 'u32[]', space=smem, size = 0x4, offset = 0x4, fixed_abs, tag = 'smem constant byte address 0x4 - core index']
  #allocation1 [shape = 'u32[144,128]{1,0:T(1,128)}', space=vmem, size = 0x12000, scoped, tag = 'internal scratch']
  %s0 = inlined_call_operand.vmem [shape: bf16[32,128], index: 0, kind: input, shape index: {}]
  %s1 = inlined_call_operand.vmem [shape: f32[1,128], index: 1, kind: input, shape index: {}]
  %s2 = inlined_call_operand.vmem [shape: f32[1,128], index: 2, kind: input, shape index: {}]
  %s3 = inlined_call_operand.vmem [shape: bf16[32,128], index: 3, kind: output, shape index: {}]
  %s4 = sld [smem:[#allocation0]]
  $region22: #{_lambda_.12} parent=0
    _
  %s6 = ssub.s32 1, %s4
  %s7 = scalar_select 0, %s6, %s4
  // Predicated region
  $region2: #{_lambda_.12} parent=0 // pred_check
    _
  $region3: #{_lambda_.12} parent=0 // pred_check_branch
    %9 = sbr.rel (0) target = $region5
  $region4: #{_lambda_.12} parent=0 // pred_region
    _
  $region5: #{_lambda_.12} parent=0 // pred_fallthru
    _
  // Predicated region
  $region6: #{_lambda_.12} parent=0 // pred_check
    _
  $region7: #{_lambda_.12} parent=0 // pred_check_branch
    %11 = sbr.rel (0) target = $region9
  $region8: #{_lambda_.12} parent=0 // pred_region
    _
  $region9: #{_lambda_.12} parent=0 // pred_fallthru
    _
  // Predicated region
  $region10: #{_lambda_.12} parent=0 // pred_check
    _
  $region11: #{_lambda_.12} parent=0 // pred_check_branch
    %13 = sbr.rel (0) target = $region13
  $region12: #{_lambda_.12} parent=0 // pred_region
    _
  $region13: #{_lambda_.12} parent=0 // pred_fallthru
    _
  %v14 = vld [vmem:[%s0] sm:$0xf]
  %v15 = vld [vmem:[%s0 + $0x4] sm:$0xf]
  %v16 = vld [vmem:[%s0 + $0x8] sm:$0xf]
  %v17 = vld [vmem:[%s0 + $0xc] sm:$0xf]
  %v18 = vunpack.c.l.bf16 %v14
  %v19 = vunpack.c.l.bf16 %v15
  %v20 = vunpack.c.l.bf16 %v16
  %v21 = vunpack.c.l.bf16 %v17
  %22 = vadd.xlane.f32.xlu0 %v18
  %v23 = vpop.xlane.xlu0 %22
  %24 = vadd.xlane.f32.xlu0 %v19
  %v25 = vpop.xlane.xlu0 %24
  %26 = vadd.xlane.f32.xlu0 %v20
  %v27 = vpop.xlane.xlu0 %26
  %28 = vadd.xlane.f32.xlu0 %v21
  %v29 = vpop.xlane.xlu0 %28
  %v30 = vrcp.pop 128.0
  %v31 = vmul.f32 %v23, %v30
  %v32 = vmul.f32 %v25, %v30
  %v33 = vmul.f32 %v27, %v30
  %v34 = vmul.f32 %v29, %v30
  %v35 = vsub.f32 %v18, %v31
  %v36 = vsub.f32 %v19, %v32
  %v37 = vsub.f32 %v20, %v33
  %v38 = vsub.f32 %v21, %v34
  %v39 = vmul.f32 %v35, %v35
  %v40 = vmul.f32 %v36, %v36
  %v41 = vmul.f32 %v37, %v37
  %v42 = vmul.f32 %v38, %v38
  %43 = vadd.xlane.f32.xlu0 %v39
  %v44 = vpop.xlane.xlu0 %43
  %45 = vadd.xlane.f32.xlu0 %v40
  %v46 = vpop.xlane.xlu0 %45
  %47 = vadd.xlane.f32.xlu0 %v41
  %v48 = vpop.xlane.xlu0 %47
  %49 = vadd.xlane.f32.xlu0 %v42
  %v50 = vpop.xlane.xlu0 %49
  %v51 = vmul.f32 %v44, %v30
  %v52 = vmul.f32 %v46, %v30
  %v53 = vmul.f32 %v48, %v30
  %v54 = vmul.f32 %v50, %v30
  %v55 = vadd.f32 %v51, 1e-12
  %v56 = vadd.f32 %v52, 1e-12
  %v57 = vadd.f32 %v53, 1e-12
  %v58 = vadd.f32 %v54, 1e-12
  %v59 = vrsqrt.pop %v55
  %v60 = vrsqrt.pop %v56
  %v61 = vrsqrt.pop %v57
  %v62 = vrsqrt.pop %v58
  %v63 = vmul.f32 %v35, %v59
  %v64 = vmul.f32 %v36, %v60
  %v65 = vmul.f32 %v37, %v61
  %v66 = vmul.f32 %v38, %v62
  %v67 = vld [vmem:[%s1] sm:$0x1]
  %v69 = vlaneseq
  %v70 = vshrl.u32 %v69, 7
  %v71 = vsub.s32 0, %v70
  %v72 = vrot.slane %v67, %v71
  %v74 = vmul.f32 %v63, %v72
  %v75 = vmul.f32 %v64, %v72
  %v76 = vmul.f32 %v65, %v72
  %v77 = vmul.f32 %v66, %v72
  %v78 = vld [vmem:[%s2] sm:$0x1]
  %v80 = vlaneseq
  %v81 = vshrl.u32 %v80, 7
  %v82 = vsub.s32 0, %v81
  %v83 = vrot.slane %v78, %v82
  %v85 = vadd.f32 %v74, %v83
  %v86 = vadd.f32 %v75, %v83
  %v87 = vadd.f32 %v76, %v83
  %v88 = vadd.f32 %v77, %v83
  %v89 = vpack.c.bf16 %v86, %v85
  %v90 = vpack.c.bf16 %v88, %v87
  %v93 = vunpack.c.l.b16 %v89
  %v94 = vunpack.c.h.b16 %v89
  %v95 = vunpack.c.l.b16 %v90
  %v96 = vunpack.c.h.b16 %v90
  %v97 = vpack.c.b16 %v93, %v93
  %v98 = vpack.c.b16 %v94, %v94
  %v99 = vpack.c.b16 %v95, %v95
  %v100 = vpack.c.b16 %v96, %v96
  %105 = vst [vmem:[%s3] sm:$0xf] %v97
  %106 = vst [vmem:[%s3 + $0x4] sm:$0xf] %v98
  %107 = vst [vmem:[%s3 + $0x8] sm:$0xf] %v99
  %108 = vst [vmem:[%s3 + $0xc] sm:$0xf] %v100
  // Predicated region
  $region14: #{_lambda_.12} parent=0 // pred_check
    _
  $region15: #{_lambda_.12} parent=0 // pred_check_branch
    %110 = sbr.rel (0) target = $region17
  $region16: #{_lambda_.12} parent=0 // pred_region
    _
  $region17: #{_lambda_.12} parent=0 // pred_fallthru
    _
  // Predicated region
  $region18: #{_lambda_.12} parent=0 // pred_check
    _
  $region19: #{_lambda_.12} parent=0 // pred_check_branch
    %112 = sbr.rel (0) target = $region21
  $region20: #{_lambda_.12} parent=0 // pred_region
    _
  $region21: #{_lambda_.12} parent=0 // pred_fallthru
    _

// kernel: _lambda_.13
$region0: #{_lambda_.13}
  #allocation0 [shape = 'u32[]', space=smem, size = 0x4, offset = 0x4, fixed_abs, tag = 'smem constant byte address 0x4 - core index']
  #allocation1 [shape = 'u32[144,128]{1,0:T(1,128)}', space=vmem, size = 0x12000, scoped, tag = 'internal scratch']
  %s0 = inlined_call_operand.vmem [shape: bf16[32,128], index: 0, kind: input, shape index: {}]
  %s1 = inlined_call_operand.vmem [shape: bf16[128,384], index: 1, kind: input, shape index: {}]
  %s2 = inlined_call_operand.vmem [shape: f32[1,384], index: 2, kind: input, shape index: {}]
  %s3 = inlined_call_operand.vmem [shape: bf16[32,384], index: 3, kind: output, shape index: {}]
  %s4 = sld [smem:[#allocation0]]
  $region22: #{_lambda_.13} parent=0
    _
  %s6 = ssub.s32 1, %s4
  %s7 = scalar_select 0, %s6, %s4
  // Predicated region
  $region2: #{_lambda_.13} parent=0 // pred_check
    _
  $region3: #{_lambda_.13} parent=0 // pred_check_branch
    %9 = sbr.rel (0) target = $region5
  $region4: #{_lambda_.13} parent=0 // pred_region
    _
  $region5: #{_lambda_.13} parent=0 // pred_fallthru
    _
  // Predicated region
  $region6: #{_lambda_.13} parent=0 // pred_check
    _
  $region7: #{_lambda_.13} parent=0 // pred_check_branch
    %11 = sbr.rel (0) target = $region9
  $region8: #{_lambda_.13} parent=0 // pred_region
    _
  $region9: #{_lambda_.13} parent=0 // pred_fallthru
    _
  // Predicated region
  $region10: #{_lambda_.13} parent=0 // pred_check
    _
  $region11: #{_lambda_.13} parent=0 // pred_check_branch
    %13 = sbr.rel (0) target = $region13
  $region12: #{_lambda_.13} parent=0 // pred_region
    _
  $region13: #{_lambda_.13} parent=0 // pred_fallthru
    _
  %v15 = vld [vmem:[%s0] sm:$0xf]
  %v16 = vld [vmem:[%s0 + $0x4] sm:$0xf]
  %v17 = vld [vmem:[%s0 + $0x8] sm:$0xf]
  %v18 = vld [vmem:[%s0 + $0xc] sm:$0xf]
  %v19 = vld [vmem:[%s1] sm:$0xff]
  %v20 = vld [vmem:[%s1 + $0x8] sm:$0xf]
  %v21 = vld [vmem:[%s1 + $0xc] sm:$0xff]
  %v22 = vld [vmem:[%s1 + $0x14] sm:$0xf]
  %v23 = vld [vmem:[%s1 + $0x18] sm:$0xff]
  %v24 = vld [vmem:[%s1 + $0x20] sm:$0xf]
  %v25 = vld [vmem:[%s1 + $0x24] sm:$0xff]
  %v26 = vld [vmem:[%s1 + $0x2c] sm:$0xf]
  %v27 = vld [vmem:[%s1 + $0x30] sm:$0xff]
  %v28 = vld [vmem:[%s1 + $0x38] sm:$0xf]
  %v29 = vld [vmem:[%s1 + $0x3c] sm:$0xff]
  %v30 = vld [vmem:[%s1 + $0x44] sm:$0xf]
  %v31 = vld [vmem:[%s1 + $0x48] sm:$0xff]
  %v32 = vld [vmem:[%s1 + $0x50] sm:$0xf]
  %v33 = vld [vmem:[%s1 + $0x54] sm:$0xff]
  %v34 = vld [vmem:[%s1 + $0x5c] sm:$0xf]
  %v35 = vld [vmem:[%s1 + $0x60] sm:$0xff]
  %v36 = vld [vmem:[%s1 + $0x68] sm:$0xf]
  %v37 = vld [vmem:[%s1 + $0x6c] sm:$0xff]
  %v38 = vld [vmem:[%s1 + $0x74] sm:$0xf]
  %v39 = vld [vmem:[%s1 + $0x78] sm:$0xff]
  %v40 = vld [vmem:[%s1 + $0x80] sm:$0xf]
  %v41 = vld [vmem:[%s1 + $0x84] sm:$0xff]
  %v42 = vld [vmem:[%s1 + $0x8c] sm:$0xf]
  %v43 = vld [vmem:[%s1 + $0x90] sm:$0xff]
  %v44 = vld [vmem:[%s1 + $0x98] sm:$0xf]
  %v45 = vld [vmem:[%s1 + $0x9c] sm:$0xff]
  %v46 = vld [vmem:[%s1 + $0xa4] sm:$0xf]
  %v47 = vld [vmem:[%s1 + $0xa8] sm:$0xff]
  %v48 = vld [vmem:[%s1 + $0xb0] sm:$0xf]
  %v49 = vld [vmem:[%s1 + $0xb4] sm:$0xff]
  %v50 = vld [vmem:[%s1 + $0xbc] sm:$0xf]
  %v51 = vld [vmem:[%s2] sm:$0x7]
  %v53 = vlaneseq
  %v54 = vshrl.u32 %v53, 7
  %v55 = vsub.s32 0, %v54
  %v56 = vrot.slane %v51, %v55
  %v57 = vlaneseq
  %v58 = vshrl.u32 %v57, 7
  %v59 = vsub.s32 1, %v58
  %v60 = vrot.slane %v51, %v59
  %v61 = vlaneseq
  %v62 = vshrl.u32 %v61, 7
  %v63 = vsub.s32 2, %v62
  %v64 = vrot.slane %v51, %v63
  %v72 = vunpack.c.l.b16 %v15
  %v73 = vunpack.c.l.b16 %v16
  %v74 = vunpack.c.l.b16 %v17
  %v75 = vunpack.c.l.b16 %v18
  %v76 = vpack.c.b16 %v73, %v72
  %v77 = vpack.c.b16 %v75, %v74
  %v112 = vunpack.c.l.b16 %v19
  %v113 = vunpack.c.h.b16 %v19
  %v114 = vunpack.c.l.b16 %v20
  %v115 = vunpack.c.l.b16 %v21
  %v116 = vunpack.c.h.b16 %v21
  %v117 = vunpack.c.l.b16 %v22
  %v118 = vunpack.c.l.b16 %v23
  %v119 = vunpack.c.h.b16 %v23
  %v120 = vunpack.c.l.b16 %v24
  %v121 = vunpack.c.l.b16 %v25
  %v122 = vunpack.c.h.b16 %v25
  %v123 = vunpack.c.l.b16 %v26
  %v124 = vunpack.c.l.b16 %v27
  %v125 = vunpack.c.h.b16 %v27
  %v126 = vunpack.c.l.b16 %v28
  %v127 = vunpack.c.l.b16 %v29
  %v128 = vunpack.c.h.b16 %v29
  %v129 = vunpack.c.l.b16 %v30
  %v130 = vunpack.c.l.b16 %v31
  %v131 = vunpack.c.h.b16 %v31
  %v132 = vunpack.c.l.b16 %v32
  %v133 = vunpack.c.l.b16 %v33
  %v134 = vunpack.c.h.b16 %v33
  %v135 = vunpack.c.l.b16 %v34
  %v136 = vunpack.c.l.b16 %v35
  %v137 = vunpack.c.h.b16 %v35
  %v138 = vunpack.c.l.b16 %v36
  %v139 = vunpack.c.l.b16 %v37
  %v140 = vunpack.c.h.b16 %v37
  %v141 = vunpack.c.l.b16 %v38
  %v142 = vunpack.c.l.b16 %v39
  %v143 = vunpack.c.h.b16 %v39
  %v144 = vunpack.c.l.b16 %v40
  %v145 = vunpack.c.l.b16 %v41
  %v146 = vunpack.c.h.b16 %v41
  %v147 = vunpack.c.l.b16 %v42
  %v148 = vunpack.c.l.b16 %v43
  %v149 = vunpack.c.h.b16 %v43
  %v150 = vunpack.c.l.b16 %v44
  %v151 = vunpack.c.l.b16 %v45
  %v152 = vunpack.c.h.b16 %v45
  %v153 = vunpack.c.l.b16 %v46
  %v154 = vunpack.c.l.b16 %v47
  %v155 = vunpack.c.h.b16 %v47
  %v156 = vunpack.c.l.b16 %v48
  %v157 = vunpack.c.l.b16 %v49
  %v158 = vunpack.c.h.b16 %v49
  %v159 = vunpack.c.l.b16 %v50
  %v160 = vpack.c.b16 %v115, %v112
  %v161 = vpack.c.b16 %v116, %v113
  %v162 = vpack.c.b16 %v117, %v114
  %v163 = vpack.c.b16 %v121, %v118
  %v164 = vpack.c.b16 %v122, %v119
  %v165 = vpack.c.b16 %v123, %v120
  %v166 = vpack.c.b16 %v127, %v124
  %v167 = vpack.c.b16 %v128, %v125
  %v168 = vpack.c.b16 %v129, %v126
  %v169 = vpack.c.b16 %v133, %v130
  %v170 = vpack.c.b16 %v134, %v131
  %v171 = vpack.c.b16 %v135, %v132
  %v172 = vpack.c.b16 %v139, %v136
  %v173 = vpack.c.b16 %v140, %v137
  %v174 = vpack.c.b16 %v141, %v138
  %v175 = vpack.c.b16 %v145, %v142
  %v176 = vpack.c.b16 %v146, %v143
  %v177 = vpack.c.b16 %v147, %v144
  %v178 = vpack.c.b16 %v151, %v148
  %v179 = vpack.c.b16 %v152, %v149
  %v180 = vpack.c.b16 %v153, %v150
  %v181 = vpack.c.b16 %v157, %v154
  %v182 = vpack.c.b16 %v158, %v155
  %v183 = vpack.c.b16 %v159, %v156
  %208 = vmatprep.subr.bf16.mxu0 %v182
  %209 = vmatpush1.bf16.msra.mxu0 %v181
  %210 = vmatprep.subr.bf16.mxu0 %v179
  %211 = vmatpush1.bf16.msra.mxu0 %v178
  %212 = vmatprep.subr.bf16.mxu0 %v176
  %213 = vmatpush1.bf16.msra.mxu0 %v175
  %214 = vmatprep.subr.bf16.mxu0 %v173
  %215 = vmatpush1.bf16.msra.mxu0 %v172
  %216 = vmatprep.subr.bf16.mxu0 %v170
  %217 = vmatpush1.bf16.msra.mxu0 %v169
  %218 = vmatprep.subr.bf16.mxu0 %v167
  %219 = vmatpush1.bf16.msra.mxu0 %v166
  %220 = vmatprep.subr.bf16.mxu0 %v164
  %221 = vmatpush1.bf16.msra.mxu0 %v163
  %222 = vmatprep.subr.bf16.mxu0 %v161
  %223 = vmatpush1.bf16.msra.mxu0 %v160
  %224 = vmatprep.subr.bf16.mxu0 0
  %225 = vmatpush2.bf16.msra.mxu0 0
  %226 = vmatprep.subr.bf16.mxu0 0
  %227 = vmatpush2.bf16.msra.mxu0 0
  %228 = vmatprep.subr.bf16.mxu0 0
  %229 = vmatpush2.bf16.msra.mxu0 0
  %230 = vmatprep.subr.bf16.mxu0 0
  %231 = vmatpush2.bf16.msra.mxu0 0
  %232 = vmatprep.subr.bf16.mxu0 0
  %233 = vmatpush2.bf16.msra.mxu0 0
  %234 = vmatprep.subr.bf16.mxu0 0
  %235 = vmatpush2.bf16.msra.mxu0 0
  %236 = vmatprep.subr.bf16.mxu0 0
  %237 = vmatpush2.bf16.msra.mxu0 0
  %238 = vmatprep.subr.bf16.mxu0 0
  %239 = vmatpush2.bf16.msra.mxu0 0
  %240 = vmatprep.mubr.bf16.mxu0 0
  %241 = vmatmul.mubr.bf16.gmra.mxu0 %v76
  %v242 = vpop.f32.mrf.mxu0
  %v243 = vadd.f32 %v56, %v242
  %v244 = vpop.f32.mrf.mxu0
  %v245 = vadd.f32 %v60, %v244
  %v246 = vpop.f32.mrf.mxu0
  %v247 = vadd.f32 %v56, %v246
  %v248 = vpop.f32.mrf.mxu0
  %v249 = vadd.f32 %v60, %v248
  %250 = vmatprep.mubr.bf16.mxu0 0
  %251 = vmatmul.mubr.bf16.gmra.mxu0 %v77
  %v252 = vpop.f32.mrf.mxu0
  %v253 = vadd.f32 %v56, %v252
  %v254 = vpop.f32.mrf.mxu0
  %v255 = vadd.f32 %v60, %v254
  %v256 = vpop.f32.mrf.mxu0
  %v257 = vadd.f32 %v56, %v256
  %v258 = vpop.f32.mrf.mxu0
  %v259 = vadd.f32 %v60, %v258
  %260 = vdwg.mxu0
  %261 = vmatprep.subr.bf16.mxu0 0
  %262 = vmatpush1.bf16.msra.mxu0 %v183
  %263 = vmatprep.subr.bf16.mxu0 0
  %264 = vmatpush1.bf16.msra.mxu0 %v180
  %265 = vmatprep.subr.bf16.mxu0 0
  %266 = vmatpush1.bf16.msra.mxu0 %v177
  %267 = vmatprep.subr.bf16.mxu0 0
  %268 = vmatpush1.bf16.msra.mxu0 %v174
  %269 = vmatprep.subr.bf16.mxu0 0
  %270 = vmatpush1.bf16.msra.mxu0 %v171
  %271 = vmatprep.subr.bf16.mxu0 0
  %272 = vmatpush1.bf16.msra.mxu0 %v168
  %273 = vmatprep.subr.bf16.mxu0 0
  %274 = vmatpush1.bf16.msra.mxu0 %v165
  %275 = vmatprep.subr.bf16.mxu0 0
  %276 = vmatpush1.bf16.msra.mxu0 %v162
  %277 = vmatprep.subr.bf16.mxu0 0
  %278 = vmatpush2.bf16.msra.mxu0 0
  %279 = vmatprep.subr.bf16.mxu0 0
  %280 = vmatpush2.bf16.msra.mxu0 0
  %281 = vmatprep.subr.bf16.mxu0 0
  %282 = vmatpush2.bf16.msra.mxu0 0
  %283 = vmatprep.subr.bf16.mxu0 0
  %284 = vmatpush2.bf16.msra.mxu0 0
  %285 = vmatprep.subr.bf16.mxu0 0
  %286 = vmatpush2.bf16.msra.mxu0 0
  %287 = vmatprep.subr.bf16.mxu0 0
  %288 = vmatpush2.bf16.msra.mxu0 0
  %289 = vmatprep.subr.bf16.mxu0 0
  %290 = vmatpush2.bf16.msra.mxu0 0
  %291 = vmatprep.subr.bf16.mxu0 0
  %292 = vmatpush2.bf16.msra.mxu0 0
  %293 = vmatprep.mubr.bf16.mxu0 0
  %294 = vmatmul.mubr.bf16.gmra.mxu0 %v76
  %v295 = vpop.f32.mrf.mxu0
  %v296 = vadd.f32 %v64, %v295
  %v297 = vpop.f32.mrf.mxu0
  %v298 = vpop.f32.mrf.mxu0
  %v299 = vadd.f32 %v64, %v298
  %v300 = vpop.f32.mrf.mxu0
  %301 = vmatprep.mubr.bf16.mxu0 0
  %302 = vmatmul.mubr.bf16.gmra.mxu0 %v77
  %v303 = vpop.f32.mrf.mxu0
  %v304 = vadd.f32 %v64, %v303
  %v305 = vpop.f32.mrf.mxu0
  %v306 = vpop.f32.mrf.mxu0
  %v307 = vadd.f32 %v64, %v306
  %v308 = vpop.f32.mrf.mxu0
  %309 = vdwg.mxu0
  %v310 = vpack.c.bf16 %v247, %v243
  %v311 = vpack.c.bf16 %v249, %v245
  %v312 = vpack.c.bf16 %v299, %v296
  %v313 = vpack.c.bf16 %v257, %v253
  %v314 = vpack.c.bf16 %v259, %v255
  %v315 = vpack.c.bf16 %v307, %v304
  %v322 = vunpack.c.l.b16 %v310
  %v323 = vunpack.c.l.b16 %v311
  %v324 = vunpack.c.l.b16 %v312
  %v325 = vunpack.c.h.b16 %v310
  %v326 = vunpack.c.h.b16 %v311
  %v327 = vunpack.c.h.b16 %v312
  %v328 = vunpack.c.l.b16 %v313
  %v329 = vunpack.c.l.b16 %v314
  %v330 = vunpack.c.l.b16 %v315
  %v331 = vunpack.c.h.b16 %v313
  %v332 = vunpack.c.h.b16 %v314
  %v333 = vunpack.c.h.b16 %v315
  %v334 = vpack.c.b16 %v323, %v322
  %v335 = vpack.c.b16 %v324, %v324
  %v336 = vpack.c.b16 %v326, %v325
  %v337 = vpack.c.b16 %v327, %v327
  %v338 = vpack.c.b16 %v329, %v328
  %v339 = vpack.c.b16 %v330, %v330
  %v340 = vpack.c.b16 %v332, %v331
  %v341 = vpack.c.b16 %v333, %v333
  %350 = vst [vmem:[%s3] sm:$0xff] %v334
  %351 = vst [vmem:[%s3 + $0x8] sm:$0xf] %v335
  %352 = vst [vmem:[%s3 + $0xc] sm:$0xff] %v336
  %353 = vst [vmem:[%s3 + $0x14] sm:$0xf] %v337
  %354 = vst [vmem:[%s3 + $0x18] sm:$0xff] %v338
  %355 = vst [vmem:[%s3 + $0x20] sm:$0xf] %v339
  %356 = vst [vmem:[%s3 + $0x24] sm:$0xff] %v340
  %357 = vst [vmem:[%s3 + $0x2c] sm:$0xf] %v341
  // Predicated region
  $region14: #{_lambda_.13} parent=0 // pred_check
    _
  $region15: #{_lambda_.13} parent=0 // pred_check_branch
    %359 = sbr.rel (0) target = $region17
  $region16: #{_lambda_.13} parent=0 // pred_region
    _
  $region17: #{_lambda_.13} parent=0 // pred_fallthru
    _
  // Predicated region
  $region18: #{_lambda_.13} parent=0 // pred_check
    _
  $region19: #{_lambda_.13} parent=0 // pred_check_branch
    %361 = sbr.rel (0) target = $region21
  $region20: #{_lambda_.13} parent=0 // pred_region
    _
  $region21: #{_lambda_.13} parent=0 // pred_fallthru
    _

// kernel: _lambda_.15
$region0: #{_lambda_.15}
  #allocation0 [shape = 'u32[]', space=smem, size = 0x4, offset = 0x4, fixed_abs, tag = 'smem constant byte address 0x4 - core index']
  #allocation1 [shape = 'u32[144,128]{1,0:T(1,128)}', space=vmem, size = 0x12000, scoped, tag = 'internal scratch']
  %s0 = inlined_call_operand.vmem [shape: bf16[32,128], index: 0, kind: input, shape index: {}]
  %s1 = inlined_call_operand.vmem [shape: bf16[128,128], index: 1, kind: input, shape index: {}]
  %s2 = inlined_call_operand.vmem [shape: f32[1,128], index: 2, kind: input, shape index: {}]
  %s3 = inlined_call_operand.vmem [shape: bf16[32,128], index: 3, kind: input, shape index: {}]
  %s4 = inlined_call_operand.vmem [shape: f32[1,128], index: 4, kind: input, shape index: {}]
  %s5 = inlined_call_operand.vmem [shape: f32[1,128], index: 5, kind: input, shape index: {}]
  %s6 = inlined_call_operand.vmem [shape: bf16[32,128], index: 6, kind: output, shape index: {}]
  %s7 = sld [smem:[#allocation0]]
  $region34: #{_lambda_.15} parent=0
    _
  %s9 = ssub.s32 1, %s7
  %s10 = scalar_select 0, %s9, %s7
  // Predicated region
  $region2: #{_lambda_.15} parent=0 // pred_check
    _
  $region3: #{_lambda_.15} parent=0 // pred_check_branch
    %12 = sbr.rel (0) target = $region5
  $region4: #{_lambda_.15} parent=0 // pred_region
    _
  $region5: #{_lambda_.15} parent=0 // pred_fallthru
    _
  // Predicated region
  $region6: #{_lambda_.15} parent=0 // pred_check
    _
  $region7: #{_lambda_.15} parent=0 // pred_check_branch
    %14 = sbr.rel (0) target = $region9
  $region8: #{_lambda_.15} parent=0 // pred_region
    _
  $region9: #{_lambda_.15} parent=0 // pred_fallthru
    _
  // Predicated region
  $region10: #{_lambda_.15} parent=0 // pred_check
    _
  $region11: #{_lambda_.15} parent=0 // pred_check_branch
    %16 = sbr.rel (0) target = $region13
  $region12: #{_lambda_.15} parent=0 // pred_region
    _
  $region13: #{_lambda_.15} parent=0 // pred_fallthru
    _
  // Predicated region
  $region14: #{_lambda_.15} parent=0 // pred_check
    _
  $region15: #{_lambda_.15} parent=0 // pred_check_branch
    %18 = sbr.rel (0) target = $region17
  $region16: #{_lambda_.15} parent=0 // pred_region
    _
  $region17: #{_lambda_.15} parent=0 // pred_fallthru
    _
  // Predicated region
  $region18: #{_lambda_.15} parent=0 // pred_check
    _
  $region19: #{_lambda_.15} parent=0 // pred_check_branch
    %20 = sbr.rel (0) target = $region21
  $region20: #{_lambda_.15} parent=0 // pred_region
    _
  $region21: #{_lambda_.15} parent=0 // pred_fallthru
    _
  // Predicated region
  $region22: #{_lambda_.15} parent=0 // pred_check
    _
  $region23: #{_lambda_.15} parent=0 // pred_check_branch
    %22 = sbr.rel (0) target = $region25
  $region24: #{_lambda_.15} parent=0 // pred_region
    _
  $region25: #{_lambda_.15} parent=0 // pred_fallthru
    _
  %v24 = vld [vmem:[%s0] sm:$0xf]
  %v25 = vld [vmem:[%s0 + $0x4] sm:$0xf]
  %v26 = vld [vmem:[%s0 + $0x8] sm:$0xf]
  %v27 = vld [vmem:[%s0 + $0xc] sm:$0xf]
  %v28 = vld [vmem:[%s1] sm:$0xf]
  %v29 = vld [vmem:[%s1 + $0x4] sm:$0xf]
  %v30 = vld [vmem:[%s1 + $0x8] sm:$0xf]
  %v31 = vld [vmem:[%s1 + $0xc] sm:$0xf]
  %v32 = vld [vmem:[%s1 + $0x10] sm:$0xf]
  %v33 = vld [vmem:[%s1 + $0x14] sm:$0xf]
  %v34 = vld [vmem:[%s1 + $0x18] sm:$0xf]
  %v35 = vld [vmem:[%s1 + $0x1c] sm:$0xf]
  %v36 = vld [vmem:[%s1 + $0x20] sm:$0xf]
  %v37 = vld [vmem:[%s1 + $0x24] sm:$0xf]
  %v38 = vld [vmem:[%s1 + $0x28] sm:$0xf]
  %v39 = vld [vmem:[%s1 + $0x2c] sm:$0xf]
  %v40 = vld [vmem:[%s1 + $0x30] sm:$0xf]
  %v41 = vld [vmem:[%s1 + $0x34] sm:$0xf]
  %v42 = vld [vmem:[%s1 + $0x38] sm:$0xf]
  %v43 = vld [vmem:[%s1 + $0x3c] sm:$0xf]
  %v44 = vld [vmem:[%s2] sm:$0x1]
  %v46 = vlaneseq
  %v47 = vshrl.u32 %v46, 7
  %v48 = vsub.s32 0, %v47
  %v49 = vrot.slane %v44, %v48
  %v55 = vunpack.c.l.b16 %v24
  %v56 = vunpack.c.l.b16 %v25
  %v57 = vunpack.c.l.b16 %v26
  %v58 = vunpack.c.l.b16 %v27
  %v59 = vpack.c.b16 %v56, %v55
  %v60 = vpack.c.b16 %v58, %v57
  %v79 = vunpack.c.l.b16 %v28
  %v80 = vunpack.c.l.b16 %v29
  %v81 = vunpack.c.l.b16 %v30
  %v82 = vunpack.c.l.b16 %v31
  %v83 = vunpack.c.l.b16 %v32
  %v84 = vunpack.c.l.b16 %v33
  %v85 = vunpack.c.l.b16 %v34
  %v86 = vunpack.c.l.b16 %v35
  %v87 = vunpack.c.l.b16 %v36
  %v88 = vunpack.c.l.b16 %v37
  %v89 = vunpack.c.l.b16 %v38
  %v90 = vunpack.c.l.b16 %v39
  %v91 = vunpack.c.l.b16 %v40
  %v92 = vunpack.c.l.b16 %v41
  %v93 = vunpack.c.l.b16 %v42
  %v94 = vunpack.c.l.b16 %v43
  %v95 = vpack.c.b16 %v80, %v79
  %v96 = vpack.c.b16 %v82, %v81
  %v97 = vpack.c.b16 %v84, %v83
  %v98 = vpack.c.b16 %v86, %v85
  %v99 = vpack.c.b16 %v88, %v87
  %v100 = vpack.c.b16 %v90, %v89
  %v101 = vpack.c.b16 %v92, %v91
  %v102 = vpack.c.b16 %v94, %v93
  %111 = vmatprep.subr.bf16.mxu0 0
  %112 = vmatpush1.bf16.msra.mxu0 %v102
  %113 = vmatprep.subr.bf16.mxu0 0
  %114 = vmatpush1.bf16.msra.mxu0 %v101
  %115 = vmatprep.subr.bf16.mxu0 0
  %116 = vmatpush1.bf16.msra.mxu0 %v100
  %117 = vmatprep.subr.bf16.mxu0 0
  %118 = vmatpush1.bf16.msra.mxu0 %v99
  %119 = vmatprep.subr.bf16.mxu0 0
  %120 = vmatpush1.bf16.msra.mxu0 %v98
  %121 = vmatprep.subr.bf16.mxu0 0
  %122 = vmatpush1.bf16.msra.mxu0 %v97
  %123 = vmatprep.subr.bf16.mxu0 0
  %124 = vmatpush1.bf16.msra.mxu0 %v96
  %125 = vmatprep.subr.bf16.mxu0 0
  %126 = vmatpush1.bf16.msra.mxu0 %v95
  %127 = vmatprep.subr.bf16.mxu0 0
  %128 = vmatpush2.bf16.msra.mxu0 0
  %129 = vmatprep.subr.bf16.mxu0 0
  %130 = vmatpush2.bf16.msra.mxu0 0
  %131 = vmatprep.subr.bf16.mxu0 0
  %132 = vmatpush2.bf16.msra.mxu0 0
  %133 = vmatprep.subr.bf16.mxu0 0
  %134 = vmatpush2.bf16.msra.mxu0 0
  %135 = vmatprep.subr.bf16.mxu0 0
  %136 = vmatpush2.bf16.msra.mxu0 0
  %137 = vmatprep.subr.bf16.mxu0 0
  %138 = vmatpush2.bf16.msra.mxu0 0
  %139 = vmatprep.subr.bf16.mxu0 0
  %140 = vmatpush2.bf16.msra.mxu0 0
  %141 = vmatprep.subr.bf16.mxu0 0
  %142 = vmatpush2.bf16.msra.mxu0 0
  %143 = vmatprep.mubr.bf16.mxu0 0
  %144 = vmatmul.mubr.bf16.gmra.mxu0 %v59
  %v145 = vpop.f32.mrf.mxu0
  %v146 = vadd.f32 %v49, %v145
  %v147 = vpop.f32.mrf.mxu0
  %v148 = vpop.f32.mrf.mxu0
  %v149 = vadd.f32 %v49, %v148
  %v150 = vpop.f32.mrf.mxu0
  %151 = vmatprep.mubr.bf16.mxu0 0
  %152 = vmatmul.mubr.bf16.gmra.mxu0 %v60
  %v153 = vpop.f32.mrf.mxu0
  %v154 = vadd.f32 %v49, %v153
  %v155 = vpop.f32.mrf.mxu0
  %v156 = vpop.f32.mrf.mxu0
  %v157 = vadd.f32 %v49, %v156
  %v158 = vpop.f32.mrf.mxu0
  %159 = vdwg.mxu0
  %v160 = vld [vmem:[%s3] sm:$0xf]
  %v161 = vld [vmem:[%s3 + $0x4] sm:$0xf]
  %v162 = vld [vmem:[%s3 + $0x8] sm:$0xf]
  %v163 = vld [vmem:[%s3 + $0xc] sm:$0xf]
  %v164 = vunpack.c.l.bf16 %v160
  %v165 = vunpack.c.l.bf16 %v161
  %v166 = vunpack.c.l.bf16 %v162
  %v167 = vunpack.c.l.bf16 %v163
  %v168 = vadd.f32 %v146, %v164
  %v169 = vadd.f32 %v149, %v165
  %v170 = vadd.f32 %v154, %v166
  %v171 = vadd.f32 %v157, %v167
  %172 = vadd.xlane.f32.xlu0 %v168
  %v173 = vpop.xlane.xlu0 %172
  %174 = vadd.xlane.f32.xlu0 %v169
  %v175 = vpop.xlane.xlu0 %174
  %176 = vadd.xlane.f32.xlu0 %v170
  %v177 = vpop.xlane.xlu0 %176
  %178 = vadd.xlane.f32.xlu0 %v171
  %v179 = vpop.xlane.xlu0 %178
  %v180 = vrcp.pop 128.0
  %v181 = vmul.f32 %v173, %v180
  %v182 = vmul.f32 %v175, %v180
  %v183 = vmul.f32 %v177, %v180
  %v184 = vmul.f32 %v179, %v180
  %v185 = vsub.f32 %v168, %v181
  %v186 = vsub.f32 %v169, %v182
  %v187 = vsub.f32 %v170, %v183
  %v188 = vsub.f32 %v171, %v184
  %v189 = vmul.f32 %v185, %v185
  %v190 = vmul.f32 %v186, %v186
  %v191 = vmul.f32 %v187, %v187
  %v192 = vmul.f32 %v188, %v188
  %193 = vadd.xlane.f32.xlu0 %v189
  %v194 = vpop.xlane.xlu0 %193
  %195 = vadd.xlane.f32.xlu0 %v190
  %v196 = vpop.xlane.xlu0 %195
  %197 = vadd.xlane.f32.xlu0 %v191
  %v198 = vpop.xlane.xlu0 %197
  %199 = vadd.xlane.f32.xlu0 %v192
  %v200 = vpop.xlane.xlu0 %199
  %v201 = vmul.f32 %v194, %v180
  %v202 = vmul.f32 %v196, %v180
  %v203 = vmul.f32 %v198, %v180
  %v204 = vmul.f32 %v200, %v180
  %v205 = vadd.f32 %v201, 1e-12
  %v206 = vadd.f32 %v202, 1e-12
  %v207 = vadd.f32 %v203, 1e-12
  %v208 = vadd.f32 %v204, 1e-12
  %v209 = vrsqrt.pop %v205
  %v210 = vrsqrt.pop %v206
  %v211 = vrsqrt.pop %v207
  %v212 = vrsqrt.pop %v208
  %v213 = vmul.f32 %v185, %v209
  %v214 = vmul.f32 %v186, %v210
  %v215 = vmul.f32 %v187, %v211
  %v216 = vmul.f32 %v188, %v212
  %v217 = vld [vmem:[%s4] sm:$0x1]
  %v219 = vlaneseq
  %v220 = vshrl.u32 %v219, 7
  %v221 = vsub.s32 0, %v220
  %v222 = vrot.slane %v217, %v221
  %v224 = vmul.f32 %v213, %v222
  %v225 = vmul.f32 %v214, %v222
  %v226 = vmul.f32 %v215, %v222
  %v227 = vmul.f32 %v216, %v222
  %v228 = vld [vmem:[%s5] sm:$0x1]
  %v230 = vlaneseq
  %v231 = vshrl.u32 %v230, 7
  %v232 = vsub.s32 0, %v231
  %v233 = vrot.slane %v228, %v232
  %v235 = vadd.f32 %v224, %v233
  %v236 = vadd.f32 %v225, %v233
  %v237 = vadd.f32 %v226, %v233
  %v238 = vadd.f32 %v227, %v233
  %v239 = vpack.c.bf16 %v236, %v235
  %v240 = vpack.c.bf16 %v238, %v237
  %v243 = vunpack.c.l.b16 %v239
  %v244 = vunpack.c.h.b16 %v239
  %v245 = vunpack.c.l.b16 %v240
  %v246 = vunpack.c.h.b16 %v240
  %v247 = vpack.c.b16 %v243, %v243
  %v248 = vpack.c.b16 %v244, %v244
  %v249 = vpack.c.b16 %v245, %v245
  %v250 = vpack.c.b16 %v246, %v246
  %255 = vst [vmem:[%s6] sm:$0xf] %v247
  %256 = vst [vmem:[%s6 + $0x4] sm:$0xf] %v248
  %257 = vst [vmem:[%s6 + $0x8] sm:$0xf] %v249
  %258 = vst [vmem:[%s6 + $0xc] sm:$0xf] %v250
  // Predicated region
  $region26: #{_lambda_.15} parent=0 // pred_check
    _
  $region27: #{_lambda_.15} parent=0 // pred_check_branch
    %260 = sbr.rel (0) target = $region29
  $region28: #{_lambda_.15} parent=0 // pred_region
    _
  $region29: #{_lambda_.15} parent=0 // pred_fallthru
    _
  // Predicated region
  $region30: #{_lambda_.15} parent=0 // pred_check
    _
  $region31: #{_lambda_.15} parent=0 // pred_check_branch
    %262 = sbr.rel (0) target = $region33
  $region32: #{_lambda_.15} parent=0 // pred_region
    _
  $region33: #{_lambda_.15} parent=0 // pred_fallthru
    _

// kernel: _lambda_.14
$region0: #{_lambda_.14}
  #allocation0 [shape = 'u32[]', space=smem, size = 0x4, offset = 0x4, fixed_abs, tag = 'smem constant byte address 0x4 - core index']
  #allocation1 [shape = 'u32[144,128]{1,0:T(1,128)}', space=vmem, size = 0x12000, scoped, tag = 'internal scratch']
  %s0 = inlined_call_operand.vmem [shape: bf16[2,16,384], index: 0, kind: input, shape index: {}, may-alias: {0,1,2}]
  %s1 = inlined_call_operand.vmem [shape: bf16[2,16,384], index: 1, kind: input, shape index: {}, may-alias: {0,1,2}]
  %s2 = inlined_call_operand.vmem [shape: bf16[2,16,384], index: 2, kind: input, shape index: {}, may-alias: {0,1,2}]
  %s3 = inlined_call_operand.vmem [shape: f32[2,1,16], index: 3, kind: input, shape index: {}]
  %s4 = inlined_call_operand.vmem [shape: bf16[2,16,128], index: 4, kind: output, shape index: {}]
  %s5 = sld [smem:[#allocation0]]
  $region172: #{_lambda_.14} parent=0
    _
  %s7 = ssub.s32 1, %s5
  %s8 = scalar_select 0, %s7, %s5
  $region1: #{_lambda_.14} parent=0
    #allocation2 [shape = 'u8[8192]{0}', space=vmem, size = 0x2000, scoped, tag = 'input window, operand 0']
    #allocation3 [shape = 'u8[8192]{0}', space=vmem, size = 0x2000, scoped, tag = 'input window, operand 1']
    #allocation4 [shape = 'u8[8192]{0}', space=vmem, size = 0x2000, scoped, tag = 'input window, operand 2']
    loop: start=0, step=1, limit=4
    $region2: #{_lambda_.14} parent=1 // loop_pre_header
      _
    $region3: #{_lambda_.14} parent=1 // loop_header
      %s10 = sphi 0, %s14
      %p11 = scmp.ge.s32.totalorder %s10, 4
      %s17 = sphi 0, %s29
      %s18 = sphi 0, %s25
      %s19 = sphi 0, %s17
      %s20 = sphi 0, %s18
      %s21 = sphi 0, %s19
      %s22 = sphi 0, %s20
      %s34 = sphi 0, %s36
      %s37 = sphi 0, %s34
      %s38 = sphi 0, %s37
      %s54 = sphi 0, %s38
      %s60 = sphi 0, %s62
      %s63 = sphi 0, %s60
      %s64 = sphi 0, %s63
      %s80 = sphi 0, %s64
      %s86 = sphi 0, %s88
      %s89 = sphi 0, %s86
      %s90 = sphi 0, %s89
      %s106 = sphi 0, %s90
      %s112 = sphi 0, %s114
      %s115 = sphi 0, %s112
      %s116 = sphi 0, %s115
      %s132 = sphi 0, %s116
      %s140 = sphi 0, %s142
      %s143 = sphi 0, %s140
      %s144 = sphi 0, %s143
      %s160 = sphi 0, %s144
    $region4: #{_lambda_.14} parent=1 // loop_header_branch
      %13 = sbr.rel (%p11) target = $region8
    $region5: #{_lambda_.14} parent=1 // loop_body
      %s15 = ssub.s32 %s10, 1
      %s16 = ssub.s32 %s10, 2
      %s23 = sadd.s32 1, %s18
      %p24 = scmp.ge.s32.totalorder %s23, 1
      %s25 = scalar_select %p24, 0, %s23
      %s26 = sadd.s32 1, %s17
      %s27 = scalar_select %p24, %s26, %s17
      %p28 = scmp.ge.s32.totalorder %s27, 2
      %s29 = scalar_select %p28, 0, %s27
      %s30 = ssub.s32 %s17, %s29
      %s31 = ssub.s32 %s18, %s25
      %s32 = sor.u32 %s30, %s31
      %p33 = scmp.eq.s32.totalorder %s32, 0
      %s35 = sadd.s32 %s34, 1
      %s36 = scalar_select %p33, %s34, %s35
      %p39 = pneg %p33
      %p40 = scmp.eq.s32.totalorder %s10, 1
      %p41 = por %p39, %p40
      %p42 = scmp.ne.s32.totalorder %s34, %s37
      %p43 = scmp.eq.s32.totalorder %s10, 0
      %p44 = por %p42, %p43
      %p45 = scmp.ne.s32.totalorder %s34, %s37
      %p46 = scmp.eq.s32.totalorder %s15, 1
      %p47 = por %p45, %p46
      %p48 = scmp.ne.s32.totalorder %s37, %s38
      %p49 = scmp.eq.s32.totalorder %s15, 0
      %p50 = por %p48, %p49
      %p51 = scmp.ne.s32.totalorder %s37, %s38
      %p52 = scmp.eq.s32.totalorder %s16, 1
      %p53 = por %p51, %p52
      %p55 = scmp.ne.s32.totalorder %s38, %s54
      %p56 = scmp.eq.s32.totalorder %s16, 0
      %p57 = por %p55, %p56
      %s58 = ssub.s32 %s17, %s29
      %p59 = scmp.eq.s32.totalorder %s58, 0
      %s61 = sadd.s32 %s60, 1
      %s62 = scalar_select %p59, %s60, %s61
      %p65 = pneg %p59
      %p66 = scmp.eq.s32.totalorder %s10, 1
      %p67 = por %p65, %p66
      %p68 = scmp.ne.s32.totalorder %s60, %s63
      %p69 = scmp.eq.s32.totalorder %s10, 0
      %p70 = por %p68, %p69
      %p71 = scmp.ne.s32.totalorder %s60, %s63
      %p72 = scmp.eq.s32.totalorder %s15, 1
      %p73 = por %p71, %p72
      %p74 = scmp.ne.s32.totalorder %s63, %s64
      %p75 = scmp.eq.s32.totalorder %s15, 0
      %p76 = por %p74, %p75
      %p77 = scmp.ne.s32.totalorder %s63, %s64
      %p78 = scmp.eq.s32.totalorder %s16, 1
      %p79 = por %p77, %p78
      %p81 = scmp.ne.s32.totalorder %s64, %s80
      %p82 = scmp.eq.s32.totalorder %s16, 0
      %p83 = por %p81, %p82
      %s84 = ssub.s32 %s17, %s29
      %p85 = scmp.eq.s32.totalorder %s84, 0
      %s87 = sadd.s32 %s86, 1
      %s88 = scalar_select %p85, %s86, %s87
      %p91 = pneg %p85
      %p92 = scmp.eq.s32.totalorder %s10, 1
      %p93 = por %p91, %p92
      %p94 = scmp.ne.s32.totalorder %s86, %s89
      %p95 = scmp.eq.s32.totalorder %s10, 0
      %p96 = por %p94, %p95
      %p97 = scmp.ne.s32.totalorder %s86, %s89
      %p98 = scmp.eq.s32.totalorder %s15, 1
      %p99 = por %p97, %p98
      %p100 = scmp.ne.s32.totalorder %s89, %s90
      %p101 = scmp.eq.s32.totalorder %s15, 0
      %p102 = por %p100, %p101
      %p103 = scmp.ne.s32.totalorder %s89, %s90
      %p104 = scmp.eq.s32.totalorder %s16, 1
      %p105 = por %p103, %p104
      %p107 = scmp.ne.s32.totalorder %s90, %s106
      %p108 = scmp.eq.s32.totalorder %s16, 0
      %p109 = por %p107, %p108
      %s110 = ssub.s32 %s17, %s29
      %p111 = scmp.eq.s32.totalorder %s110, 0
      %s113 = sadd.s32 %s112, 1
      %s114 = scalar_select %p111, %s112, %s113
      %p117 = pneg %p111
      %p118 = scmp.eq.s32.totalorder %s10, 1
      %p119 = por %p117, %p118
      %p120 = scmp.ne.s32.totalorder %s112, %s115
      %p121 = scmp.eq.s32.totalorder %s10, 0
      %p122 = por %p120, %p121
      %p123 = scmp.ne.s32.totalorder %s112, %s115
      %p124 = scmp.eq.s32.totalorder %s15, 1
      %p125 = por %p123, %p124
      %p126 = scmp.ne.s32.totalorder %s115, %s116
      %p127 = scmp.eq.s32.totalorder %s15, 0
      %p128 = por %p126, %p127
      %p129 = scmp.ne.s32.totalorder %s115, %s116
      %p130 = scmp.eq.s32.totalorder %s16, 1
      %p131 = por %p129, %p130
      %p133 = scmp.ne.s32.totalorder %s116, %s132
      %p134 = scmp.eq.s32.totalorder %s16, 0
      %p135 = por %p133, %p134
      %s136 = ssub.s32 %s17, %s29
      %s137 = ssub.s32 %s18, %s25
      %s138 = sor.u32 %s136, %s137
      %p139 = scmp.eq.s32.totalorder %s138, 0
      %s141 = sadd.s32 %s140, 1
      %s142 = scalar_select %p139, %s140, %s141
      %p145 = pneg %p139
      %p146 = scmp.eq.s32.totalorder %s10, 1
      %p147 = por %p145, %p146
      %p148 = scmp.ne.s32.totalorder %s140, %s143
      %p149 = scmp.eq.s32.totalorder %s10, 0
      %p150 = por %p148, %p149
      %p151 = scmp.ne.s32.totalorder %s140, %s143
      %p152 = scmp.eq.s32.totalorder %s15, 1
      %p153 = por %p151, %p152
      %p154 = scmp.ne.s32.totalorder %s143, %s144
      %p155 = scmp.eq.s32.totalorder %s15, 0
      %p156 = por %p154, %p155
      %p157 = scmp.ne.s32.totalorder %s143, %s144
      %p158 = scmp.eq.s32.totalorder %s16, 1
      %p159 = por %p157, %p158
      %p161 = scmp.ne.s32.totalorder %s144, %s160
      %p162 = scmp.eq.s32.totalorder %s16, 0
      %p163 = por %p161, %p162
      %p164 = scmp.le.s32.totalorder 1, %s10
      %p165 = scmp.lt.s32.totalorder %s10, 3
      %p166 = pnand %p164, %p165
      %p167 = pneg %p166
      // Predicated region
      $region9: #{_lambda_.14} parent=5 // pred_check
        _
      $region10: #{_lambda_.14} parent=5 // pred_check_branch
        %169 = sbr.rel (%p166) target = $region12
      $region11: #{_lambda_.14} parent=5 // pred_region
        %s170 = ssub.s32 %s10, 1
      $region12: #{_lambda_.14} parent=5 // pred_fallthru
        _
      %p171 = scmp.lt.s32.totalorder %s10, 2
      // Predicated region
      $region13: #{_lambda_.14} parent=5 // pred_check
        %p172 = pneg %p171
      $region14: #{_lambda_.14} parent=5 // pred_check_branch
        %174 = sbr.rel (%p172) target = $region16
      $region15: #{_lambda_.14} parent=5 // pred_region
        // Predicated region
        $region17: #{_lambda_.14} parent=15 // pred_check
          %p175 = pneg %p44
        $region18: #{_lambda_.14} parent=15 // pred_check_branch
          %177 = sbr.rel (%p175) target = $region20
        $region19: #{_lambda_.14} parent=15 // pred_region
          %s178 = sand.u32 %s34, 1
          %s179 = sand.u32 %s34, 1
          %s180 = smul.addr %s179, 8
          %s181 = scalar_lea.vmem [#allocation2], %s180
          %s182 = smul.u32 2, %s18
          %s183 = smul.addr %s182, 3
          %s184 = smul.addr %s17, 6
          %s185 = sadd.s32 %s183, %s184
          %s186 = smul.addr %s185, 4
          %s187 = scalar_lea.vmem %s0, %s186
          // Predicated region
          $region21: #{_lambda_.14} parent=19 // pred_check
            _
          $region22: #{_lambda_.14} parent=19 // pred_check_branch
            %189 = sbr.rel (0) target = $region24
          $region23: #{_lambda_.14} parent=19 // pred_region
            // Predicated region
            $region25: #{_lambda_.14} parent=23 // pred_check
              _
            $region26: #{_lambda_.14} parent=23 // pred_check_branch
              %191 = sbr.rel target = $region28
            $region27: #{_lambda_.14} parent=23 // pred_region
              // Predicated region
              $region40: #{_lambda_.14} parent=27 // pred_check
                _
              $region41: #{_lambda_.14} parent=27 // pred_check_branch
                %209 = sbr.rel (0) target = $region43
              $region42: #{_lambda_.14} parent=27 // pred_region
                loop: start=0, step=1, limit=1
                $region44: #{_lambda_.14} parent=42 // loop_pre_header
                  _
                $region45: #{_lambda_.14} parent=42 // loop_header
                  %s211 = sphi 0, %s215
                  %p212 = scmp.ge.s32.totalorder %s211, 1
                  %s216 = sphi %s187, %s187
                  %s217 = sphi %s181, %s181
                $region46: #{_lambda_.14} parent=42 // loop_header_branch
                  %214 = sbr.rel (%p212) target = $region50
                $region47: #{_lambda_.14} parent=42 // loop_body
                  _
                $region48: #{_lambda_.14} parent=42 // loop_footer
                  %s215 = sadd.s32 1, %s211
                $region49: #{_lambda_.14} parent=42 // loop_footer_branch
                  %210 = sbr.rel target = $region45
                $region50: #{_lambda_.14} parent=42 // loop_exit
                  _
                %s219 = ssub.s32 16, 1
                loop: start=0, step=1, limit=1
                $region51: #{_lambda_.14} parent=42 // loop_pre_header
                  _
                $region52: #{_lambda_.14} parent=42 // loop_header
                  %s221 = sphi 0, %s225
                  %p222 = scmp.ge.s32.totalorder %s221, 1
                  %s226 = sphi %s187, %s187
                  %s227 = sphi %s181, %s181
                $region53: #{_lambda_.14} parent=42 // loop_header_branch
                  %224 = sbr.rel (%p222) target = $region57
                $region54: #{_lambda_.14} parent=42 // loop_body
                  %v228 = vld [vmem:[%s226] sm:%s219]
                  %229 = vst [vmem:[%s227] sm:%s219] %v228
                  %v230 = vld [vmem:[%s226 + $0xc] sm:%s219]
                  %231 = vst [vmem:[%s227 + $0x4] sm:%s219] %v230
                $region55: #{_lambda_.14} parent=42 // loop_footer
                  %s225 = sadd.s32 1, %s221
                $region56: #{_lambda_.14} parent=42 // loop_footer_branch
                  %220 = sbr.rel target = $region52
                $region57: #{_lambda_.14} parent=42 // loop_exit
                  _
              $region43: #{_lambda_.14} parent=27 // pred_fallthru
                _
            $region28: #{_lambda_.14} parent=23 // pred_fallthru
              _
            // Predicated region
            $region29: #{_lambda_.14} parent=23 // pred_check
              _
            $region30: #{_lambda_.14} parent=23 // pred_check_branch
              %193 = sbr.rel (0) target = $region32
            $region31: #{_lambda_.14} parent=23 // pred_region
              %s195 = ssub.s32 16, 1
              loop: start=0, step=1, limit=1
              $region33: #{_lambda_.14} parent=31 // loop_pre_header
                _
              $region34: #{_lambda_.14} parent=31 // loop_header
                %s197 = sphi 0, %s201
                %p198 = scmp.ge.s32.totalorder %s197, 1
                %s202 = sphi %s187, %s187
                %s203 = sphi %s181, %s181
              $region35: #{_lambda_.14} parent=31 // loop_header_branch
                %200 = sbr.rel (%p198) target = $region39
              $region36: #{_lambda_.14} parent=31 // loop_body
                %v204 = vld [vmem:[%s202] sm:%s195]
                %205 = vst [vmem:[%s203] sm:%s195] %v204
                %v206 = vld [vmem:[%s202 + $0xc] sm:%s195]
                %207 = vst [vmem:[%s203 + $0x4] sm:%s195] %v206
              $region37: #{_lambda_.14} parent=31 // loop_footer
                %s201 = sadd.s32 1, %s197
              $region38: #{_lambda_.14} parent=31 // loop_footer_branch
                %196 = sbr.rel target = $region34
              $region39: #{_lambda_.14} parent=31 // loop_exit
                _
            $region32: #{_lambda_.14} parent=23 // pred_fallthru
              _
          $region24: #{_lambda_.14} parent=19 // pred_fallthru
            _
          %232 = vnop
        $region20: #{_lambda_.14} parent=15 // pred_fallthru
          _
        // Predicated region
        $region58: #{_lambda_.14} parent=15 // pred_check
          %p233 = pneg %p70
        $region59: #{_lambda_.14} parent=15 // pred_check_branch
          %235 = sbr.rel (%p233) target = $region61
        $region60: #{_lambda_.14} parent=15 // pred_region
          %s236 = sand.u32 %s60, 1
          %s237 = sand.u32 %s60, 1
          %s238 = smul.addr %s237, 8
          %s239 = scalar_lea.vmem [#allocation3], %s238
          %s240 = smul.addr %s17, 6
          %s241 = sadd.s32 1, %s240
          %s242 = smul.addr %s241, 4
          %s243 = scalar_lea.vmem %s1, %s242
          // Predicated region
          $region62: #{_lambda_.14} parent=60 // pred_check
            _
          $region63: #{_lambda_.14} parent=60 // pred_check_branch
            %245 = sbr.rel (0) target = $region65
          $region64: #{_lambda_.14} parent=60 // pred_region
            // Predicated region
            $region66: #{_lambda_.14} parent=64 // pred_check
              _
            $region67: #{_lambda_.14} parent=64 // pred_check_branch
              %247 = sbr.rel target = $region69
            $region68: #{_lambda_.14} parent=64 // pred_region
              // Predicated region
              $region81: #{_lambda_.14} parent=68 // pred_check
                _
              $region82: #{_lambda_.14} parent=68 // pred_check_branch
                %265 = sbr.rel (0) target = $region84
              $region83: #{_lambda_.14} parent=68 // pred_region
                loop: start=0, step=1, limit=1
                $region85: #{_lambda_.14} parent=83 // loop_pre_header
                  _
                $region86: #{_lambda_.14} parent=83 // loop_header
                  %s267 = sphi 0, %s271
                  %p268 = scmp.ge.s32.totalorder %s267, 1
                  %s272 = sphi %s243, %s243
                  %s273 = sphi %s239, %s239
                $region87: #{_lambda_.14} parent=83 // loop_header_branch
                  %270 = sbr.rel (%p268) target = $region91
                $region88: #{_lambda_.14} parent=83 // loop_body
                  _
                $region89: #{_lambda_.14} parent=83 // loop_footer
                  %s271 = sadd.s32 1, %s267
                $region90: #{_lambda_.14} parent=83 // loop_footer_branch
                  %266 = sbr.rel target = $region86
                $region91: #{_lambda_.14} parent=83 // loop_exit
                  _
                %s275 = ssub.s32 16, 1
                loop: start=0, step=1, limit=1
                $region92: #{_lambda_.14} parent=83 // loop_pre_header
                  _
                $region93: #{_lambda_.14} parent=83 // loop_header
                  %s277 = sphi 0, %s281
                  %p278 = scmp.ge.s32.totalorder %s277, 1
                  %s282 = sphi %s243, %s243
                  %s283 = sphi %s239, %s239
                $region94: #{_lambda_.14} parent=83 // loop_header_branch
                  %280 = sbr.rel (%p278) target = $region98
                $region95: #{_lambda_.14} parent=83 // loop_body
                  %v284 = vld [vmem:[%s282] sm:%s275]
                  %285 = vst [vmem:[%s283] sm:%s275] %v284
                  %v286 = vld [vmem:[%s282 + $0xc] sm:%s275]
                  %287 = vst [vmem:[%s283 + $0x4] sm:%s275] %v286
                $region96: #{_lambda_.14} parent=83 // loop_footer
                  %s281 = sadd.s32 1, %s277
                $region97: #{_lambda_.14} parent=83 // loop_footer_branch
                  %276 = sbr.rel target = $region93
                $region98: #{_lambda_.14} parent=83 // loop_exit
                  _
              $region84: #{_lambda_.14} parent=68 // pred_fallthru
                _
            $region69: #{_lambda_.14} parent=64 // pred_fallthru
              _
            // Predicated region
            $region70: #{_lambda_.14} parent=64 // pred_check
              _
            $region71: #{_lambda_.14} parent=64 // pred_check_branch
              %249 = sbr.rel (0) target = $region73
            $region72: #{_lambda_.14} parent=64 // pred_region
              %s251 = ssub.s32 16, 1
              loop: start=0, step=1, limit=1
              $region74: #{_lambda_.14} parent=72 // loop_pre_header
                _
              $region75: #{_lambda_.14} parent=72 // loop_header
                %s253 = sphi 0, %s257
                %p254 = scmp.ge.s32.totalorder %s253, 1
                %s258 = sphi %s243, %s243
                %s259 = sphi %s239, %s239
              $region76: #{_lambda_.14} parent=72 // loop_header_branch
                %256 = sbr.rel (%p254) target = $region80
              $region77: #{_lambda_.14} parent=72 // loop_body
                %v260 = vld [vmem:[%s258] sm:%s251]
                %261 = vst [vmem:[%s259] sm:%s251] %v260
                %v262 = vld [vmem:[%s258 + $0xc] sm:%s251]
                %263 = vst [vmem:[%s259 + $0x4] sm:%s251] %v262
              $region78: #{_lambda_.14} parent=72 // loop_footer
                %s257 = sadd.s32 1, %s253
              $region79: #{_lambda_.14} parent=72 // loop_footer_branch
                %252 = sbr.rel target = $region75
              $region80: #{_lambda_.14} parent=72 // loop_exit
                _
            $region73: #{_lambda_.14} parent=64 // pred_fallthru
              _
          $region65: #{_lambda_.14} parent=60 // pred_fallthru
            _
          %288 = vnop
        $region61: #{_lambda_.14} parent=15 // pred_fallthru
          _
        // Predicated region
        $region99: #{_lambda_.14} parent=15 // pred_check
          %p289 = pneg %p96
        $region100: #{_lambda_.14} parent=15 // pred_check_branch
          %291 = sbr.rel (%p289) target = $region102
        $region101: #{_lambda_.14} parent=15 // pred_region
          %s292 = sand.u32 %s86, 1
          %s293 = sand.u32 %s86, 1
          %s294 = smul.addr %s293, 8
          %s295 = scalar_lea.vmem [#allocation4], %s294
          %s296 = smul.addr %s17, 6
          %s297 = sadd.s32 2, %s296
          %s298 = smul.addr %s297, 4
          %s299 = scalar_lea.vmem %s2, %s298
          // Predicated region
          $region103: #{_lambda_.14} parent=101 // pred_check
            _
          $region104: #{_lambda_.14} parent=101 // pred_check_branch
            %301 = sbr.rel (0) target = $region106
          $region105: #{_lambda_.14} parent=101 // pred_region
            // Predicated region
            $region107: #{_lambda_.14} parent=105 // pred_check
              _
            $region108: #{_lambda_.14} parent=105 // pred_check_branch
              %303 = sbr.rel target = $region110
            $region109: #{_lambda_.14} parent=105 // pred_region
              // Predicated region
              $region122: #{_lambda_.14} parent=109 // pred_check
                _
              $region123: #{_lambda_.14} parent=109 // pred_check_branch
                %321 = sbr.rel (0) target = $region125
              $region124: #{_lambda_.14} parent=109 // pred_region
                loop: start=0, step=1, limit=1
                $region126: #{_lambda_.14} parent=124 // loop_pre_header
                  _
                $region127: #{_lambda_.14} parent=124 // loop_header
                  %s323 = sphi 0, %s327
                  %p324 = scmp.ge.s32.totalorder %s323, 1
                  %s328 = sphi %s299, %s299
                  %s329 = sphi %s295, %s295
                $region128: #{_lambda_.14} parent=124 // loop_header_branch
                  %326 = sbr.rel (%p324) target = $region132
                $region129: #{_lambda_.14} parent=124 // loop_body
                  _
                $region130: #{_lambda_.14} parent=124 // loop_footer
                  %s327 = sadd.s32 1, %s323
                $region131: #{_lambda_.14} parent=124 // loop_footer_branch
                  %322 = sbr.rel target = $region127
                $region132: #{_lambda_.14} parent=124 // loop_exit
                  _
                %s331 = ssub.s32 16, 1
                loop: start=0, step=1, limit=1
                $region133: #{_lambda_.14} parent=124 // loop_pre_header
                  _
                $region134: #{_lambda_.14} parent=124 // loop_header
                  %s333 = sphi 0, %s337
                  %p334 = scmp.ge.s32.totalorder %s333, 1
                  %s338 = sphi %s299, %s299
                  %s339 = sphi %s295, %s295
                $region135: #{_lambda_.14} parent=124 // loop_header_branch
                  %336 = sbr.rel (%p334) target = $region139
                $region136: #{_lambda_.14} parent=124 // loop_body
                  %v340 = vld [vmem:[%s338] sm:%s331]
                  %341 = vst [vmem:[%s339] sm:%s331] %v340
                  %v342 = vld [vmem:[%s338 + $0xc] sm:%s331]
                  %343 = vst [vmem:[%s339 + $0x4] sm:%s331] %v342
                $region137: #{_lambda_.14} parent=124 // loop_footer
                  %s337 = sadd.s32 1, %s333
                $region138: #{_lambda_.14} parent=124 // loop_footer_branch
                  %332 = sbr.rel target = $region134
                $region139: #{_lambda_.14} parent=124 // loop_exit
                  _
              $region125: #{_lambda_.14} parent=109 // pred_fallthru
                _
            $region110: #{_lambda_.14} parent=105 // pred_fallthru
              _
            // Predicated region
            $region111: #{_lambda_.14} parent=105 // pred_check
              _
            $region112: #{_lambda_.14} parent=105 // pred_check_branch
              %305 = sbr.rel (0) target = $region114
            $region113: #{_lambda_.14} parent=105 // pred_region
              %s307 = ssub.s32 16, 1
              loop: start=0, step=1, limit=1
              $region115: #{_lambda_.14} parent=113 // loop_pre_header
                _
              $region116: #{_lambda_.14} parent=113 // loop_header
                %s309 = sphi 0, %s313
                %p310 = scmp.ge.s32.totalorder %s309, 1
                %s314 = sphi %s299, %s299
                %s315 = sphi %s295, %s295
              $region117: #{_lambda_.14} parent=113 // loop_header_branch
                %312 = sbr.rel (%p310) target = $region121
              $region118: #{_lambda_.14} parent=113 // loop_body
                %v316 = vld [vmem:[%s314] sm:%s307]
                %317 = vst [vmem:[%s315] sm:%s307] %v316
                %v318 = vld [vmem:[%s314 + $0xc] sm:%s307]
                %319 = vst [vmem:[%s315 + $0x4] sm:%s307] %v318
              $region119: #{_lambda_.14} parent=113 // loop_footer
                %s313 = sadd.s32 1, %s309
              $region120: #{_lambda_.14} parent=113 // loop_footer_branch
                %308 = sbr.rel target = $region116
              $region121: #{_lambda_.14} parent=113 // loop_exit
                _
            $region114: #{_lambda_.14} parent=105 // pred_fallthru
              _
          $region106: #{_lambda_.14} parent=101 // pred_fallthru
            _
          %344 = vnop
        $region102: #{_lambda_.14} parent=15 // pred_fallthru
          _
        // Predicated region
        $region140: #{_lambda_.14} parent=15 // pred_check
          %p345 = pneg %p122
        $region141: #{_lambda_.14} parent=15 // pred_check_branch
          %347 = sbr.rel (%p345) target = $region143
        $region142: #{_lambda_.14} parent=15 // pred_region
          %p348 = scmp.lt.s32.totalorder %s17, 1
          %s349 = scalar_select %p348, %s17, 1
          %s350 = scalar_lea.vmem %s3, %s349
        $region143: #{_lambda_.14} parent=15 // pred_fallthru
          _
      $region16: #{_lambda_.14} parent=5 // pred_fallthru
        _
      %p351 = scmp.le.s32.totalorder 1, %s10
      %p352 = scmp.lt.s32.totalorder %s10, 3
      %p353 = pnand %p351, %p352
      %p354 = pneg %p353
      // Predicated region
      $region144: #{_lambda_.14} parent=5 // pred_check
        _
      $region145: #{_lambda_.14} parent=5 // pred_check_branch
        %356 = sbr.rel (%p353) target = $region147
      $region146: #{_lambda_.14} parent=5 // pred_region
        %s357 = ssub.s32 %s10, 1
        %s358 = sand.u32 %s37, 1
        %s359 = sand.u32 %s37, 1
        %s360 = smul.addr %s359, 8
        %s361 = scalar_lea.vmem [#allocation2], %s360
        // Predicated region
        $region148: #{_lambda_.14} parent=146 // pred_check
          %p362 = pneg %p50
        $region149: #{_lambda_.14} parent=146 // pred_check_branch
          %364 = sbr.rel (%p362) target = $region151
        $region150: #{_lambda_.14} parent=146 // pred_region
          _
        $region151: #{_lambda_.14} parent=146 // pred_fallthru
          _
        %s365 = sand.u32 %s63, 1
        %s366 = sand.u32 %s63, 1
        %s367 = smul.addr %s366, 8
        %s368 = scalar_lea.vmem [#allocation3], %s367
        // Predicated region
        $region152: #{_lambda_.14} parent=146 // pred_check
          %p369 = pneg %p76
        $region153: #{_lambda_.14} parent=146 // pred_check_branch
          %371 = sbr.rel (%p369) target = $region155
        $region154: #{_lambda_.14} parent=146 // pred_region
          _
        $region155: #{_lambda_.14} parent=146 // pred_fallthru
          _
        %s372 = sand.u32 %s89, 1
        %s373 = sand.u32 %s89, 1
        %s374 = smul.addr %s373, 8
        %s375 = scalar_lea.vmem [#allocation4], %s374
        // Predicated region
        $region156: #{_lambda_.14} parent=146 // pred_check
          %p376 = pneg %p102
        $region157: #{_lambda_.14} parent=146 // pred_check_branch
          %378 = sbr.rel (%p376) target = $region159
        $region158: #{_lambda_.14} parent=146 // pred_region
          _
        $region159: #{_lambda_.14} parent=146 // pred_fallthru
          _
        %s379 = sand.u32 %s37, 1
        %s380 = sand.u32 %s37, 1
        %s381 = smul.addr %s380, 8
        %s382 = scalar_lea.vmem [#allocation2], %s381
        %p383 = pneg %p50
        %p384 = pneg %p47
        %s385 = sand.u32 %s63, 1
        %s386 = sand.u32 %s63, 1
        %s387 = smul.addr %s386, 8
        %s388 = scalar_lea.vmem [#allocation3], %s387
        %p389 = pneg %p76
        %p390 = pneg %p73
        %s391 = sand.u32 %s89, 1
        %s392 = sand.u32 %s89, 1
        %s393 = smul.addr %s392, 8
        %s394 = scalar_lea.vmem [#allocation4], %s393
        %p395 = pneg %p102
        %p396 = pneg %p99
        %p397 = scmp.lt.s32.totalorder %s19, 1
        %s398 = scalar_select %p397, %s19, 1
        %s399 = scalar_lea.vmem %s3, %s398
        %p400 = pneg %p128
        %p401 = pneg %p125
        %p402 = pneg %p156
        %p403 = pneg %p153
        %s404 = smul.u32 2, %s20
        %p405 = scmp.lt.s32.totalorder %s19, 1
        %s406 = scalar_select %p405, %s19, 1
        %p407 = scmp.lt.s32.totalorder %s404, 1
        %s408 = scalar_select %p407, %s404, 1
        %s409 = smul.addr %s406, 2
        %s410 = sadd.s32 %s408, %s409
        %s411 = smul.addr %s410, 4
        %s412 = scalar_lea.vmem %s4, %s411
        %s413 = smul.u32 2, %s20
        %p414 = scmp.lt.s32.totalorder %s19, 1
        %s415 = scalar_select %p414, %s19, 1
        %s416 = scalar_lea.vmem %s3, %s415
        %s417 = smul.u32 2, %s20
        %p418 = scmp.lt.s32.totalorder %s19, 1
        %s419 = scalar_select %p418, %s19, 1
        %p420 = scmp.lt.s32.totalorder %s417, 1
        %s421 = scalar_select %p420, %s417, 1
        %s422 = smul.addr %s419, 2
        %s423 = sadd.s32 %s421, %s422
        %s424 = smul.addr %s423, 4
        %s425 = scalar_lea.vmem %s4, %s424
        %s426 = smul.u32 2, %s20
        %v428 = vld [vmem:[%s361] sm:$0xf]
        %v429 = vld [vmem:[%s361 + $0x4] sm:$0xf]
        %v430 = vld [vmem:[%s368] sm:$0xf]
        %v431 = vld [vmem:[%s368 + $0x4] sm:$0xf]
        %v432 = vld [vmem:[%s375] sm:$0xf]
        %v433 = vld [vmem:[%s375 + $0x4] sm:$0xf]
        %v434 = vld [vmem:[%s416] sm:$0x1]
        %v436 = vlaneseq
        %v437 = vshrl.u32 %v436, 7
        %v438 = vsub.s32 0, %v437
        %v439 = vrot.slane %v434, %v438
        %v443 = vunpack.c.l.b16 %v428
        %v444 = vunpack.c.l.b16 %v429
        %v445 = vpack.c.b16 %v444, %v443
        %v448 = vunpack.c.l.b16 %v430
        %v449 = vunpack.c.l.b16 %v431
        %v450 = vpack.c.b16 %v449, %v448
        %vm451 = vcmask 261120
        %v453 = vsel %vm451, %v445, 0
        %v456 = vsel %vm451, %v450, 0
        %458 = vmatprep.subr.bf16.mxu0 0
        %459 = vmatpush1.bf16.xpose.msra.mxu0 0
        %460 = vmatprep.subr.bf16.mxu0 0
        %461 = vmatpush1.bf16.xpose.msra.mxu0 0
        %462 = vmatprep.subr.bf16.mxu0 0
        %463 = vmatpush1.bf16.xpose.msra.mxu0 0
        %464 = vmatprep.subr.bf16.mxu0 0
        %465 = vmatpush1.bf16.xpose.msra.mxu0 0
        %466 = vmatprep.subr.bf16.mxu0 0
        %467 = vmatpush1.bf16.xpose.msra.mxu0 0
        %468 = vmatprep.subr.bf16.mxu0 0
        %469 = vmatpush1.bf16.xpose.msra.mxu0 0
        %470 = vmatprep.subr.bf16.mxu0 0
        %471 = vmatpush1.bf16.xpose.msra.mxu0 0
        %472 = vmatprep.subr.bf16.mxu0 0
        %473 = vmatpush1.bf16.xpose.msra.mxu0 %v456
        %474 = vmatprep.subr.bf16.mxu0 0
        %475 = vmatpush2.bf16.xpose.msra.mxu0 0
        %476 = vmatprep.subr.bf16.mxu0 0
        %477 = vmatpush2.bf16.xpose.msra.mxu0 0
        %478 = vmatprep.subr.bf16.mxu0 0
        %479 = vmatpush2.bf16.xpose.msra.mxu0 0
        %480 = vmatprep.subr.bf16.mxu0 0
        %481 = vmatpush2.bf16.xpose.msra.mxu0 0
        %482 = vmatprep.subr.bf16.mxu0 0
        %483 = vmatpush2.bf16.xpose.msra.mxu0 0
        %484 = vmatprep.subr.bf16.mxu0 0
        %485 = vmatpush2.bf16.xpose.msra.mxu0 0
        %486 = vmatprep.subr.bf16.mxu0 0
        %487 = vmatpush2.bf16.xpose.msra.mxu0 0
        %488 = vmatprep.subr.bf16.mxu0 0
        %489 = vmatpush2.bf16.xpose.msra.mxu0 0
        %490 = vmatprep.mubr.bf16.mxu0 0
        %491 = vmatmul.mubr.bf16.gmra.mxu0 %v453
        %v492 = vpop.f32.mrf.mxu0
        %v493 = vadd.f32 %v439, %v492
        %v494 = vpop.f32.mrf.mxu0
        %v495 = vpop.f32.mrf.mxu0
        %v496 = vadd.f32 %v439, %v495
        %v497 = vpop.f32.mrf.mxu0
        %498 = vdwg.mxu0
        %vm499 = vcmask 130048
        %v500 = vsel %vm499, %v493, -inf
        %501 = vmax.xlane.f32.xlu0 %v500
        %v502 = vpop.xlane.xlu0 %501
        %v503 = vsel %vm499, %v496, -inf
        %504 = vmax.xlane.f32.xlu0 %v503
        %v505 = vpop.xlane.xlu0 %504
        %v506 = vsub.f32 %v493, %v502
        %v507 = vsub.f32 %v496, %v505
        %v508 = vmul.f32 %v506, 1.442695
        %v509 = vpow.pop %v508
        %v510 = vmul.f32 %v507, 1.442695
        %v511 = vpow.pop %v510
        %v512 = vsel %vm499, %v509, 0.0
        %513 = vadd.xlane.f32.xlu0 %v512
        %v514 = vpop.xlane.xlu0 %513
        %v515 = vsel %vm499, %v511, 0.0
        %516 = vadd.xlane.f32.xlu0 %v515
        %v517 = vpop.xlane.xlu0 %516
        %v518 = vpack.c.bf16 %v511, %v509
        %v521 = vunpack.c.l.b16 %v432
        %v522 = vunpack.c.l.b16 %v433
        %v523 = vpack.c.b16 %v522, %v521
        %v526 = vsel %vm499, %v518, 0
        %528 = vmatprep.subr.bf16.mxu0 0
        %529 = vmatpush1.bf16.msra.mxu0 0
        %530 = vmatprep.subr.bf16.mxu0 0
        %531 = vmatpush1.bf16.msra.mxu0 0
        %532 = vmatprep.subr.bf16.mxu0 0
        %533 = vmatpush1.bf16.msra.mxu0 0
        %534 = vmatprep.subr.bf16.mxu0 0
        %535 = vmatpush1.bf16.msra.mxu0 0
        %536 = vmatprep.subr.bf16.mxu0 0
        %537 = vmatpush1.bf16.msra.mxu0 0
        %538 = vmatprep.subr.bf16.mxu0 0
        %539 = vmatpush1.bf16.msra.mxu0 0
        %540 = vmatprep.subr.bf16.mxu0 0
        %541 = vmatpush1.bf16.msra.mxu0 0
        %542 = vmatprep.subr.bf16.mxu0 0
        %543 = vmatpush1.bf16.msra.mxu0 %v523
        %544 = vmatprep.subr.bf16.mxu0 0
        %545 = vmatpush2.bf16.msra.mxu0 0
        %546 = vmatprep.subr.bf16.mxu0 0
        %547 = vmatpush2.bf16.msra.mxu0 0
        %548 = vmatprep.subr.bf16.mxu0 0
        %549 = vmatpush2.bf16.msra.mxu0 0
        %550 = vmatprep.subr.bf16.mxu0 0
        %551 = vmatpush2.bf16.msra.mxu0 0
        %552 = vmatprep.subr.bf16.mxu0 0
        %553 = vmatpush2.bf16.msra.mxu0 0
        %554 = vmatprep.subr.bf16.mxu0 0
        %555 = vmatpush2.bf16.msra.mxu0 0
        %556 = vmatprep.subr.bf16.mxu0 0
        %557 = vmatpush2.bf16.msra.mxu0 0
        %558 = vmatprep.subr.bf16.mxu0 0
        %559 = vmatpush2.bf16.msra.mxu0 0
        %560 = vmatprep.mubr.bf16.mxu0 0
        %561 = vmatmul.mubr.bf16.gmra.mxu0 %v526
        %v562 = vpop.f32.mrf.mxu0
        %v563 = vadd.f32 0.0, %v562
        %v564 = vpop.f32.mrf.mxu0
        %v565 = vpop.f32.mrf.mxu0
        %v566 = vadd.f32 0.0, %v565
        %v567 = vpop.f32.mrf.mxu0
        %568 = vdwg.mxu0
        %v569 = vrcp.pop %v514
        %v570 = vrcp.pop %v517
        %v571 = vmul.f32 %v563, %v569
        %v572 = vmul.f32 %v566, %v570
        %573 = vrot.lane.b32.xlu0 %v445, 96
        %v574 = vpop.permute.xlu0 %573
        %575 = vrot.lane.b32.xlu0 %v450, 96
        %v576 = vpop.permute.xlu0 %575
        %v578 = vsel %vm451, %v574, 0
        %v581 = vsel %vm451, %v576, 0
        %583 = vmatprep.subr.bf16.mxu0 0
        %584 = vmatpush1.bf16.xpose.msra.mxu0 0
        %585 = vmatprep.subr.bf16.mxu0 0
        %586 = vmatpush1.bf16.xpose.msra.mxu0 0
        %587 = vmatprep.subr.bf16.mxu0 0
        %588 = vmatpush1.bf16.xpose.msra.mxu0 0
        %589 = vmatprep.subr.bf16.mxu0 0
        %590 = vmatpush1.bf16.xpose.msra.mxu0 0
        %591 = vmatprep.subr.bf16.mxu0 0
        %592 = vmatpush1.bf16.xpose.msra.mxu0 0
        %593 = vmatprep.subr.bf16.mxu0 0
        %594 = vmatpush1.bf16.xpose.msra.mxu0 0
        %595 = vmatprep.subr.bf16.mxu0 0
        %596 = vmatpush1.bf16.xpose.msra.mxu0 0
        %597 = vmatprep.subr.bf16.mxu0 0
        %598 = vmatpush1.bf16.xpose.msra.mxu0 %v581
        %599 = vmatprep.subr.bf16.mxu0 0
        %600 = vmatpush2.bf16.xpose.msra.mxu0 0
        %601 = vmatprep.subr.bf16.mxu0 0
        %602 = vmatpush2.bf16.xpose.msra.mxu0 0
        %603 = vmatprep.subr.bf16.mxu0 0
        %604 = vmatpush2.bf16.xpose.msra.mxu0 0
        %605 = vmatprep.subr.bf16.mxu0 0
        %606 = vmatpush2.bf16.xpose.msra.mxu0 0
        %607 = vmatprep.subr.bf16.mxu0 0
        %608 = vmatpush2.bf16.xpose.msra.mxu0 0
        %609 = vmatprep.subr.bf16.mxu0 0
        %610 = vmatpush2.bf16.xpose.msra.mxu0 0
        %611 = vmatprep.subr.bf16.mxu0 0
        %612 = vmatpush2.bf16.xpose.msra.mxu0 0
        %613 = vmatprep.subr.bf16.mxu0 0
        %614 = vmatpush2.bf16.xpose.msra.mxu0 0
        %615 = vmatprep.mubr.bf16.mxu0 0
        %616 = vmatmul.mubr.bf16.gmra.mxu0 %v578
        %v617 = vpop.f32.mrf.mxu0
        %v618 = vadd.f32 %v439, %v617
        %v619 = vpop.f32.mrf.mxu0
        %v620 = vpop.f32.mrf.mxu0
        %v621 = vadd.f32 %v439, %v620
        %v622 = vpop.f32.mrf.mxu0
        %623 = vdwg.mxu0
        %v624 = vsel %vm499, %v618, -inf
        %625 = vmax.xlane.f32.xlu0 %v624
        %v626 = vpop.xlane.xlu0 %625
        %v627 = vsel %vm499, %v621, -inf
        %628 = vmax.xlane.f32.xlu0 %v627
        %v629 = vpop.xlane.xlu0 %628
        %v630 = vsub.f32 %v618, %v626
        %v631 = vsub.f32 %v621, %v629
        %v632 = vmul.f32 %v630, 1.442695
        %v633 = vpow.pop %v632
        %v634 = vmul.f32 %v631, 1.442695
        %v635 = vpow.pop %v634
        %v636 = vsel %vm499, %v633, 0.0
        %637 = vadd.xlane.f32.xlu0 %v636
        %v638 = vpop.xlane.xlu0 %637
        %v639 = vsel %vm499, %v635, 0.0
        %640 = vadd.xlane.f32.xlu0 %v639
        %v641 = vpop.xlane.xlu0 %640
        %v642 = vpack.c.bf16 %v635, %v633
        %643 = vrot.lane.b32.xlu0 %v523, 96
        %v644 = vpop.permute.xlu0 %643
        %v647 = vsel %vm499, %v642, 0
        %649 = vmatprep.subr.bf16.mxu0 0
        %650 = vmatpush1.bf16.msra.mxu0 0
        %651 = vmatprep.subr.bf16.mxu0 0
        %652 = vmatpush1.bf16.msra.mxu0 0
        %653 = vmatprep.subr.bf16.mxu0 0
        %654 = vmatpush1.bf16.msra.mxu0 0
        %655 = vmatprep.subr.bf16.mxu0 0
        %656 = vmatpush1.bf16.msra.mxu0 0
        %657 = vmatprep.subr.bf16.mxu0 0
        %658 = vmatpush1.bf16.msra.mxu0 0
        %659 = vmatprep.subr.bf16.mxu0 0
        %660 = vmatpush1.bf16.msra.mxu0 0
        %661 = vmatprep.subr.bf16.mxu0 0
        %662 = vmatpush1.bf16.msra.mxu0 0
        %663 = vmatprep.subr.bf16.mxu0 0
        %664 = vmatpush1.bf16.msra.mxu0 %v644
        %665 = vmatprep.subr.bf16.mxu0 0
        %666 = vmatpush2.bf16.msra.mxu0 0
        %667 = vmatprep.subr.bf16.mxu0 0
        %668 = vmatpush2.bf16.msra.mxu0 0
        %669 = vmatprep.subr.bf16.mxu0 0
        %670 = vmatpush2.bf16.msra.mxu0 0
        %671 = vmatprep.subr.bf16.mxu0 0
        %672 = vmatpush2.bf16.msra.mxu0 0
        %673 = vmatprep.subr.bf16.mxu0 0
        %674 = vmatpush2.bf16.msra.mxu0 0
        %675 = vmatprep.subr.bf16.mxu0 0
        %676 = vmatpush2.bf16.msra.mxu0 0
        %677 = vmatprep.subr.bf16.mxu0 0
        %678 = vmatpush2.bf16.msra.mxu0 0
        %679 = vmatprep.subr.bf16.mxu0 0
        %680 = vmatpush2.bf16.msra.mxu0 0
        %681 = vmatprep.mubr.bf16.mxu0 0
        %682 = vmatmul.mubr.bf16.gmra.mxu0 %v647
        %v683 = vpop.f32.mrf.mxu0
        %v684 = vadd.f32 0.0, %v683
        %v685 = vpop.f32.mrf.mxu0
        %v686 = vpop.f32.mrf.mxu0
        %v687 = vadd.f32 0.0, %v686
        %v688 = vpop.f32.mrf.mxu0
        %689 = vdwg.mxu0
        %v690 = vrcp.pop %v638
        %v691 = vrcp.pop %v641
        %v692 = vmul.f32 %v684, %v690
        %v693 = vmul.f32 %v687, %v691
        %694 = vrot.lane.b32.xlu0 %v445, 64
        %v695 = vpop.permute.xlu0 %694
        %696 = vrot.lane.b32.xlu0 %v450, 64
        %v697 = vpop.permute.xlu0 %696
        %v699 = vsel %vm451, %v695, 0
        %v702 = vsel %vm451, %v697, 0
        %704 = vmatprep.subr.bf16.mxu0 0
        %705 = vmatpush1.bf16.xpose.msra.mxu0 0
        %706 = vmatprep.subr.bf16.mxu0 0
        %707 = vmatpush1.bf16.xpose.msra.mxu0 0
        %708 = vmatprep.subr.bf16.mxu0 0
        %709 = vmatpush1.bf16.xpose.msra.mxu0 0
        %710 = vmatprep.subr.bf16.mxu0 0
        %711 = vmatpush1.bf16.xpose.msra.mxu0 0
        %712 = vmatprep.subr.bf16.mxu0 0
        %713 = vmatpush1.bf16.xpose.msra.mxu0 0
        %714 = vmatprep.subr.bf16.mxu0 0
        %715 = vmatpush1.bf16.xpose.msra.mxu0 0
        %716 = vmatprep.subr.bf16.mxu0 0
        %717 = vmatpush1.bf16.xpose.msra.mxu0 0
        %718 = vmatprep.subr.bf16.mxu0 0
        %719 = vmatpush1.bf16.xpose.msra.mxu0 %v702
        %720 = vmatprep.subr.bf16.mxu0 0
        %721 = vmatpush2.bf16.xpose.msra.mxu0 0
        %722 = vmatprep.subr.bf16.mxu0 0
        %723 = vmatpush2.bf16.xpose.msra.mxu0 0
        %724 = vmatprep.subr.bf16.mxu0 0
        %725 = vmatpush2.bf16.xpose.msra.mxu0 0
        %726 = vmatprep.subr.bf16.mxu0 0
        %727 = vmatpush2.bf16.xpose.msra.mxu0 0
        %728 = vmatprep.subr.bf16.mxu0 0
        %729 = vmatpush2.bf16.xpose.msra.mxu0 0
        %730 = vmatprep.subr.bf16.mxu0 0
        %731 = vmatpush2.bf16.xpose.msra.mxu0 0
        %732 = vmatprep.subr.bf16.mxu0 0
        %733 = vmatpush2.bf16.xpose.msra.mxu0 0
        %734 = vmatprep.subr.bf16.mxu0 0
        %735 = vmatpush2.bf16.xpose.msra.mxu0 0
        %736 = vmatprep.mubr.bf16.mxu0 0
        %737 = vmatmul.mubr.bf16.gmra.mxu0 %v699
        %v738 = vpop.f32.mrf.mxu0
        %v739 = vadd.f32 %v439, %v738
        %v740 = vpop.f32.mrf.mxu0
        %v741 = vpop.f32.mrf.mxu0
        %v742 = vadd.f32 %v439, %v741
        %v743 = vpop.f32.mrf.mxu0
        %744 = vdwg.mxu0
        %v745 = vsel %vm499, %v739, -inf
        %746 = vmax.xlane.f32.xlu0 %v745
        %v747 = vpop.xlane.xlu0 %746
        %v748 = vsel %vm499, %v742, -inf
        %749 = vmax.xlane.f32.xlu0 %v748
        %v750 = vpop.xlane.xlu0 %749
        %v751 = vsub.f32 %v739, %v747
        %v752 = vsub.f32 %v742, %v750
        %v753 = vmul.f32 %v751, 1.442695
        %v754 = vpow.pop %v753
        %v755 = vmul.f32 %v752, 1.442695
        %v756 = vpow.pop %v755
        %v757 = vsel %vm499, %v754, 0.0
        %758 = vadd.xlane.f32.xlu0 %v757
        %v759 = vpop.xlane.xlu0 %758
        %v760 = vsel %vm499, %v756, 0.0
        %761 = vadd.xlane.f32.xlu0 %v760
        %v762 = vpop.xlane.xlu0 %761
        %v763 = vpack.c.bf16 %v756, %v754
        %764 = vrot.lane.b32.xlu0 %v523, 64
        %v765 = vpop.permute.xlu0 %764
        %v768 = vsel %vm499, %v763, 0
        %770 = vmatprep.subr.bf16.mxu0 0
        %771 = vmatpush1.bf16.msra.mxu0 0
        %772 = vmatprep.subr.bf16.mxu0 0
        %773 = vmatpush1.bf16.msra.mxu0 0
        %774 = vmatprep.subr.bf16.mxu0 0
        %775 = vmatpush1.bf16.msra.mxu0 0
        %776 = vmatprep.subr.bf16.mxu0 0
        %777 = vmatpush1.bf16.msra.mxu0 0
        %778 = vmatprep.subr.bf16.mxu0 0
        %779 = vmatpush1.bf16.msra.mxu0 0
        %780 = vmatprep.subr.bf16.mxu0 0
        %781 = vmatpush1.bf16.msra.mxu0 0
        %782 = vmatprep.subr.bf16.mxu0 0
        %783 = vmatpush1.bf16.msra.mxu0 0
        %784 = vmatprep.subr.bf16.mxu0 0
        %785 = vmatpush1.bf16.msra.mxu0 %v765
        %786 = vmatprep.subr.bf16.mxu0 0
        %787 = vmatpush2.bf16.msra.mxu0 0
        %788 = vmatprep.subr.bf16.mxu0 0
        %789 = vmatpush2.bf16.msra.mxu0 0
        %790 = vmatprep.subr.bf16.mxu0 0
        %791 = vmatpush2.bf16.msra.mxu0 0
        %792 = vmatprep.subr.bf16.mxu0 0
        %793 = vmatpush2.bf16.msra.mxu0 0
        %794 = vmatprep.subr.bf16.mxu0 0
        %795 = vmatpush2.bf16.msra.mxu0 0
        %796 = vmatprep.subr.bf16.mxu0 0
        %797 = vmatpush2.bf16.msra.mxu0 0
        %798 = vmatprep.subr.bf16.mxu0 0
        %799 = vmatpush2.bf16.msra.mxu0 0
        %800 = vmatprep.subr.bf16.mxu0 0
        %801 = vmatpush2.bf16.msra.mxu0 0
        %802 = vmatprep.mubr.bf16.mxu0 0
        %803 = vmatmul.mubr.bf16.gmra.mxu0 %v768
        %v804 = vpop.f32.mrf.mxu0
        %v805 = vadd.f32 0.0, %v804
        %v806 = vpop.f32.mrf.mxu0
        %v807 = vpop.f32.mrf.mxu0
        %v808 = vadd.f32 0.0, %v807
        %v809 = vpop.f32.mrf.mxu0
        %810 = vdwg.mxu0
        %v811 = vrcp.pop %v759
        %v812 = vrcp.pop %v762
        %v813 = vmul.f32 %v805, %v811
        %v814 = vmul.f32 %v808, %v812
        %815 = vrot.lane.b32.xlu0 %v445, 32
        %v816 = vpop.permute.xlu0 %815
        %817 = vrot.lane.b32.xlu0 %v450, 32
        %v818 = vpop.permute.xlu0 %817
        %v820 = vsel %vm451, %v816, 0
        %v823 = vsel %vm451, %v818, 0
        %825 = vmatprep.subr.bf16.mxu0 0
        %826 = vmatpush1.bf16.xpose.msra.mxu0 0
        %827 = vmatprep.subr.bf16.mxu0 0
        %828 = vmatpush1.bf16.xpose.msra.mxu0 0
        %829 = vmatprep.subr.bf16.mxu0 0
        %830 = vmatpush1.bf16.xpose.msra.mxu0 0
        %831 = vmatprep.subr.bf16.mxu0 0
        %832 = vmatpush1.bf16.xpose.msra.mxu0 0
        %833 = vmatprep.subr.bf16.mxu0 0
        %834 = vmatpush1.bf16.xpose.msra.mxu0 0
        %835 = vmatprep.subr.bf16.mxu0 0
        %836 = vmatpush1.bf16.xpose.msra.mxu0 0
        %837 = vmatprep.subr.bf16.mxu0 0
        %838 = vmatpush1.bf16.xpose.msra.mxu0 0
        %839 = vmatprep.subr.bf16.mxu0 0
        %840 = vmatpush1.bf16.xpose.msra.mxu0 %v823
        %841 = vmatprep.subr.bf16.mxu0 0
        %842 = vmatpush2.bf16.xpose.msra.mxu0 0
        %843 = vmatprep.subr.bf16.mxu0 0
        %844 = vmatpush2.bf16.xpose.msra.mxu0 0
        %845 = vmatprep.subr.bf16.mxu0 0
        %846 = vmatpush2.bf16.xpose.msra.mxu0 0
        %847 = vmatprep.subr.bf16.mxu0 0
        %848 = vmatpush2.bf16.xpose.msra.mxu0 0
        %849 = vmatprep.subr.bf16.mxu0 0
        %850 = vmatpush2.bf16.xpose.msra.mxu0 0
        %851 = vmatprep.subr.bf16.mxu0 0
        %852 = vmatpush2.bf16.xpose.msra.mxu0 0
        %853 = vmatprep.subr.bf16.mxu0 0
        %854 = vmatpush2.bf16.xpose.msra.mxu0 0
        %855 = vmatprep.subr.bf16.mxu0 0
        %856 = vmatpush2.bf16.xpose.msra.mxu0 0
        %857 = vmatprep.mubr.bf16.mxu0 0
        %858 = vmatmul.mubr.bf16.gmra.mxu0 %v820
        %v859 = vpop.f32.mrf.mxu0
        %v860 = vadd.f32 %v439, %v859
        %v861 = vpop.f32.mrf.mxu0
        %v862 = vpop.f32.mrf.mxu0
        %v863 = vadd.f32 %v439, %v862
        %v864 = vpop.f32.mrf.mxu0
        %865 = vdwg.mxu0
        %v866 = vsel %vm499, %v860, -inf
        %867 = vmax.xlane.f32.xlu0 %v866
        %v868 = vpop.xlane.xlu0 %867
        %v869 = vsel %vm499, %v863, -inf
        %870 = vmax.xlane.f32.xlu0 %v869
        %v871 = vpop.xlane.xlu0 %870
        %v872 = vsub.f32 %v860, %v868
        %v873 = vsub.f32 %v863, %v871
        %v874 = vmul.f32 %v872, 1.442695
        %v875 = vpow.pop %v874
        %v876 = vmul.f32 %v873, 1.442695
        %v877 = vpow.pop %v876
        %v878 = vsel %vm499, %v875, 0.0
        %879 = vadd.xlane.f32.xlu0 %v878
        %v880 = vpop.xlane.xlu0 %879
        %v881 = vsel %vm499, %v877, 0.0
        %882 = vadd.xlane.f32.xlu0 %v881
        %v883 = vpop.xlane.xlu0 %882
        %v884 = vpack.c.bf16 %v877, %v875
        %885 = vrot.lane.b32.xlu0 %v523, 32
        %v886 = vpop.permute.xlu0 %885
        %v889 = vsel %vm499, %v884, 0
        %891 = vmatprep.subr.bf16.mxu0 0
        %892 = vmatpush1.bf16.msra.mxu0 0
        %893 = vmatprep.subr.bf16.mxu0 0
        %894 = vmatpush1.bf16.msra.mxu0 0
        %895 = vmatprep.subr.bf16.mxu0 0
        %896 = vmatpush1.bf16.msra.mxu0 0
        %897 = vmatprep.subr.bf16.mxu0 0
        %898 = vmatpush1.bf16.msra.mxu0 0
        %899 = vmatprep.subr.bf16.mxu0 0
        %900 = vmatpush1.bf16.msra.mxu0 0
        %901 = vmatprep.subr.bf16.mxu0 0
        %902 = vmatpush1.bf16.msra.mxu0 0
        %903 = vmatprep.subr.bf16.mxu0 0
        %904 = vmatpush1.bf16.msra.mxu0 0
        %905 = vmatprep.subr.bf16.mxu0 0
        %906 = vmatpush1.bf16.msra.mxu0 %v886
        %907 = vmatprep.subr.bf16.mxu0 0
        %908 = vmatpush2.bf16.msra.mxu0 0
        %909 = vmatprep.subr.bf16.mxu0 0
        %910 = vmatpush2.bf16.msra.mxu0 0
        %911 = vmatprep.subr.bf16.mxu0 0
        %912 = vmatpush2.bf16.msra.mxu0 0
        %913 = vmatprep.subr.bf16.mxu0 0
        %914 = vmatpush2.bf16.msra.mxu0 0
        %915 = vmatprep.subr.bf16.mxu0 0
        %916 = vmatpush2.bf16.msra.mxu0 0
        %917 = vmatprep.subr.bf16.mxu0 0
        %918 = vmatpush2.bf16.msra.mxu0 0
        %919 = vmatprep.subr.bf16.mxu0 0
        %920 = vmatpush2.bf16.msra.mxu0 0
        %921 = vmatprep.subr.bf16.mxu0 0
        %922 = vmatpush2.bf16.msra.mxu0 0
        %923 = vmatprep.mubr.bf16.mxu0 0
        %924 = vmatmul.mubr.bf16.gmra.mxu0 %v889
        %v925 = vpop.f32.mrf.mxu0
        %v926 = vadd.f32 0.0, %v925
        %v927 = vpop.f32.mrf.mxu0
        %v928 = vpop.f32.mrf.mxu0
        %v929 = vadd.f32 0.0, %v928
        %v930 = vpop.f32.mrf.mxu0
        %931 = vdwg.mxu0
        %v932 = vrcp.pop %v880
        %v933 = vrcp.pop %v883
        %v934 = vmul.f32 %v926, %v932
        %v935 = vmul.f32 %v929, %v933
        %938 = vrot.lane.b32.xlu0 %v692, 32
        %v939 = vpop.permute.xlu0 %938
        %940 = vrot.lane.b32.xlu0 %v693, 32
        %v941 = vpop.permute.xlu0 %940
        %946 = vrot.lane.b32.xlu0 %v813, 64
        %v947 = vpop.permute.xlu0 %946
        %948 = vrot.lane.b32.xlu0 %v814, 64
        %v949 = vpop.permute.xlu0 %948
        %954 = vrot.lane.b32.xlu0 %v934, 96
        %v955 = vpop.permute.xlu0 %954
        %956 = vrot.lane.b32.xlu0 %v935, 96
        %v957 = vpop.permute.xlu0 %956
        %v960 = vsel %vm451, %v571, %v939
        %v961 = vsel %vm451, %v572, %v941
        %vm962 = vcmask 523264
        %v963 = vsel %vm962, %v960, %v947
        %v964 = vsel %vm962, %v961, %v949
        %vm965 = vcmask 785408
        %v966 = vsel %vm965, %v963, %v955
        %v967 = vsel %vm965, %v964, %v957
        %v968 = vpack.c.bf16 %v967, %v966
        %v970 = vunpack.c.l.b16 %v968
        %v971 = vunpack.c.h.b16 %v968
        %v972 = vpack.c.b16 %v970, %v970
        %v973 = vpack.c.b16 %v971, %v971
        %976 = vst [vmem:[%s425] sm:$0xf] %v972
        %977 = vst [vmem:[%s425 + $0x4] sm:$0xf] %v973
        %s978 = smul.u32 2, %s20
        %p979 = scmp.lt.s32.totalorder %s19, 1
        %s980 = scalar_select %p979, %s19, 1
        %p981 = scmp.lt.s32.totalorder %s978, 1
        %s982 = scalar_select %p981, %s978, 1
        %s983 = smul.addr %s980, 2
        %s984 = sadd.s32 %s982, %s983
        %s985 = smul.addr %s984, 4
        %s986 = scalar_lea.vmem %s4, %s985
        // Predicated region
        $region160: #{_lambda_.14} parent=146 // pred_check
          %p987 = pneg %p153
        $region161: #{_lambda_.14} parent=146 // pred_check_branch
          %989 = sbr.rel (%p987) target = $region163
        $region162: #{_lambda_.14} parent=146 // pred_region
          %s990 = smul.u32 2, %s20
        $region163: #{_lambda_.14} parent=146 // pred_fallthru
          _
      $region147: #{_lambda_.14} parent=5 // pred_fallthru
        _
      %p991 = scmp.le.s32.totalorder 2, %s10
      // Predicated region
      $region164: #{_lambda_.14} parent=5 // pred_check
        %p992 = pneg %p991
      $region165: #{_lambda_.14} parent=5 // pred_check_branch
        %994 = sbr.rel (%p992) target = $region167
      $region166: #{_lambda_.14} parent=5 // pred_region
        %s995 = ssub.s32 %s10, 2
        // Predicated region
        $region168: #{_lambda_.14} parent=166 // pred_check
          %p996 = pneg %p159
        $region169: #{_lambda_.14} parent=166 // pred_check_branch
          %998 = sbr.rel (%p996) target = $region171
        $region170: #{_lambda_.14} parent=166 // pred_region
          %s999 = smul.u32 2, %s22
          %p1000 = scmp.lt.s32.totalorder %s21, 1
          %s1001 = scalar_select %p1000, %s21, 1
          %p1002 = scmp.lt.s32.totalorder %s999, 1
          %s1003 = scalar_select %p1002, %s999, 1
          %s1004 = smul.addr %s1001, 2
          %s1005 = sadd.s32 %s1003, %s1004
          %s1006 = smul.addr %s1005, 4
          %s1007 = scalar_lea.vmem %s4, %s1006
        $region171: #{_lambda_.14} parent=166 // pred_fallthru
          _
      $region167: #{_lambda_.14} parent=5 // pred_fallthru
        _
    $region6: #{_lambda_.14} parent=1 // loop_footer
      %s14 = sadd.s32 1, %s10
    $region7: #{_lambda_.14} parent=1 // loop_footer_branch
      %9 = sbr.rel target = $region3
    $region8: #{_lambda_.14} parent=1 // loop_exit
      _

// kernel: _lambda_.16
$region0: #{_lambda_.16}
  #allocation0 [shape = 'u32[]', space=smem, size = 0x4, offset = 0x4, fixed_abs, tag = 'smem constant byte address 0x4 - core index']
  #allocation1 [shape = 'u32[144,128]{1,0:T(1,128)}', space=vmem, size = 0x12000, scoped, tag = 'internal scratch']
  %s0 = inlined_call_operand.vmem [shape: bf16[32,128], index: 0, kind: input, shape index: {}]
  %s1 = inlined_call_operand.vmem [shape: bf16[128,256], index: 1, kind: input, shape index: {}]
  %s2 = inlined_call_operand.vmem [shape: f32[1,256], index: 2, kind: input, shape index: {}]
  %s3 = inlined_call_operand.vmem [shape: bf16[32,256], index: 3, kind: output, shape index: {}]
  %s4 = sld [smem:[#allocation0]]
  $region22: #{_lambda_.16} parent=0
    _
  %s6 = ssub.s32 1, %s4
  %s7 = scalar_select 0, %s6, %s4
  // Predicated region
  $region2: #{_lambda_.16} parent=0 // pred_check
    _
  $region3: #{_lambda_.16} parent=0 // pred_check_branch
    %9 = sbr.rel (0) target = $region5
  $region4: #{_lambda_.16} parent=0 // pred_region
    _
  $region5: #{_lambda_.16} parent=0 // pred_fallthru
    _
  // Predicated region
  $region6: #{_lambda_.16} parent=0 // pred_check
    _
  $region7: #{_lambda_.16} parent=0 // pred_check_branch
    %11 = sbr.rel (0) target = $region9
  $region8: #{_lambda_.16} parent=0 // pred_region
    _
  $region9: #{_lambda_.16} parent=0 // pred_fallthru
    _
  // Predicated region
  $region10: #{_lambda_.16} parent=0 // pred_check
    _
  $region11: #{_lambda_.16} parent=0 // pred_check_branch
    %13 = sbr.rel (0) target = $region13
  $region12: #{_lambda_.16} parent=0 // pred_region
    _
  $region13: #{_lambda_.16} parent=0 // pred_fallthru
    _
  %v15 = vld [vmem:[%s0] sm:$0xf]
  %v16 = vld [vmem:[%s0 + $0x4] sm:$0xf]
  %v17 = vld [vmem:[%s0 + $0x8] sm:$0xf]
  %v18 = vld [vmem:[%s0 + $0xc] sm:$0xf]
  %v19 = vld [vmem:[%s1] sm:$0xff]
  %v20 = vld [vmem:[%s1 + $0x8] sm:$0xff]
  %v21 = vld [vmem:[%s1 + $0x10] sm:$0xff]
  %v22 = vld [vmem:[%s1 + $0x18] sm:$0xff]
  %v23 = vld [vmem:[%s1 + $0x20] sm:$0xff]
  %v24 = vld [vmem:[%s1 + $0x28] sm:$0xff]
  %v25 = vld [vmem:[%s1 + $0x30] sm:$0xff]
  %v26 = vld [vmem:[%s1 + $0x38] sm:$0xff]
  %v27 = vld [vmem:[%s1 + $0x40] sm:$0xff]
  %v28 = vld [vmem:[%s1 + $0x48] sm:$0xff]
  %v29 = vld [vmem:[%s1 + $0x50] sm:$0xff]
  %v30 = vld [vmem:[%s1 + $0x58] sm:$0xff]
  %v31 = vld [vmem:[%s1 + $0x60] sm:$0xff]
  %v32 = vld [vmem:[%s1 + $0x68] sm:$0xff]
  %v33 = vld [vmem:[%s1 + $0x70] sm:$0xff]
  %v34 = vld [vmem:[%s1 + $0x78] sm:$0xff]
  %v35 = vld [vmem:[%s2] sm:$0x3]
  %v37 = vlaneseq
  %v38 = vshrl.u32 %v37, 7
  %v39 = vsub.s32 0, %v38
  %v40 = vrot.slane %v35, %v39
  %v41 = vlaneseq
  %v42 = vshrl.u32 %v41, 7
  %v43 = vsub.s32 1, %v42
  %v44 = vrot.slane %v35, %v43
  %v51 = vunpack.c.l.b16 %v15
  %v52 = vunpack.c.l.b16 %v16
  %v53 = vunpack.c.l.b16 %v17
  %v54 = vunpack.c.l.b16 %v18
  %v55 = vpack.c.b16 %v52, %v51
  %v56 = vpack.c.b16 %v54, %v53
  %v75 = vunpack.c.l.b16 %v19
  %v76 = vunpack.c.h.b16 %v19
  %v77 = vunpack.c.l.b16 %v20
  %v78 = vunpack.c.h.b16 %v20
  %v79 = vunpack.c.l.b16 %v21
  %v80 = vunpack.c.h.b16 %v21
  %v81 = vunpack.c.l.b16 %v22
  %v82 = vunpack.c.h.b16 %v22
  %v83 = vunpack.c.l.b16 %v23
  %v84 = vunpack.c.h.b16 %v23
  %v85 = vunpack.c.l.b16 %v24
  %v86 = vunpack.c.h.b16 %v24
  %v87 = vunpack.c.l.b16 %v25
  %v88 = vunpack.c.h.b16 %v25
  %v89 = vunpack.c.l.b16 %v26
  %v90 = vunpack.c.h.b16 %v26
  %v91 = vunpack.c.l.b16 %v27
  %v92 = vunpack.c.h.b16 %v27
  %v93 = vunpack.c.l.b16 %v28
  %v94 = vunpack.c.h.b16 %v28
  %v95 = vunpack.c.l.b16 %v29
  %v96 = vunpack.c.h.b16 %v29
  %v97 = vunpack.c.l.b16 %v30
  %v98 = vunpack.c.h.b16 %v30
  %v99 = vunpack.c.l.b16 %v31
  %v100 = vunpack.c.h.b16 %v31
  %v101 = vunpack.c.l.b16 %v32
  %v102 = vunpack.c.h.b16 %v32
  %v103 = vunpack.c.l.b16 %v33
  %v104 = vunpack.c.h.b16 %v33
  %v105 = vunpack.c.l.b16 %v34
  %v106 = vunpack.c.h.b16 %v34
  %v107 = vpack.c.b16 %v77, %v75
  %v108 = vpack.c.b16 %v78, %v76
  %v109 = vpack.c.b16 %v81, %v79
  %v110 = vpack.c.b16 %v82, %v80
  %v111 = vpack.c.b16 %v85, %v83
  %v112 = vpack.c.b16 %v86, %v84
  %v113 = vpack.c.b16 %v89, %v87
  %v114 = vpack.c.b16 %v90, %v88
  %v115 = vpack.c.b16 %v93, %v91
  %v116 = vpack.c.b16 %v94, %v92
  %v117 = vpack.c.b16 %v97, %v95
  %v118 = vpack.c.b16 %v98, %v96
  %v119 = vpack.c.b16 %v101, %v99
  %v120 = vpack.c.b16 %v102, %v100
  %v121 = vpack.c.b16 %v105, %v103
  %v122 = vpack.c.b16 %v106, %v104
  %139 = vmatprep.subr.bf16.mxu0 %v122
  %140 = vmatpush1.bf16.msra.mxu0 %v121
  %141 = vmatprep.subr.bf16.mxu0 %v120
  %142 = vmatpush1.bf16.msra.mxu0 %v119
  %143 = vmatprep.subr.bf16.mxu0 %v118
  %144 = vmatpush1.bf16.msra.mxu0 %v117
  %145 = vmatprep.subr.bf16.mxu0 %v116
  %146 = vmatpush1.bf16.msra.mxu0 %v115
  %147 = vmatprep.subr.bf16.mxu0 %v114
  %148 = vmatpush1.bf16.msra.mxu0 %v113
  %149 = vmatprep.subr.bf16.mxu0 %v112
  %150 = vmatpush1.bf16.msra.mxu0 %v111
  %151 = vmatprep.subr.bf16.mxu0 %v110
  %152 = vmatpush1.bf16.msra.mxu0 %v109
  %153 = vmatprep.subr.bf16.mxu0 %v108
  %154 = vmatpush1.bf16.msra.mxu0 %v107
  %155 = vmatprep.subr.bf16.mxu0 0
  %156 = vmatpush2.bf16.msra.mxu0 0
  %157 = vmatprep.subr.bf16.mxu0 0
  %158 = vmatpush2.bf16.msra.mxu0 0
  %159 = vmatprep.subr.bf16.mxu0 0
  %160 = vmatpush2.bf16.msra.mxu0 0
  %161 = vmatprep.subr.bf16.mxu0 0
  %162 = vmatpush2.bf16.msra.mxu0 0
  %163 = vmatprep.subr.bf16.mxu0 0
  %164 = vmatpush2.bf16.msra.mxu0 0
  %165 = vmatprep.subr.bf16.mxu0 0
  %166 = vmatpush2.bf16.msra.mxu0 0
  %167 = vmatprep.subr.bf16.mxu0 0
  %168 = vmatpush2.bf16.msra.mxu0 0
  %169 = vmatprep.subr.bf16.mxu0 0
  %170 = vmatpush2.bf16.msra.mxu0 0
  %171 = vmatprep.mubr.bf16.mxu0 0
  %172 = vmatmul.mubr.bf16.gmra.mxu0 %v55
  %v173 = vpop.f32.mrf.mxu0
  %v174 = vadd.f32 %v40, %v173
  %v175 = vpop.f32.mrf.mxu0
  %v176 = vadd.f32 %v44, %v175
  %v177 = vpop.f32.mrf.mxu0
  %v178 = vadd.f32 %v40, %v177
  %v179 = vpop.f32.mrf.mxu0
  %v180 = vadd.f32 %v44, %v179
  %181 = vmatprep.mubr.bf16.mxu0 0
  %182 = vmatmul.mubr.bf16.gmra.mxu0 %v56
  %v183 = vpop.f32.mrf.mxu0
  %v184 = vadd.f32 %v40, %v183
  %v185 = vpop.f32.mrf.mxu0
  %v186 = vadd.f32 %v44, %v185
  %v187 = vpop.f32.mrf.mxu0
  %v188 = vadd.f32 %v40, %v187
  %v189 = vpop.f32.mrf.mxu0
  %v190 = vadd.f32 %v44, %v189
  %191 = vdwg.mxu0
  %v192 = vmul.f32 %v174, 0.5
  %v193 = vmul.f32 %v176, 0.5
  %v194 = vmul.f32 %v178, 0.5
  %v195 = vmul.f32 %v180, 0.5
  %v196 = vmul.f32 %v184, 0.5
  %v197 = vmul.f32 %v186, 0.5
  %v198 = vmul.f32 %v188, 0.5
  %v199 = vmul.f32 %v190, 0.5
  %v200 = vmul.f32 %v174, 0.044715
  %v201 = vmul.f32 %v176, 0.044715
  %v202 = vmul.f32 %v178, 0.044715
  %v203 = vmul.f32 %v180, 0.044715
  %v204 = vmul.f32 %v184, 0.044715
  %v205 = vmul.f32 %v186, 0.044715
  %v206 = vmul.f32 %v188, 0.044715
  %v207 = vmul.f32 %v190, 0.044715
  %v208 = vmul.f32 %v200, %v174
  %v209 = vmul.f32 %v201, %v176
  %v210 = vmul.f32 %v202, %v178
  %v211 = vmul.f32 %v203, %v180
  %v212 = vmul.f32 %v204, %v184
  %v213 = vmul.f32 %v205, %v186
  %v214 = vmul.f32 %v206, %v188
  %v215 = vmul.f32 %v207, %v190
  %v216 = vmul.f32 %v208, %v174
  %v217 = vmul.f32 %v209, %v176
  %v218 = vmul.f32 %v210, %v178
  %v219 = vmul.f32 %v211, %v180
  %v220 = vmul.f32 %v212, %v184
  %v221 = vmul.f32 %v213, %v186
  %v222 = vmul.f32 %v214, %v188
  %v223 = vmul.f32 %v215, %v190
  %v224 = vadd.f32 %v174, %v216
  %v225 = vadd.f32 %v176, %v217
  %v226 = vadd.f32 %v178, %v218
  %v227 = vadd.f32 %v180, %v219
  %v228 = vadd.f32 %v184, %v220
  %v229 = vadd.f32 %v186, %v221
  %v230 = vadd.f32 %v188, %v222
  %v231 = vadd.f32 %v190, %v223
  %v232 = vmul.f32 %v224, 0.7978846
  %v233 = vmul.f32 %v225, 0.7978846
  %v234 = vmul.f32 %v226, 0.7978846
  %v235 = vmul.f32 %v227, 0.7978846
  %v236 = vmul.f32 %v228, 0.7978846
  %v237 = vmul.f32 %v229, 0.7978846
  %v238 = vmul.f32 %v230, 0.7978846
  %v239 = vmul.f32 %v231, 0.7978846
  %v240 = vtanh.pop %v232
  %v241 = vtanh.pop %v233
  %v242 = vtanh.pop %v234
  %v243 = vtanh.pop %v235
  %v244 = vtanh.pop %v236
  %v245 = vtanh.pop %v237
  %v246 = vtanh.pop %v238
  %v247 = vtanh.pop %v239
  %v248 = vadd.f32 %v240, 1.0
  %v249 = vadd.f32 %v241, 1.0
  %v250 = vadd.f32 %v242, 1.0
  %v251 = vadd.f32 %v243, 1.0
  %v252 = vadd.f32 %v244, 1.0
  %v253 = vadd.f32 %v245, 1.0
  %v254 = vadd.f32 %v246, 1.0
  %v255 = vadd.f32 %v247, 1.0
  %v256 = vmul.f32 %v192, %v248
  %v257 = vmul.f32 %v193, %v249
  %v258 = vmul.f32 %v194, %v250
  %v259 = vmul.f32 %v195, %v251
  %v260 = vmul.f32 %v196, %v252
  %v261 = vmul.f32 %v197, %v253
  %v262 = vmul.f32 %v198, %v254
  %v263 = vmul.f32 %v199, %v255
  %v264 = vpack.c.bf16 %v258, %v256
  %v265 = vpack.c.bf16 %v259, %v257
  %v266 = vpack.c.bf16 %v262, %v260
  %v267 = vpack.c.bf16 %v263, %v261
  %v272 = vunpack.c.l.b16 %v264
  %v273 = vunpack.c.l.b16 %v265
  %v274 = vunpack.c.h.b16 %v264
  %v275 = vunpack.c.h.b16 %v265
  %v276 = vunpack.c.l.b16 %v266
  %v277 = vunpack.c.l.b16 %v267
  %v278 = vunpack.c.h.b16 %v266
  %v279 = vunpack.c.h.b16 %v267
  %v280 = vpack.c.b16 %v273, %v272
  %v281 = vpack.c.b16 %v275, %v274
  %v282 = vpack.c.b16 %v277, %v276
  %v283 = vpack.c.b16 %v279, %v278
  %288 = vst [vmem:[%s3] sm:$0xff] %v280
  %289 = vst [vmem:[%s3 + $0x8] sm:$0xff] %v281
  %290 = vst [vmem:[%s3 + $0x10] sm:$0xff] %v282
  %291 = vst [vmem:[%s3 + $0x18] sm:$0xff] %v283
  // Predicated region
  $region14: #{_lambda_.16} parent=0 // pred_check
    _
  $region15: #{_lambda_.16} parent=0 // pred_check_branch
    %293 = sbr.rel (0) target = $region17
  $region16: #{_lambda_.16} parent=0 // pred_region
    _
  $region17: #{_lambda_.16} parent=0 // pred_fallthru
    _
  // Predicated region
  $region18: #{_lambda_.16} parent=0 // pred_check
    _
  $region19: #{_lambda_.16} parent=0 // pred_check_branch
    %295 = sbr.rel (0) target = $region21
  $region20: #{_lambda_.16} parent=0 // pred_region
    _
  $region21: #{_lambda_.16} parent=0 // pred_fallthru
    _

// kernel: _lambda_.17
$region0: #{_lambda_.17}
  #allocation0 [shape = 'u32[]', space=smem, size = 0x4, offset = 0x4, fixed_abs, tag = 'smem constant byte address 0x4 - core index']
  #allocation1 [shape = 'u32[144,128]{1,0:T(1,128)}', space=vmem, size = 0x12000, scoped, tag = 'internal scratch']
  %s0 = inlined_call_operand.vmem [shape: bf16[32,256], index: 0, kind: input, shape index: {}]
  %s1 = inlined_call_operand.vmem [shape: bf16[256,128], index: 1, kind: input, shape index: {}]
  %s2 = inlined_call_operand.vmem [shape: f32[1,128], index: 2, kind: input, shape index: {}]
  %s3 = inlined_call_operand.vmem [shape: bf16[32,128], index: 3, kind: input, shape index: {}]
  %s4 = inlined_call_operand.vmem [shape: f32[1,128], index: 4, kind: input, shape index: {}]
  %s5 = inlined_call_operand.vmem [shape: f32[1,128], index: 5, kind: input, shape index: {}]
  %s6 = inlined_call_operand.vmem [shape: bf16[32,128], index: 6, kind: output, shape index: {}]
  %s7 = sld [smem:[#allocation0]]
  $region34: #{_lambda_.17} parent=0
    _
  %s9 = ssub.s32 1, %s7
  %s10 = scalar_select 0, %s9, %s7
  // Predicated region
  $region2: #{_lambda_.17} parent=0 // pred_check
    _
  $region3: #{_lambda_.17} parent=0 // pred_check_branch
    %12 = sbr.rel (0) target = $region5
  $region4: #{_lambda_.17} parent=0 // pred_region
    _
  $region5: #{_lambda_.17} parent=0 // pred_fallthru
    _
  // Predicated region
  $region6: #{_lambda_.17} parent=0 // pred_check
    _
  $region7: #{_lambda_.17} parent=0 // pred_check_branch
    %14 = sbr.rel (0) target = $region9
  $region8: #{_lambda_.17} parent=0 // pred_region
    _
  $region9: #{_lambda_.17} parent=0 // pred_fallthru
    _
  // Predicated region
  $region10: #{_lambda_.17} parent=0 // pred_check
    _
  $region11: #{_lambda_.17} parent=0 // pred_check_branch
    %16 = sbr.rel (0) target = $region13
  $region12: #{_lambda_.17} parent=0 // pred_region
    _
  $region13: #{_lambda_.17} parent=0 // pred_fallthru
    _
  // Predicated region
  $region14: #{_lambda_.17} parent=0 // pred_check
    _
  $region15: #{_lambda_.17} parent=0 // pred_check_branch
    %18 = sbr.rel (0) target = $region17
  $region16: #{_lambda_.17} parent=0 // pred_region
    _
  $region17: #{_lambda_.17} parent=0 // pred_fallthru
    _
  // Predicated region
  $region18: #{_lambda_.17} parent=0 // pred_check
    _
  $region19: #{_lambda_.17} parent=0 // pred_check_branch
    %20 = sbr.rel (0) target = $region21
  $region20: #{_lambda_.17} parent=0 // pred_region
    _
  $region21: #{_lambda_.17} parent=0 // pred_fallthru
    _
  // Predicated region
  $region22: #{_lambda_.17} parent=0 // pred_check
    _
  $region23: #{_lambda_.17} parent=0 // pred_check_branch
    %22 = sbr.rel (0) target = $region25
  $region24: #{_lambda_.17} parent=0 // pred_region
    _
  $region25: #{_lambda_.17} parent=0 // pred_fallthru
    _
  %v24 = vld [vmem:[%s0] sm:$0xff]
  %v25 = vld [vmem:[%s0 + $0x8] sm:$0xff]
  %v26 = vld [vmem:[%s0 + $0x10] sm:$0xff]
  %v27 = vld [vmem:[%s0 + $0x18] sm:$0xff]
  %v28 = vld [vmem:[%s1] sm:$0xf]
  %v29 = vld [vmem:[%s1 + $0x4] sm:$0xf]
  %v30 = vld [vmem:[%s1 + $0x8] sm:$0xf]
  %v31 = vld [vmem:[%s1 + $0xc] sm:$0xf]
  %v32 = vld [vmem:[%s1 + $0x10] sm:$0xf]
  %v33 = vld [vmem:[%s1 + $0x14] sm:$0xf]
  %v34 = vld [vmem:[%s1 + $0x18] sm:$0xf]
  %v35 = vld [vmem:[%s1 + $0x1c] sm:$0xf]
  %v36 = vld [vmem:[%s1 + $0x20] sm:$0xf]
  %v37 = vld [vmem:[%s1 + $0x24] sm:$0xf]
  %v38 = vld [vmem:[%s1 + $0x28] sm:$0xf]
  %v39 = vld [vmem:[%s1 + $0x2c] sm:$0xf]
  %v40 = vld [vmem:[%s1 + $0x30] sm:$0xf]
  %v41 = vld [vmem:[%s1 + $0x34] sm:$0xf]
  %v42 = vld [vmem:[%s1 + $0x38] sm:$0xf]
  %v43 = vld [vmem:[%s1 + $0x3c] sm:$0xf]
  %v44 = vld [vmem:[%s1 + $0x40] sm:$0xf]
  %v45 = vld [vmem:[%s1 + $0x44] sm:$0xf]
  %v46 = vld [vmem:[%s1 + $0x48] sm:$0xf]
  %v47 = vld [vmem:[%s1 + $0x4c] sm:$0xf]
  %v48 = vld [vmem:[%s1 + $0x50] sm:$0xf]
  %v49 = vld [vmem:[%s1 + $0x54] sm:$0xf]
  %v50 = vld [vmem:[%s1 + $0x58] sm:$0xf]
  %v51 = vld [vmem:[%s1 + $0x5c] sm:$0xf]
  %v52 = vld [vmem:[%s1 + $0x60] sm:$0xf]
  %v53 = vld [vmem:[%s1 + $0x64] sm:$0xf]
  %v54 = vld [vmem:[%s1 + $0x68] sm:$0xf]
  %v55 = vld [vmem:[%s1 + $0x6c] sm:$0xf]
  %v56 = vld [vmem:[%s1 + $0x70] sm:$0xf]
  %v57 = vld [vmem:[%s1 + $0x74] sm:$0xf]
  %v58 = vld [vmem:[%s1 + $0x78] sm:$0xf]
  %v59 = vld [vmem:[%s1 + $0x7c] sm:$0xf]
  %v60 = vld [vmem:[%s2] sm:$0x1]
  %v62 = vlaneseq
  %v63 = vshrl.u32 %v62, 7
  %v64 = vsub.s32 0, %v63
  %v65 = vrot.slane %v60, %v64
  %v71 = vunpack.c.l.b16 %v24
  %v72 = vunpack.c.h.b16 %v24
  %v73 = vunpack.c.l.b16 %v25
  %v74 = vunpack.c.h.b16 %v25
  %v75 = vunpack.c.l.b16 %v26
  %v76 = vunpack.c.h.b16 %v26
  %v77 = vunpack.c.l.b16 %v27
  %v78 = vunpack.c.h.b16 %v27
  %v79 = vpack.c.b16 %v73, %v71
  %v80 = vpack.c.b16 %v74, %v72
  %v81 = vpack.c.b16 %v77, %v75
  %v82 = vpack.c.b16 %v78, %v76
  %v119 = vunpack.c.l.b16 %v28
  %v120 = vunpack.c.l.b16 %v29
  %v121 = vunpack.c.l.b16 %v30
  %v122 = vunpack.c.l.b16 %v31
  %v123 = vunpack.c.l.b16 %v32
  %v124 = vunpack.c.l.b16 %v33
  %v125 = vunpack.c.l.b16 %v34
  %v126 = vunpack.c.l.b16 %v35
  %v127 = vunpack.c.l.b16 %v36
  %v128 = vunpack.c.l.b16 %v37
  %v129 = vunpack.c.l.b16 %v38
  %v130 = vunpack.c.l.b16 %v39
  %v131 = vunpack.c.l.b16 %v40
  %v132 = vunpack.c.l.b16 %v41
  %v133 = vunpack.c.l.b16 %v42
  %v134 = vunpack.c.l.b16 %v43
  %v135 = vunpack.c.l.b16 %v44
  %v136 = vunpack.c.l.b16 %v45
  %v137 = vunpack.c.l.b16 %v46
  %v138 = vunpack.c.l.b16 %v47
  %v139 = vunpack.c.l.b16 %v48
  %v140 = vunpack.c.l.b16 %v49
  %v141 = vunpack.c.l.b16 %v50
  %v142 = vunpack.c.l.b16 %v51
  %v143 = vunpack.c.l.b16 %v52
  %v144 = vunpack.c.l.b16 %v53
  %v145 = vunpack.c.l.b16 %v54
  %v146 = vunpack.c.l.b16 %v55
  %v147 = vunpack.c.l.b16 %v56
  %v148 = vunpack.c.l.b16 %v57
  %v149 = vunpack.c.l.b16 %v58
  %v150 = vunpack.c.l.b16 %v59
  %v151 = vpack.c.b16 %v120, %v119
  %v152 = vpack.c.b16 %v122, %v121
  %v153 = vpack.c.b16 %v124, %v123
  %v154 = vpack.c.b16 %v126, %v125
  %v155 = vpack.c.b16 %v128, %v127
  %v156 = vpack.c.b16 %v130, %v129
  %v157 = vpack.c.b16 %v132, %v131
  %v158 = vpack.c.b16 %v134, %v133
  %v159 = vpack.c.b16 %v136, %v135
  %v160 = vpack.c.b16 %v138, %v137
  %v161 = vpack.c.b16 %v140, %v139
  %v162 = vpack.c.b16 %v142, %v141
  %v163 = vpack.c.b16 %v144, %v143
  %v164 = vpack.c.b16 %v146, %v145
  %v165 = vpack.c.b16 %v148, %v147
  %v166 = vpack.c.b16 %v150, %v149
  %183 = vmatprep.subr.bf16.mxu0 0
  %184 = vmatpush1.bf16.msra.mxu0 %v158
  %185 = vmatprep.subr.bf16.mxu0 0
  %186 = vmatpush1.bf16.msra.mxu0 %v157
  %187 = vmatprep.subr.bf16.mxu0 0
  %188 = vmatpush1.bf16.msra.mxu0 %v156
  %189 = vmatprep.subr.bf16.mxu0 0
  %190 = vmatpush1.bf16.msra.mxu0 %v155
  %191 = vmatprep.subr.bf16.mxu0 0
  %192 = vmatpush1.bf16.msra.mxu0 %v154
  %193 = vmatprep.subr.bf16.mxu0 0
  %194 = vmatpush1.bf16.msra.mxu0 %v153
  %195 = vmatprep.subr.bf16.mxu0 0
  %196 = vmatpush1.bf16.msra.mxu0 %v152
  %197 = vmatprep.subr.bf16.mxu0 0
  %198 = vmatpush1.bf16.msra.mxu0 %v151
  %199 = vmatprep.subr.bf16.mxu0 0
  %200 = vmatpush2.bf16.msra.mxu0 %v166
  %201 = vmatprep.subr.bf16.mxu0 0
  %202 = vmatpush2.bf16.msra.mxu0 %v165
  %203 = vmatprep.subr.bf16.mxu0 0
  %204 = vmatpush2.bf16.msra.mxu0 %v164
  %205 = vmatprep.subr.bf16.mxu0 0
  %206 = vmatpush2.bf16.msra.mxu0 %v163
  %207 = vmatprep.subr.bf16.mxu0 0
  %208 = vmatpush2.bf16.msra.mxu0 %v162
  %209 = vmatprep.subr.bf16.mxu0 0
  %210 = vmatpush2.bf16.msra.mxu0 %v161
  %211 = vmatprep.subr.bf16.mxu0 0
  %212 = vmatpush2.bf16.msra.mxu0 %v160
  %213 = vmatprep.subr.bf16.mxu0 0
  %214 = vmatpush2.bf16.msra.mxu0 %v159
  %215 = vmatprep.mubr.bf16.mxu0 %v80
  %216 = vmatmul.mubr.bf16.gmra.mxu0 %v79
  %v217 = vpop.f32.mrf.mxu0
  %v218 = vadd.f32 %v65, %v217
  %v219 = vpop.f32.mrf.mxu0
  %v220 = vpop.f32.mrf.mxu0
  %v221 = vadd.f32 %v65, %v220
  %v222 = vpop.f32.mrf.mxu0
  %223 = vmatprep.mubr.bf16.mxu0 %v82
  %224 = vmatmul.mubr.bf16.gmra.mxu0 %v81
  %v225 = vpop.f32.mrf.mxu0
  %v226 = vadd.f32 %v65, %v225
  %v227 = vpop.f32.mrf.mxu0
  %v228 = vpop.f32.mrf.mxu0
  %v229 = vadd.f32 %v65, %v228
  %v230 = vpop.f32.mrf.mxu0
  %231 = vdwg.mxu0
  %v232 = vld [vmem:[%s3] sm:$0xf]
  %v233 = vld [vmem:[%s3 + $0x4] sm:$0xf]
  %v234 = vld [vmem:[%s3 + $0x8] sm:$0xf]
  %v235 = vld [vmem:[%s3 + $0xc] sm:$0xf]
  %v236 = vunpack.c.l.bf16 %v232
  %v237 = vunpack.c.l.bf16 %v233
  %v238 = vunpack.c.l.bf16 %v234
  %v239 = vunpack.c.l.bf16 %v235
  %v240 = vadd.f32 %v218, %v236
  %v241 = vadd.f32 %v221, %v237
  %v242 = vadd.f32 %v226, %v238
  %v243 = vadd.f32 %v229, %v239
  %244 = vadd.xlane.f32.xlu0 %v240
  %v245 = vpop.xlane.xlu0 %244
  %246 = vadd.xlane.f32.xlu0 %v241
  %v247 = vpop.xlane.xlu0 %246
  %248 = vadd.xlane.f32.xlu0 %v242
  %v249 = vpop.xlane.xlu0 %248
  %250 = vadd.xlane.f32.xlu0 %v243
  %v251 = vpop.xlane.xlu0 %250
  %v252 = vrcp.pop 128.0
  %v253 = vmul.f32 %v245, %v252
  %v254 = vmul.f32 %v247, %v252
  %v255 = vmul.f32 %v249, %v252
  %v256 = vmul.f32 %v251, %v252
  %v257 = vsub.f32 %v240, %v253
  %v258 = vsub.f32 %v241, %v254
  %v259 = vsub.f32 %v242, %v255
  %v260 = vsub.f32 %v243, %v256
  %v261 = vmul.f32 %v257, %v257
  %v262 = vmul.f32 %v258, %v258
  %v263 = vmul.f32 %v259, %v259
  %v264 = vmul.f32 %v260, %v260
  %265 = vadd.xlane.f32.xlu0 %v261
  %v266 = vpop.xlane.xlu0 %265
  %267 = vadd.xlane.f32.xlu0 %v262
  %v268 = vpop.xlane.xlu0 %267
  %269 = vadd.xlane.f32.xlu0 %v263
  %v270 = vpop.xlane.xlu0 %269
  %271 = vadd.xlane.f32.xlu0 %v264
  %v272 = vpop.xlane.xlu0 %271
  %v273 = vmul.f32 %v266, %v252
  %v274 = vmul.f32 %v268, %v252
  %v275 = vmul.f32 %v270, %v252
  %v276 = vmul.f32 %v272, %v252
  %v277 = vadd.f32 %v273, 1e-12
  %v278 = vadd.f32 %v274, 1e-12
  %v279 = vadd.f32 %v275, 1e-12
  %v280 = vadd.f32 %v276, 1e-12
  %v281 = vrsqrt.pop %v277
  %v282 = vrsqrt.pop %v278
  %v283 = vrsqrt.pop %v279
  %v284 = vrsqrt.pop %v280
  %v285 = vmul.f32 %v257, %v281
  %v286 = vmul.f32 %v258, %v282
  %v287 = vmul.f32 %v259, %v283
  %v288 = vmul.f32 %v260, %v284
  %v289 = vld [vmem:[%s4] sm:$0x1]
  %v291 = vlaneseq
  %v292 = vshrl.u32 %v291, 7
  %v293 = vsub.s32 0, %v292
  %v294 = vrot.slane %v289, %v293
  %v296 = vmul.f32 %v285, %v294
  %v297 = vmul.f32 %v286, %v294
  %v298 = vmul.f32 %v287, %v294
  %v299 = vmul.f32 %v288, %v294
  %v300 = vld [vmem:[%s5] sm:$0x1]
  %v302 = vlaneseq
  %v303 = vshrl.u32 %v302, 7
  %v304 = vsub.s32 0, %v303
  %v305 = vrot.slane %v300, %v304
  %v307 = vadd.f32 %v296, %v305
  %v308 = vadd.f32 %v297, %v305
  %v309 = vadd.f32 %v298, %v305
  %v310 = vadd.f32 %v299, %v305
  %v311 = vpack.c.bf16 %v308, %v307
  %v312 = vpack.c.bf16 %v310, %v309
  %v315 = vunpack.c.l.b16 %v311
  %v316 = vunpack.c.h.b16 %v311
  %v317 = vunpack.c.l.b16 %v312
  %v318 = vunpack.c.h.b16 %v312
  %v319 = vpack.c.b16 %v315, %v315
  %v320 = vpack.c.b16 %v316, %v316
  %v321 = vpack.c.b16 %v317, %v317
  %v322 = vpack.c.b16 %v318, %v318
  %327 = vst [vmem:[%s6] sm:$0xf] %v319
  %328 = vst [vmem:[%s6 + $0x4] sm:$0xf] %v320
  %329 = vst [vmem:[%s6 + $0x8] sm:$0xf] %v321
  %330 = vst [vmem:[%s6 + $0xc] sm:$0xf] %v322
  // Predicated region
  $region26: #{_lambda_.17} parent=0 // pred_check
    _
  $region27: #{_lambda_.17} parent=0 // pred_check_branch
    %332 = sbr.rel (0) target = $region29
  $region28: #{_lambda_.17} parent=0 // pred_region
    _
  $region29: #{_lambda_.17} parent=0 // pred_fallthru
    _
  // Predicated region
  $region30: #{_lambda_.17} parent=0 // pred_check
    _
  $region31: #{_lambda_.17} parent=0 // pred_check_branch
    %334 = sbr.rel (0) target = $region33
  $region32: #{_lambda_.17} parent=0 // pred_region
    _
  $region33: #{_lambda_.17} parent=0 // pred_fallthru
    _

// kernel: _lambda_.23
$region0: #{_lambda_.23}
  #allocation0 [shape = 'u32[]', space=smem, size = 0x4, offset = 0x4, fixed_abs, tag = 'smem constant byte address 0x4 - core index']
  #allocation1 [shape = 'u32[144,128]{1,0:T(1,128)}', space=vmem, size = 0x12000, scoped, tag = 'internal scratch']
  %s0 = inlined_call_operand.vmem [shape: bf16[2,128], index: 0, kind: input, shape index: {}]
  %s1 = inlined_call_operand.vmem [shape: bf16[128,128], index: 1, kind: input, shape index: {}]
  %s2 = inlined_call_operand.vmem [shape: f32[1,128], index: 2, kind: input, shape index: {}]
  %s3 = inlined_call_operand.vmem [shape: bf16[128,128], index: 3, kind: input, shape index: {}]
  %s4 = inlined_call_operand.vmem [shape: f32[1,128], index: 4, kind: input, shape index: {}]
  %s5 = inlined_call_operand.hbm [shape: f32[2,128], index: 5, kind: output, shape index: {}]
  %s6 = sld [smem:[#allocation0]]
  $region30: #{_lambda_.23} parent=0
    _
  %s8 = ssub.s32 1, %s6
  %s9 = scalar_select 0, %s8, %s6
  $region1: #{_lambda_.23} parent=0
    #allocation2 [shape = 'u8[1024]{0}', space=vmem, size = 0x400, scoped, tag = 'output window, operand 0, single buffered']
    #allocation3 [shape = 's32[1]{0}', space=sflag, size = 0x4, scoped, tag = 'scoped memory for _lambda_.23']
    %10 = vsyncpa [#allocation3], 0
    // Predicated region
    $region2: #{_lambda_.23} parent=1 // pred_check
      _
    $region3: #{_lambda_.23} parent=1 // pred_check_branch
      %12 = sbr.rel (0) target = $region5
    $region4: #{_lambda_.23} parent=1 // pred_region
      _
    $region5: #{_lambda_.23} parent=1 // pred_fallthru
      _
    // Predicated region
    $region6: #{_lambda_.23} parent=1 // pred_check
      _
    $region7: #{_lambda_.23} parent=1 // pred_check_branch
      %14 = sbr.rel (0) target = $region9
    $region8: #{_lambda_.23} parent=1 // pred_region
      _
    $region9: #{_lambda_.23} parent=1 // pred_fallthru
      _
    // Predicated region
    $region10: #{_lambda_.23} parent=1 // pred_check
      _
    $region11: #{_lambda_.23} parent=1 // pred_check_branch
      %16 = sbr.rel (0) target = $region13
    $region12: #{_lambda_.23} parent=1 // pred_region
      _
    $region13: #{_lambda_.23} parent=1 // pred_fallthru
      _
    // Predicated region
    $region14: #{_lambda_.23} parent=1 // pred_check
      _
    $region15: #{_lambda_.23} parent=1 // pred_check_branch
      %18 = sbr.rel (0) target = $region17
    $region16: #{_lambda_.23} parent=1 // pred_region
      _
    $region17: #{_lambda_.23} parent=1 // pred_fallthru
      _
    // Predicated region
    $region18: #{_lambda_.23} parent=1 // pred_check
      _
    $region19: #{_lambda_.23} parent=1 // pred_check_branch
      %20 = sbr.rel (0) target = $region21
    $region20: #{_lambda_.23} parent=1 // pred_region
      _
    $region21: #{_lambda_.23} parent=1 // pred_fallthru
      _
    %v22 = vld [vmem:[%s0] sm:$0x1]
    %v23 = vld [vmem:[%s1] sm:$0xf]
    %v24 = vld [vmem:[%s1 + $0x4] sm:$0xf]
    %v25 = vld [vmem:[%s1 + $0x8] sm:$0xf]
    %v26 = vld [vmem:[%s1 + $0xc] sm:$0xf]
    %v27 = vld [vmem:[%s1 + $0x10] sm:$0xf]
    %v28 = vld [vmem:[%s1 + $0x14] sm:$0xf]
    %v29 = vld [vmem:[%s1 + $0x18] sm:$0xf]
    %v30 = vld [vmem:[%s1 + $0x1c] sm:$0xf]
    %v31 = vld [vmem:[%s1 + $0x20] sm:$0xf]
    %v32 = vld [vmem:[%s1 + $0x24] sm:$0xf]
    %v33 = vld [vmem:[%s1 + $0x28] sm:$0xf]
    %v34 = vld [vmem:[%s1 + $0x2c] sm:$0xf]
    %v35 = vld [vmem:[%s1 + $0x30] sm:$0xf]
    %v36 = vld [vmem:[%s1 + $0x34] sm:$0xf]
    %v37 = vld [vmem:[%s1 + $0x38] sm:$0xf]
    %v38 = vld [vmem:[%s1 + $0x3c] sm:$0xf]
    %v39 = vld [vmem:[%s2] sm:$0x1]
    %v41 = vlaneseq
    %v42 = vshrl.u32 %v41, 7
    %v43 = vsub.s32 0, %v42
    %v44 = vrot.slane %v39, %v43
    %v62 = vunpack.c.l.b16 %v23
    %v63 = vunpack.c.l.b16 %v24
    %v64 = vunpack.c.l.b16 %v25
    %v65 = vunpack.c.l.b16 %v26
    %v66 = vunpack.c.l.b16 %v27
    %v67 = vunpack.c.l.b16 %v28
    %v68 = vunpack.c.l.b16 %v29
    %v69 = vunpack.c.l.b16 %v30
    %v70 = vunpack.c.l.b16 %v31
    %v71 = vunpack.c.l.b16 %v32
    %v72 = vunpack.c.l.b16 %v33
    %v73 = vunpack.c.l.b16 %v34
    %v74 = vunpack.c.l.b16 %v35
    %v75 = vunpack.c.l.b16 %v36
    %v76 = vunpack.c.l.b16 %v37
    %v77 = vunpack.c.l.b16 %v38
    %v78 = vpack.c.b16 %v63, %v62
    %v79 = vpack.c.b16 %v65, %v64
    %v80 = vpack.c.b16 %v67, %v66
    %v81 = vpack.c.b16 %v69, %v68
    %v82 = vpack.c.b16 %v71, %v70
    %v83 = vpack.c.b16 %v73, %v72
    %v84 = vpack.c.b16 %v75, %v74
    %v85 = vpack.c.b16 %v77, %v76
    %94 = vmatprep.subr.bf16.mxu0 0
    %95 = vmatpush1.bf16.msra.mxu0 %v85
    %96 = vmatprep.subr.bf16.mxu0 0
    %97 = vmatpush1.bf16.msra.mxu0 %v84
    %98 = vmatprep.subr.bf16.mxu0 0
    %99 = vmatpush1.bf16.msra.mxu0 %v83
    %100 = vmatprep.subr.bf16.mxu0 0
    %101 = vmatpush1.bf16.msra.mxu0 %v82
    %102 = vmatprep.subr.bf16.mxu0 0
    %103 = vmatpush1.bf16.msra.mxu0 %v81
    %104 = vmatprep.subr.bf16.mxu0 0
    %105 = vmatpush1.bf16.msra.mxu0 %v80
    %106 = vmatprep.subr.bf16.mxu0 0
    %107 = vmatpush1.bf16.msra.mxu0 %v79
    %108 = vmatprep.subr.bf16.mxu0 0
    %109 = vmatpush1.bf16.msra.mxu0 %v78
    %110 = vmatprep.subr.bf16.mxu0 0
    %111 = vmatpush2.bf16.msra.mxu0 0
    %112 = vmatprep.subr.bf16.mxu0 0
    %113 = vmatpush2.bf16.msra.mxu0 0
    %114 = vmatprep.subr.bf16.mxu0 0
    %115 = vmatpush2.bf16.msra.mxu0 0
    %116 = vmatprep.subr.bf16.mxu0 0
    %117 = vmatpush2.bf16.msra.mxu0 0
    %118 = vmatprep.subr.bf16.mxu0 0
    %119 = vmatpush2.bf16.msra.mxu0 0
    %120 = vmatprep.subr.bf16.mxu0 0
    %121 = vmatpush2.bf16.msra.mxu0 0
    %122 = vmatprep.subr.bf16.mxu0 0
    %123 = vmatpush2.bf16.msra.mxu0 0
    %124 = vmatprep.subr.bf16.mxu0 0
    %125 = vmatpush2.bf16.msra.mxu0 0
    %126 = vmatprep.mubr.bf16.mxu0 0
    %127 = vmatmul.mubr.bf16.gmra.mxu0 %v22
    %v128 = vpop.f32.mrf.mxu0
    %v129 = vadd.f32 %v44, %v128
    %v130 = vpop.f32.mrf.mxu0
    %v131 = vpop.f32.mrf.mxu0
    %v132 = vpop.f32.mrf.mxu0
    %133 = vdwg.mxu0
    %v134 = vtanh.pop %v129
    %v135 = vpack.c.bf16 %v134, %v134
    %v136 = vld [vmem:[%s3] sm:$0xf]
    %v137 = vld [vmem:[%s3 + $0x4] sm:$0xf]
    %v138 = vld [vmem:[%s3 + $0x8] sm:$0xf]
    %v139 = vld [vmem:[%s3 + $0xc] sm:$0xf]
    %v140 = vld [vmem:[%s3 + $0x10] sm:$0xf]
    %v141 = vld [vmem:[%s3 + $0x14] sm:$0xf]
    %v142 = vld [vmem:[%s3 + $0x18] sm:$0xf]
    %v143 = vld [vmem:[%s3 + $0x1c] sm:$0xf]
    %v144 = vld [vmem:[%s3 + $0x20] sm:$0xf]
    %v145 = vld [vmem:[%s3 + $0x24] sm:$0xf]
    %v146 = vld [vmem:[%s3 + $0x28] sm:$0xf]
    %v147 = vld [vmem:[%s3 + $0x2c] sm:$0xf]
    %v148 = vld [vmem:[%s3 + $0x30] sm:$0xf]
    %v149 = vld [vmem:[%s3 + $0x34] sm:$0xf]
    %v150 = vld [vmem:[%s3 + $0x38] sm:$0xf]
    %v151 = vld [vmem:[%s3 + $0x3c] sm:$0xf]
    %v152 = vld [vmem:[%s4] sm:$0x1]
    %v154 = vlaneseq
    %v155 = vshrl.u32 %v154, 7
    %v156 = vsub.s32 0, %v155
    %v157 = vrot.slane %v152, %v156
    %v175 = vunpack.c.l.b16 %v136
    %v176 = vunpack.c.l.b16 %v137
    %v177 = vunpack.c.l.b16 %v138
    %v178 = vunpack.c.l.b16 %v139
    %v179 = vunpack.c.l.b16 %v140
    %v180 = vunpack.c.l.b16 %v141
    %v181 = vunpack.c.l.b16 %v142
    %v182 = vunpack.c.l.b16 %v143
    %v183 = vunpack.c.l.b16 %v144
    %v184 = vunpack.c.l.b16 %v145
    %v185 = vunpack.c.l.b16 %v146
    %v186 = vunpack.c.l.b16 %v147
    %v187 = vunpack.c.l.b16 %v148
    %v188 = vunpack.c.l.b16 %v149
    %v189 = vunpack.c.l.b16 %v150
    %v190 = vunpack.c.l.b16 %v151
    %v191 = vpack.c.b16 %v176, %v175
    %v192 = vpack.c.b16 %v178, %v177
    %v193 = vpack.c.b16 %v180, %v179
    %v194 = vpack.c.b16 %v182, %v181
    %v195 = vpack.c.b16 %v184, %v183
    %v196 = vpack.c.b16 %v186, %v185
    %v197 = vpack.c.b16 %v188, %v187
    %v198 = vpack.c.b16 %v190, %v189
    %207 = vmatprep.subr.bf16.mxu0 0
    %208 = vmatpush1.bf16.msra.mxu0 %v198
    %209 = vmatprep.subr.bf16.mxu0 0
    %210 = vmatpush1.bf16.msra.mxu0 %v197
    %211 = vmatprep.subr.bf16.mxu0 0
    %212 = vmatpush1.bf16.msra.mxu0 %v196
    %213 = vmatprep.subr.bf16.mxu0 0
    %214 = vmatpush1.bf16.msra.mxu0 %v195
    %215 = vmatprep.subr.bf16.mxu0 0
    %216 = vmatpush1.bf16.msra.mxu0 %v194
    %217 = vmatprep.subr.bf16.mxu0 0
    %218 = vmatpush1.bf16.msra.mxu0 %v193
    %219 = vmatprep.subr.bf16.mxu0 0
    %220 = vmatpush1.bf16.msra.mxu0 %v192
    %221 = vmatprep.subr.bf16.mxu0 0
    %222 = vmatpush1.bf16.msra.mxu0 %v191
    %223 = vmatprep.subr.bf16.mxu0 0
    %224 = vmatpush2.bf16.msra.mxu0 0
    %225 = vmatprep.subr.bf16.mxu0 0
    %226 = vmatpush2.bf16.msra.mxu0 0
    %227 = vmatprep.subr.bf16.mxu0 0
    %228 = vmatpush2.bf16.msra.mxu0 0
    %229 = vmatprep.subr.bf16.mxu0 0
    %230 = vmatpush2.bf16.msra.mxu0 0
    %231 = vmatprep.subr.bf16.mxu0 0
    %232 = vmatpush2.bf16.msra.mxu0 0
    %233 = vmatprep.subr.bf16.mxu0 0
    %234 = vmatpush2.bf16.msra.mxu0 0
    %235 = vmatprep.subr.bf16.mxu0 0
    %236 = vmatpush2.bf16.msra.mxu0 0
    %237 = vmatprep.subr.bf16.mxu0 0
    %238 = vmatpush2.bf16.msra.mxu0 0
    %239 = vmatprep.mubr.bf16.mxu0 0
    %240 = vmatmul.mubr.bf16.gmra.mxu0 %v135
    %v241 = vpop.f32.mrf.mxu0
    %v242 = vadd.f32 %v157, %v241
    %v243 = vpop.f32.mrf.mxu0
    %v244 = vpop.f32.mrf.mxu0
    %v245 = vpop.f32.mrf.mxu0
    %246 = vdwg.mxu0
    %247 = vst [vmem:[#allocation2] sm:$0x3] %v242
    // Predicated region
    $region22: #{_lambda_.23} parent=1 // pred_check
      _
    $region23: #{_lambda_.23} parent=1 // pred_check_branch
      %249 = sbr.rel (0) target = $region25
    $region24: #{_lambda_.23} parent=1 // pred_region
      %s251 = ssub.s32 32, 32
      %252 = vsyncadd [#allocation3], %s251
      %s254 = sshll.u32 [#allocation2], 4
      %s255 = int_to_ptr.vmem [resolvable:$true] %s254
      %257 = dma.vmem_to_hbm [thread:$0]  %s255, 32, %s5, [#allocation3]
    $region25: #{_lambda_.23} parent=1 // pred_fallthru
      _
    // Predicated region
    $region26: #{_lambda_.23} parent=1 // pred_check
      _
    $region27: #{_lambda_.23} parent=1 // pred_check_branch
      %259 = sbr.rel (0) target = $region29
    $region28: #{_lambda_.23} parent=1 // pred_region
      %260 = dma.done [#allocation3], 32
    $region29: #{_lambda_.23} parent=1 // pred_fallthru
      _
    %261 = vsyncpa [#allocation3], 1

</llo_original>
